<compile_context>
chip_gen: v5e
topology: v5e:2x2
jax: 0.10.0
libtpu: 0.0.40
codegen_flags: <defaults>
</compile_context>

<pallas_src>
import jax
import jax.numpy as jnp
from jax.experimental import pallas as pl
from jax.experimental.pallas import tpu as pltpu

# ----------------------- small synthetic config -----------------------------
B = 2
CVAE = 8                     # vae_local.Cvae
EMBED_DIM = 64
NUM_HEADS = 4
HEAD_DIM = EMBED_DIM // NUM_HEADS
DEPTH = 2                    # transformer layers (synthetic qwenmoe)
NUM_EXPERTS = 4
TOP_K = 2
MOE_FFN = 128
VOCAB_SIZE = 256             # vae_local.vocab_size
NUM_CLASSES = 10
PATCH_NUMS = (1, 2, 3, 4)    # sum(pn^2) = 30
POS_LEN = sum(pn * pn for pn in PATCH_NUMS)
L_TOKENS = 15                # L <= sum(pn^2)
T = L_TOKENS + 1             # class token prepended
N_TOK = B * T                # flattened (batch, seq) token count
EF = NUM_EXPERTS * MOE_FFN   # 512
NORM_EPS = 1e-6


# ------------------------------ kernel ---------------------------------------
def _rmsnorm(h, w):
    var = jnp.mean(h * h, axis=-1, keepdims=True)
    return h * jax.lax.rsqrt(var + NORM_EPS) * w


def moevar_fused_kernel(x_ref, cls_ref, pos_ref, bias_ref, gexp_ref,
                        wwe_ref, bwe_ref,
                        ln1_ref, wqkv_ref, wo_ref, ln2_ref, wr_ref,
                        wgu_ref, wd_ref, lnf_ref, wlm_ref,
                        out_ref, h_ref):
    """Entire MOEVAR forward on one VMEM-resident (B*T, D) activation."""
    f32 = jnp.float32
    bf16 = jnp.bfloat16
    D = EMBED_DIM

    # ---- embed prep: word_embed(x) + pos_embed, class token prepended ------
    xw = jnp.dot(x_ref[...].astype(bf16), wwe_ref[...],
                 preferred_element_type=f32)                 # (B*L, D)
    xw = xw + bwe_ref[...] + pos_ref[...]
    for b in range(B):                                       # direct ref stores
        h_ref[b * T:b * T + 1, :] = cls_ref[b:b + 1, :]
        h_ref[b * T + 1:(b + 1) * T, :] = xw[b * L_TOKENS:(b + 1) * L_TOKENS, :]
    x = h_ref[...]                                           # (N_TOK, D) f32
    # NOTE: nn.Dropout(drop_rate=0.0) is the identity, so no dropout here.

    # hoisted loop invariants
    attn_bias = bias_ref[...]                                # (N_TOK, N_TOK)
    gexp = gexp_ref[...]                                     # (E, E*F) 0/1
    scale = 1.0 / (HEAD_DIM ** 0.5)

    for l in range(DEPTH):                                   # unrolled, small
        # ---------------- attention ----------------
        xn = _rmsnorm(x, ln1_ref[l])
        qkv = jnp.dot(xn.astype(bf16), wqkv_ref[l],
                      preferred_element_type=f32)            # (N_TOK, 3D)
        heads = []
        for h in range(NUM_HEADS):                           # H=4, 2-D dots only
            lo = h * HEAD_DIM
            hi = lo + HEAD_DIM
            qh = qkv[:, lo:hi]
            kh = qkv[:, D + lo:D + hi]
            vh = qkv[:, 2 * D + lo:2 * D + hi]
            s = jnp.dot(qh, kh.T, preferred_element_type=f32) * scale
            s = s + attn_bias                                # block-diag causal
            s = s - jnp.max(s, axis=-1, keepdims=True)
            p = jnp.exp(s)
            p = p * pl.reciprocal(jnp.sum(p, axis=-1, keepdims=True),
                                  approx=True)
            heads.append(jnp.dot(p, vh, preferred_element_type=f32))
        attn = jnp.concatenate(heads, axis=-1)               # (N_TOK, D)
        x = x + jnp.dot(attn.astype(bf16), wo_ref[l],
                        preferred_element_type=f32)

        # ---------------- MoE FFN ----------------
        xn2 = _rmsnorm(x, ln2_ref[l])
        r = jnp.dot(xn2, wr_ref[l], preferred_element_type=f32)   # (N_TOK, E)
        r = r - jnp.max(r, axis=-1, keepdims=True)
        pe = jnp.exp(r)
        probs = pe * pl.reciprocal(jnp.sum(pe, axis=-1, keepdims=True),
                                   approx=True)
        # top-k threshold gating + renorm (ties may keep >TOP_K experts)
        remaining = probs
        kth = jnp.max(remaining, axis=-1, keepdims=True)
        for _ in range(TOP_K - 1):
            remaining = jnp.where(remaining >= kth, -1.0, remaining)
            kth = jnp.max(remaining, axis=-1, keepdims=True)
        gate = probs * (probs >= kth).astype(f32)
        gate = gate * pl.reciprocal(jnp.sum(gate, axis=-1, keepdims=True),
                                    approx=True)             # (N_TOK, E)

        # dense expert compute, lane-dense stacked matmuls
        gu = jnp.dot(xn2.astype(bf16), wgu_ref[l],
                     preferred_element_type=f32)             # (N_TOK, 2*E*F)
        g = gu[:, :EF]
        u = gu[:, EF:]
        act = (g * jax.nn.sigmoid(g)) * u                    # SwiGLU (N_TOK, E*F)
        gate_full = jnp.dot(gate, gexp, preferred_element_type=f32)
        act = act * gate_full
        moe = jnp.dot(act.astype(bf16), wd_ref[l],
                      preferred_element_type=f32)            # (N_TOK, D)
        x = x + moe

    # ---------------- final RMSNorm + LM head ----------------
    xn_f = _rmsnorm(x, lnf_ref[...])
    out_ref[...] = jnp.dot(xn_f.astype(bf16), wlm_ref[...],
                           preferred_element_type=f32)       # (N_TOK, V)


# ------------------------------ wrapper --------------------------------------
def _full_spec(shape):
    n = len(shape)
    return pl.BlockSpec(shape, lambda i, _n=n: (0,) * _n)


def moevar_fused_call(x_flat, cls_emb, pos_flat, fp):
    in_arrays = (x_flat, cls_emb, pos_flat, fp["attn_bias"], fp["gexp"],
                 fp["wwe"], fp["bwe"], fp["ln1"], fp["wqkv"], fp["wo"],
                 fp["ln2"], fp["wr"], fp["wgu"], fp["wd"], fp["lnf"],
                 fp["wlm"])
    in_specs = [_full_spec(a.shape) for a in in_arrays]
    return pl.pallas_call(
        moevar_fused_kernel,
        out_shape=jax.ShapeDtypeStruct((N_TOK, VOCAB_SIZE), jnp.float32),
        grid=(1,),
        in_specs=in_specs,
        out_specs=_full_spec((N_TOK, VOCAB_SIZE)),
        scratch_shapes=[pltpu.VMEM((N_TOK, EMBED_DIM), jnp.float32)],
        compiler_params=pltpu.CompilerParams(
            dimension_semantics=("arbitrary",)),
    )(*in_arrays)


# --------------------------- parameter setup ---------------------------------
def _fuse_params(p):
    bf16 = jnp.bfloat16
    layers = p["layers"]

    wgu_list = []
    for lp in layers:
        wg = jnp.transpose(lp["wg"], (1, 0, 2)).reshape(EMBED_DIM, EF)
        wu = jnp.transpose(lp["wu"], (1, 0, 2)).reshape(EMBED_DIM, EF)
        wgu_list.append(jnp.concatenate([wg, wu], axis=-1))

    # block-diagonal causal additive bias over flattened (b, t)
    idx = jnp.arange(N_TOK)
    allowed = (idx[:, None] >= idx[None, :]) & \
              ((idx[:, None] // T) == (idx[None, :] // T))
    attn_bias = jnp.where(allowed, 0.0, -1e30).astype(jnp.float32)

    # 0/1 matrix expanding per-expert gates to per-(expert, ffn-col) gates
    e_row = jnp.arange(NUM_EXPERTS)[:, None]
    e_col = (jnp.arange(EF) // MOE_FFN)[None, :]
    gexp = (e_row == e_col).astype(jnp.float32)              # (E, E*F)

    return {
        "attn_bias": attn_bias,
        "gexp": gexp,
        "wwe": p["word_embed_w"].astype(bf16),
        "bwe": p["word_embed_b"],
        "ln1": jnp.stack([lp["ln1"] for lp in layers]),
        "wqkv": jnp.stack([jnp.concatenate([lp["wq"], lp["wk"], lp["wv"]],
                                           axis=-1)
                           for lp in layers]).astype(bf16),
        "wo": jnp.stack([lp["wo"] for lp in layers]).astype(bf16),
        "ln2": jnp.stack([lp["ln2"] for lp in layers]),
        "wr": jnp.stack([lp["wr"] for lp in layers]),
        "wgu": jnp.stack(wgu_list).astype(bf16),
        "wd": jnp.stack([lp["wd"].reshape(EF, EMBED_DIM)
                         for lp in layers]).astype(bf16),
        "lnf": p["lnf"],
        "wlm": p["w_lm"].astype(bf16),
    }


def init_params(key):
    ks = iter(jax.random.split(key, 4 + DEPTH * 8))

    def nrm(shape):
        return jax.random.normal(next(ks), shape, jnp.float32) * 0.02

    p = {
        # MOEVAR.__init__ parameters
        "word_embed_w": nrm((CVAE, EMBED_DIM)),
        "word_embed_b": jnp.zeros((1, EMBED_DIM), jnp.float32),
        "class_emb": jax.random.truncated_normal(
            next(ks), -2.0, 2.0, (NUM_CLASSES + 1, EMBED_DIM),
            jnp.float32) * 0.02,
        "pos_embed": jax.random.truncated_normal(
            next(ks), -2.0, 2.0, (POS_LEN, EMBED_DIM), jnp.float32) * 0.02,
        # synthetic qwenmoe head
        "lnf": jnp.ones((1, EMBED_DIM), jnp.float32),
        "w_lm": nrm((EMBED_DIM, VOCAB_SIZE)),
        "layers": [],
    }
    for _ in range(DEPTH):
        p["layers"].append({
            "ln1": jnp.ones((1, EMBED_DIM), jnp.float32),
            "wq": nrm((EMBED_DIM, EMBED_DIM)),
            "wk": nrm((EMBED_DIM, EMBED_DIM)),
            "wv": nrm((EMBED_DIM, EMBED_DIM)),
            "wo": nrm((EMBED_DIM, EMBED_DIM)),
            "ln2": jnp.ones((1, EMBED_DIM), jnp.float32),
            "wr": nrm((EMBED_DIM, NUM_EXPERTS)),
            "wg": nrm((NUM_EXPERTS, EMBED_DIM, MOE_FFN)),
            "wu": nrm((NUM_EXPERTS, EMBED_DIM, MOE_FFN)),
            "wd": nrm((NUM_EXPERTS, MOE_FFN, EMBED_DIM)),
        })
    p["fused"] = _fuse_params(p)
    return p


def moevar_forward(params, label_B, x_BLCv):
    """Mirrors MOEVAR.forward: returns logits (B, L+1, vocab_size)."""
    b, L, _ = x_BLCv.shape
    cls_emb = params["class_emb"][label_B]            # embedding lookup (glue)
    pos = jnp.tile(params["pos_embed"][:L], (b, 1))   # pos_embed[:, :L, :] tiled
    x_flat = x_BLCv.reshape(b * L, CVAE)
    # TODO(synk): optional attention_mask argument is forwarded to qwenmoe in
    # the original; only the default causal mask is implemented here.
    logits = moevar_fused_call(x_flat, cls_emb, pos, params["fused"])
    return logits.reshape(b, L + 1, VOCAB_SIZE)


# ------------------------------- main ----------------------------------------
if __name__ == "__main__":
    key = jax.random.PRNGKey(0)
    k_param, k_lab, k_x = jax.random.split(key, 3)
    params = init_params(k_param)

    label_B = jax.random.randint(k_lab, (B,), 0, NUM_CLASSES + 1, jnp.int32)
    x_BLCv = jax.random.normal(k_x, (B, L_TOKENS, CVAE), jnp.float32)

    logits = jax.block_until_ready(moevar_forward(params, label_B, x_BLCv))

    assert logits.shape == (B, L_TOKENS + 1, VOCAB_SIZE), logits.shape
    assert bool(jnp.all(jnp.isfinite(logits)))
    print("KERNEL_OK")
</pallas_src>

<mosaic_0001>
module attributes {stable_mosaic.version = 11 : i64} {
  func.func @moevar_fused_kernel(%arg0: i32, %arg1: memref<30x8xf32, #tpu.memory_space<vmem>>, %arg2: memref<2x64xf32, #tpu.memory_space<vmem>>, %arg3: memref<30x64xf32, #tpu.memory_space<vmem>>, %arg4: memref<32x32xf32, #tpu.memory_space<vmem>>, %arg5: memref<4x512xf32, #tpu.memory_space<vmem>>, %arg6: memref<8x64xbf16, #tpu.memory_space<vmem>>, %arg7: memref<1x64xf32, #tpu.memory_space<vmem>>, %arg8: memref<2x1x64xf32, #tpu.memory_space<vmem>>, %arg9: memref<2x64x192xbf16, #tpu.memory_space<vmem>>, %arg10: memref<2x64x64xbf16, #tpu.memory_space<vmem>>, %arg11: memref<2x1x64xf32, #tpu.memory_space<vmem>>, %arg12: memref<2x64x4xf32, #tpu.memory_space<vmem>>, %arg13: memref<2x64x1024xbf16, #tpu.memory_space<vmem>>, %arg14: memref<2x512x64xbf16, #tpu.memory_space<vmem>>, %arg15: memref<1x64xf32, #tpu.memory_space<vmem>>, %arg16: memref<64x256xbf16, #tpu.memory_space<vmem>>, %arg17: memref<32x256xf32, #tpu.memory_space<vmem>>, %arg18: memref<32x64xf32, #tpu.memory_space<vmem>>) attributes {dimension_semantics = [#tpu.dimension_semantics<arbitrary>], iteration_bounds = array<i64: 1>, scalar_prefetch = 0 : i64, scratch_operands = 1 : i64, tpu.core_type = #tpu.core_type<tc>, window_params = [{pipeline_mode = #tpu.pipeline_mode<synchronous>, transform_indices = @transform_0, window_bounds = array<i64: 30, 8>}, {pipeline_mode = #tpu.pipeline_mode<synchronous>, transform_indices = @transform_1, window_bounds = array<i64: 2, 64>}, {pipeline_mode = #tpu.pipeline_mode<synchronous>, transform_indices = @transform_2, window_bounds = array<i64: 30, 64>}, {pipeline_mode = #tpu.pipeline_mode<synchronous>, transform_indices = @transform_3, window_bounds = array<i64: 32, 32>}, {pipeline_mode = #tpu.pipeline_mode<synchronous>, transform_indices = @transform_4, window_bounds = array<i64: 4, 512>}, {pipeline_mode = #tpu.pipeline_mode<synchronous>, transform_indices = @transform_5, window_bounds = array<i64: 8, 64>}, {pipeline_mode = #tpu.pipeline_mode<synchronous>, transform_indices = @transform_6, window_bounds = array<i64: 1, 64>}, {pipeline_mode = #tpu.pipeline_mode<synchronous>, transform_indices = @transform_7, window_bounds = array<i64: 2, 1, 64>}, {pipeline_mode = #tpu.pipeline_mode<synchronous>, transform_indices = @transform_8, window_bounds = array<i64: 2, 64, 192>}, {pipeline_mode = #tpu.pipeline_mode<synchronous>, transform_indices = @transform_9, window_bounds = array<i64: 2, 64, 64>}, {pipeline_mode = #tpu.pipeline_mode<synchronous>, transform_indices = @transform_10, window_bounds = array<i64: 2, 1, 64>}, {pipeline_mode = #tpu.pipeline_mode<synchronous>, transform_indices = @transform_11, window_bounds = array<i64: 2, 64, 4>}, {pipeline_mode = #tpu.pipeline_mode<synchronous>, transform_indices = @transform_12, window_bounds = array<i64: 2, 64, 1024>}, {pipeline_mode = #tpu.pipeline_mode<synchronous>, transform_indices = @transform_13, window_bounds = array<i64: 2, 512, 64>}, {pipeline_mode = #tpu.pipeline_mode<synchronous>, transform_indices = @transform_14, window_bounds = array<i64: 1, 64>}, {pipeline_mode = #tpu.pipeline_mode<synchronous>, transform_indices = @transform_15, window_bounds = array<i64: 64, 256>}, {pipeline_mode = #tpu.pipeline_mode<synchronous>, transform_indices = @transform_16, window_bounds = array<i64: 32, 256>}]} {
    %c0 = arith.constant 0 : index
    %c0_0 = arith.constant 0 : index
    %0 = vector.load %arg1[%c0, %c0_0] : memref<30x8xf32, #tpu.memory_space<vmem>>, vector<30x8xf32>
    %1 = arith.truncf %0 : vector<30x8xf32> to vector<30x8xbf16>
    %c0_1 = arith.constant 0 : index
    %c0_2 = arith.constant 0 : index
    %2 = vector.load %arg6[%c0_1, %c0_2] : memref<8x64xbf16, #tpu.memory_space<vmem>>, vector<8x64xbf16>
    %cst = arith.constant dense<0.000000e+00> : vector<30x64xf32>
    %3 = tpu.matmul %1, %2, %cst {dimension_numbers = #tpu.dot_dimension_numbers<[1], [0], [0], [1], [0, 0, 1, 1], [], []>} : vector<30x8xbf16>, vector<8x64xbf16>, vector<30x64xf32> -> vector<30x64xf32>
    %c0_3 = arith.constant 0 : index
    %c0_4 = arith.constant 0 : index
    %4 = vector.load %arg7[%c0_3, %c0_4] : memref<1x64xf32, #tpu.memory_space<vmem>>, vector<1x64xf32>
    %5 = vector.broadcast %4 : vector<1x64xf32> to vector<30x64xf32>
    %6 = arith.addf %3, %5 : vector<30x64xf32>
    %c0_5 = arith.constant 0 : index
    %c0_6 = arith.constant 0 : index
    %7 = vector.load %arg3[%c0_5, %c0_6] : memref<30x64xf32, #tpu.memory_space<vmem>>, vector<30x64xf32>
    %8 = arith.addf %6, %7 : vector<30x64xf32>
    %c0_7 = arith.constant 0 : index
    %c0_8 = arith.constant 0 : index
    %9 = vector.load %arg2[%c0_7, %c0_8] : memref<2x64xf32, #tpu.memory_space<vmem>>, vector<1x64xf32>
    %c0_9 = arith.constant 0 : index
    %c0_10 = arith.constant 0 : index
    %10 = vector.load %arg18[%c0_9, %c0_10] : memref<32x64xf32, #tpu.memory_space<vmem>>, vector<1x64xf32>
    tpu.vector_store %arg18[%c0_9, %c0_10], %9 {strides = array<i32>} : memref<32x64xf32, #tpu.memory_space<vmem>>, vector<1x64xf32>,
    %11 = vector.extract_strided_slice %8 {offsets = [0, 0], sizes = [15, 64], strides = [1, 1]} : vector<30x64xf32> to vector<15x64xf32>
    %c1 = arith.constant 1 : index
    %c0_11 = arith.constant 0 : index
    %12 = vector.load %arg18[%c1, %c0_11] : memref<32x64xf32, #tpu.memory_space<vmem>>, vector<15x64xf32>
    tpu.vector_store %arg18[%c1, %c0_11], %11 {strides = array<i32>} : memref<32x64xf32, #tpu.memory_space<vmem>>, vector<15x64xf32>,
    %c1_12 = arith.constant 1 : index
    %c0_13 = arith.constant 0 : index
    %13 = vector.load %arg2[%c1_12, %c0_13] : memref<2x64xf32, #tpu.memory_space<vmem>>, vector<1x64xf32>
    %c16 = arith.constant 16 : index
    %c0_14 = arith.constant 0 : index
    %14 = vector.load %arg18[%c16, %c0_14] : memref<32x64xf32, #tpu.memory_space<vmem>>, vector<1x64xf32>
    tpu.vector_store %arg18[%c16, %c0_14], %13 {strides = array<i32>} : memref<32x64xf32, #tpu.memory_space<vmem>>, vector<1x64xf32>,
    %15 = vector.extract_strided_slice %8 {offsets = [15, 0], sizes = [15, 64], strides = [1, 1]} : vector<30x64xf32> to vector<15x64xf32>
    %c17 = arith.constant 17 : index
    %c0_15 = arith.constant 0 : index
    %16 = vector.load %arg18[%c17, %c0_15] : memref<32x64xf32, #tpu.memory_space<vmem>>, vector<15x64xf32>
    tpu.vector_store %arg18[%c17, %c0_15], %15 {strides = array<i32>} : memref<32x64xf32, #tpu.memory_space<vmem>>, vector<15x64xf32>,
    %c0_16 = arith.constant 0 : index
    %c0_17 = arith.constant 0 : index
    %17 = vector.load %arg18[%c0_16, %c0_17] : memref<32x64xf32, #tpu.memory_space<vmem>>, vector<32x64xf32>
    %c0_18 = arith.constant 0 : index
    %c0_19 = arith.constant 0 : index
    %18 = vector.load %arg4[%c0_18, %c0_19] : memref<32x32xf32, #tpu.memory_space<vmem>>, vector<32x32xf32>
    %c0_20 = arith.constant 0 : index
    %c0_21 = arith.constant 0 : index
    %19 = vector.load %arg5[%c0_20, %c0_21] : memref<4x512xf32, #tpu.memory_space<vmem>>, vector<4x512xf32>
    %c0_22 = arith.constant 0 : index
    %c0_23 = arith.constant 0 : index
    %c0_24 = arith.constant 0 : index
    %20 = vector.load %arg8[%c0_22, %c0_23, %c0_24] : memref<2x1x64xf32, #tpu.memory_space<vmem>>, vector<1x1x64xf32>
    %21 = vector.shape_cast %20 : vector<1x1x64xf32> to vector<1x64xf32>
    %22 = arith.mulf %17, %17 : vector<32x64xf32>
    %cst_25 = arith.constant dense<0.000000e+00> : vector<32xf32>
    %23 = vector.multi_reduction <add>, %22, %cst_25 [1] : vector<32x64xf32> to vector<32xf32>
    %24 = vector.shape_cast %23 : vector<32xf32> to vector<32x1xf32>
    %cst_26 = arith.constant 6.400000e+01 : f32
    %25 = vector.broadcast %cst_26 : f32 to vector<32x1xf32>
    %26 = arith.divf %24, %25 : vector<32x1xf32>
    %cst_27 = arith.constant 9.99999997E-7 : f32
    %27 = vector.broadcast %cst_27 : f32 to vector<32x1xf32>
    %28 = arith.addf %26, %27 : vector<32x1xf32>
    %29 = math.rsqrt %28 : vector<32x1xf32>
    %30 = vector.broadcast %29 : vector<32x1xf32> to vector<32x64xf32>
    %31 = arith.mulf %17, %30 : vector<32x64xf32>
    %32 = vector.broadcast %21 : vector<1x64xf32> to vector<32x64xf32>
    %33 = arith.mulf %31, %32 : vector<32x64xf32>
    %34 = arith.truncf %33 : vector<32x64xf32> to vector<32x64xbf16>
    %c0_28 = arith.constant 0 : index
    %c0_29 = arith.constant 0 : index
    %c0_30 = arith.constant 0 : index
    %35 = vector.load %arg9[%c0_28, %c0_29, %c0_30] : memref<2x64x192xbf16, #tpu.memory_space<vmem>>, vector<1x64x192xbf16>
    %36 = vector.shape_cast %35 : vector<1x64x192xbf16> to vector<64x192xbf16>
    %cst_31 = arith.constant dense<0.000000e+00> : vector<32x192xf32>
    %37 = tpu.matmul %34, %36, %cst_31 {dimension_numbers = #tpu.dot_dimension_numbers<[1], [0], [0], [1], [0, 0, 1, 1], [], []>} : vector<32x64xbf16>, vector<64x192xbf16>, vector<32x192xf32> -> vector<32x192xf32>
    %38 = vector.extract_strided_slice %37 {offsets = [0, 0], sizes = [32, 16], strides = [1, 1]} : vector<32x192xf32> to vector<32x16xf32>
    %39 = vector.extract_strided_slice %37 {offsets = [0, 64], sizes = [32, 16], strides = [1, 1]} : vector<32x192xf32> to vector<32x16xf32>
    %40 = vector.extract_strided_slice %37 {offsets = [0, 128], sizes = [32, 16], strides = [1, 1]} : vector<32x192xf32> to vector<32x16xf32>
    %41 = tpu.transpose %39, [1, 0] : vector<32x16xf32> -> vector<16x32xf32>
    %cst_32 = arith.constant dense<0.000000e+00> : vector<32x32xf32>
    %42 = tpu.matmul %38, %41, %cst_32 {dimension_numbers = #tpu.dot_dimension_numbers<[1], [0], [0], [1], [0, 0, 1, 1], [], []>} : vector<32x16xf32>, vector<16x32xf32>, vector<32x32xf32> -> vector<32x32xf32>
    %cst_33 = arith.constant 2.500000e-01 : f32
    %43 = vector.broadcast %cst_33 : f32 to vector<32x32xf32>
    %44 = arith.mulf %42, %43 : vector<32x32xf32>
    %45 = arith.addf %44, %18 : vector<32x32xf32>
    %cst_34 = arith.constant dense<0xFF800000> : vector<32xf32>
    %46 = vector.multi_reduction <maximumf>, %45, %cst_34 [1] : vector<32x32xf32> to vector<32xf32>
    %47 = vector.shape_cast %46 : vector<32xf32> to vector<32x1xf32>
    %48 = vector.broadcast %47 : vector<32x1xf32> to vector<32x32xf32>
    %49 = arith.subf %45, %48 : vector<32x32xf32>
    %50 = math.exp %49 : vector<32x32xf32>
    %cst_35 = arith.constant dense<0.000000e+00> : vector<32xf32>
    %51 = vector.multi_reduction <add>, %50, %cst_35 [1] : vector<32x32xf32> to vector<32xf32>
    %52 = vector.shape_cast %51 : vector<32xf32> to vector<32x1xf32>
    %53 = tpu.reciprocal %52 {approx = true} : vector<32x1xf32> -> vector<32x1xf32>
    %54 = vector.broadcast %53 : vector<32x1xf32> to vector<32x32xf32>
    %55 = arith.mulf %50, %54 : vector<32x32xf32>
    %cst_36 = arith.constant dense<0.000000e+00> : vector<32x16xf32>
    %56 = tpu.matmul %55, %40, %cst_36 {dimension_numbers = #tpu.dot_dimension_numbers<[1], [0], [0], [1], [0, 0, 1, 1], [], []>} : vector<32x32xf32>, vector<32x16xf32>, vector<32x16xf32> -> vector<32x16xf32>
    %57 = vector.extract_strided_slice %37 {offsets = [0, 16], sizes = [32, 16], strides = [1, 1]} : vector<32x192xf32> to vector<32x16xf32>
    %58 = vector.extract_strided_slice %37 {offsets = [0, 80], sizes = [32, 16], strides = [1, 1]} : vector<32x192xf32> to vector<32x16xf32>
    %59 = vector.extract_strided_slice %37 {offsets = [0, 144], sizes = [32, 16], strides = [1, 1]} : vector<32x192xf32> to vector<32x16xf32>
    %60 = tpu.transpose %58, [1, 0] : vector<32x16xf32> -> vector<16x32xf32>
    %cst_37 = arith.constant dense<0.000000e+00> : vector<32x32xf32>
    %61 = tpu.matmul %57, %60, %cst_37 {dimension_numbers = #tpu.dot_dimension_numbers<[1], [0], [0], [1], [0, 0, 1, 1], [], []>} : vector<32x16xf32>, vector<16x32xf32>, vector<32x32xf32> -> vector<32x32xf32>
    %cst_38 = arith.constant 2.500000e-01 : f32
    %62 = vector.broadcast %cst_38 : f32 to vector<32x32xf32>
    %63 = arith.mulf %61, %62 : vector<32x32xf32>
    %64 = arith.addf %63, %18 : vector<32x32xf32>
    %cst_39 = arith.constant dense<0xFF800000> : vector<32xf32>
    %65 = vector.multi_reduction <maximumf>, %64, %cst_39 [1] : vector<32x32xf32> to vector<32xf32>
    %66 = vector.shape_cast %65 : vector<32xf32> to vector<32x1xf32>
    %67 = vector.broadcast %66 : vector<32x1xf32> to vector<32x32xf32>
    %68 = arith.subf %64, %67 : vector<32x32xf32>
    %69 = math.exp %68 : vector<32x32xf32>
    %cst_40 = arith.constant dense<0.000000e+00> : vector<32xf32>
    %70 = vector.multi_reduction <add>, %69, %cst_40 [1] : vector<32x32xf32> to vector<32xf32>
    %71 = vector.shape_cast %70 : vector<32xf32> to vector<32x1xf32>
    %72 = tpu.reciprocal %71 {approx = true} : vector<32x1xf32> -> vector<32x1xf32>
    %73 = vector.broadcast %72 : vector<32x1xf32> to vector<32x32xf32>
    %74 = arith.mulf %69, %73 : vector<32x32xf32>
    %cst_41 = arith.constant dense<0.000000e+00> : vector<32x16xf32>
    %75 = tpu.matmul %74, %59, %cst_41 {dimension_numbers = #tpu.dot_dimension_numbers<[1], [0], [0], [1], [0, 0, 1, 1], [], []>} : vector<32x32xf32>, vector<32x16xf32>, vector<32x16xf32> -> vector<32x16xf32>
    %76 = vector.extract_strided_slice %37 {offsets = [0, 32], sizes = [32, 16], strides = [1, 1]} : vector<32x192xf32> to vector<32x16xf32>
    %77 = vector.extract_strided_slice %37 {offsets = [0, 96], sizes = [32, 16], strides = [1, 1]} : vector<32x192xf32> to vector<32x16xf32>
    %78 = vector.extract_strided_slice %37 {offsets = [0, 160], sizes = [32, 16], strides = [1, 1]} : vector<32x192xf32> to vector<32x16xf32>
    %79 = tpu.transpose %77, [1, 0] : vector<32x16xf32> -> vector<16x32xf32>
    %cst_42 = arith.constant dense<0.000000e+00> : vector<32x32xf32>
    %80 = tpu.matmul %76, %79, %cst_42 {dimension_numbers = #tpu.dot_dimension_numbers<[1], [0], [0], [1], [0, 0, 1, 1], [], []>} : vector<32x16xf32>, vector<16x32xf32>, vector<32x32xf32> -> vector<32x32xf32>
    %cst_43 = arith.constant 2.500000e-01 : f32
    %81 = vector.broadcast %cst_43 : f32 to vector<32x32xf32>
    %82 = arith.mulf %80, %81 : vector<32x32xf32>
    %83 = arith.addf %82, %18 : vector<32x32xf32>
    %cst_44 = arith.constant dense<0xFF800000> : vector<32xf32>
    %84 = vector.multi_reduction <maximumf>, %83, %cst_44 [1] : vector<32x32xf32> to vector<32xf32>
    %85 = vector.shape_cast %84 : vector<32xf32> to vector<32x1xf32>
    %86 = vector.broadcast %85 : vector<32x1xf32> to vector<32x32xf32>
    %87 = arith.subf %83, %86 : vector<32x32xf32>
    %88 = math.exp %87 : vector<32x32xf32>
    %cst_45 = arith.constant dense<0.000000e+00> : vector<32xf32>
    %89 = vector.multi_reduction <add>, %88, %cst_45 [1] : vector<32x32xf32> to vector<32xf32>
    %90 = vector.shape_cast %89 : vector<32xf32> to vector<32x1xf32>
    %91 = tpu.reciprocal %90 {approx = true} : vector<32x1xf32> -> vector<32x1xf32>
    %92 = vector.broadcast %91 : vector<32x1xf32> to vector<32x32xf32>
    %93 = arith.mulf %88, %92 : vector<32x32xf32>
    %cst_46 = arith.constant dense<0.000000e+00> : vector<32x16xf32>
    %94 = tpu.matmul %93, %78, %cst_46 {dimension_numbers = #tpu.dot_dimension_numbers<[1], [0], [0], [1], [0, 0, 1, 1], [], []>} : vector<32x32xf32>, vector<32x16xf32>, vector<32x16xf32> -> vector<32x16xf32>
    %95 = vector.extract_strided_slice %37 {offsets = [0, 48], sizes = [32, 16], strides = [1, 1]} : vector<32x192xf32> to vector<32x16xf32>
    %96 = vector.extract_strided_slice %37 {offsets = [0, 112], sizes = [32, 16], strides = [1, 1]} : vector<32x192xf32> to vector<32x16xf32>
    %97 = vector.extract_strided_slice %37 {offsets = [0, 176], sizes = [32, 16], strides = [1, 1]} : vector<32x192xf32> to vector<32x16xf32>
    %98 = tpu.transpose %96, [1, 0] : vector<32x16xf32> -> vector<16x32xf32>
    %cst_47 = arith.constant dense<0.000000e+00> : vector<32x32xf32>
    %99 = tpu.matmul %95, %98, %cst_47 {dimension_numbers = #tpu.dot_dimension_numbers<[1], [0], [0], [1], [0, 0, 1, 1], [], []>} : vector<32x16xf32>, vector<16x32xf32>, vector<32x32xf32> -> vector<32x32xf32>
    %cst_48 = arith.constant 2.500000e-01 : f32
    %100 = vector.broadcast %cst_48 : f32 to vector<32x32xf32>
    %101 = arith.mulf %99, %100 : vector<32x32xf32>
    %102 = arith.addf %101, %18 : vector<32x32xf32>
    %cst_49 = arith.constant dense<0xFF800000> : vector<32xf32>
    %103 = vector.multi_reduction <maximumf>, %102, %cst_49 [1] : vector<32x32xf32> to vector<32xf32>
    %104 = vector.shape_cast %103 : vector<32xf32> to vector<32x1xf32>
    %105 = vector.broadcast %104 : vector<32x1xf32> to vector<32x32xf32>
    %106 = arith.subf %102, %105 : vector<32x32xf32>
    %107 = math.exp %106 : vector<32x32xf32>
    %cst_50 = arith.constant dense<0.000000e+00> : vector<32xf32>
    %108 = vector.multi_reduction <add>, %107, %cst_50 [1] : vector<32x32xf32> to vector<32xf32>
    %109 = vector.shape_cast %108 : vector<32xf32> to vector<32x1xf32>
    %110 = tpu.reciprocal %109 {approx = true} : vector<32x1xf32> -> vector<32x1xf32>
    %111 = vector.broadcast %110 : vector<32x1xf32> to vector<32x32xf32>
    %112 = arith.mulf %107, %111 : vector<32x32xf32>
    %cst_51 = arith.constant dense<0.000000e+00> : vector<32x16xf32>
    %113 = tpu.matmul %112, %97, %cst_51 {dimension_numbers = #tpu.dot_dimension_numbers<[1], [0], [0], [1], [0, 0, 1, 1], [], []>} : vector<32x32xf32>, vector<32x16xf32>, vector<32x16xf32> -> vector<32x16xf32>
    %114 = tpu.concatenate %56, %75, %94, %113 in 1 : vector<32x16xf32>, vector<32x16xf32>, vector<32x16xf32>, vector<32x16xf32> -> vector<32x64xf32>
    %115 = arith.truncf %114 : vector<32x64xf32> to vector<32x64xbf16>
    %c0_52 = arith.constant 0 : index
    %c0_53 = arith.constant 0 : index
    %c0_54 = arith.constant 0 : index
    %116 = vector.load %arg10[%c0_52, %c0_53, %c0_54] : memref<2x64x64xbf16, #tpu.memory_space<vmem>>, vector<1x64x64xbf16>
    %117 = vector.shape_cast %116 : vector<1x64x64xbf16> to vector<64x64xbf16>
    %cst_55 = arith.constant dense<0.000000e+00> : vector<32x64xf32>
    %118 = tpu.matmul %115, %117, %cst_55 {dimension_numbers = #tpu.dot_dimension_numbers<[1], [0], [0], [1], [0, 0, 1, 1], [], []>} : vector<32x64xbf16>, vector<64x64xbf16>, vector<32x64xf32> -> vector<32x64xf32>
    %119 = arith.addf %17, %118 : vector<32x64xf32>
    %c0_56 = arith.constant 0 : index
    %c0_57 = arith.constant 0 : index
    %c0_58 = arith.constant 0 : index
    %120 = vector.load %arg11[%c0_56, %c0_57, %c0_58] : memref<2x1x64xf32, #tpu.memory_space<vmem>>, vector<1x1x64xf32>
    %121 = vector.shape_cast %120 : vector<1x1x64xf32> to vector<1x64xf32>
    %122 = arith.mulf %119, %119 : vector<32x64xf32>
    %cst_59 = arith.constant dense<0.000000e+00> : vector<32xf32>
    %123 = vector.multi_reduction <add>, %122, %cst_59 [1] : vector<32x64xf32> to vector<32xf32>
    %124 = vector.shape_cast %123 : vector<32xf32> to vector<32x1xf32>
    %cst_60 = arith.constant 6.400000e+01 : f32
    %125 = vector.broadcast %cst_60 : f32 to vector<32x1xf32>
    %126 = arith.divf %124, %125 : vector<32x1xf32>
    %cst_61 = arith.constant 9.99999997E-7 : f32
    %127 = vector.broadcast %cst_61 : f32 to vector<32x1xf32>
    %128 = arith.addf %126, %127 : vector<32x1xf32>
    %129 = math.rsqrt %128 : vector<32x1xf32>
    %130 = vector.broadcast %129 : vector<32x1xf32> to vector<32x64xf32>
    %131 = arith.mulf %119, %130 : vector<32x64xf32>
    %132 = vector.broadcast %121 : vector<1x64xf32> to vector<32x64xf32>
    %133 = arith.mulf %131, %132 : vector<32x64xf32>
    %c0_62 = arith.constant 0 : index
    %c0_63 = arith.constant 0 : index
    %c0_64 = arith.constant 0 : index
    %134 = vector.load %arg12[%c0_62, %c0_63, %c0_64] : memref<2x64x4xf32, #tpu.memory_space<vmem>>, vector<1x64x4xf32>
    %135 = vector.shape_cast %134 : vector<1x64x4xf32> to vector<64x4xf32>
    %cst_65 = arith.constant dense<0.000000e+00> : vector<32x4xf32>
    %136 = tpu.matmul %133, %135, %cst_65 {dimension_numbers = #tpu.dot_dimension_numbers<[1], [0], [0], [1], [0, 0, 1, 1], [], []>} : vector<32x64xf32>, vector<64x4xf32>, vector<32x4xf32> -> vector<32x4xf32>
    %cst_66 = arith.constant dense<0xFF800000> : vector<32xf32>
    %137 = vector.multi_reduction <maximumf>, %136, %cst_66 [1] : vector<32x4xf32> to vector<32xf32>
    %138 = vector.shape_cast %137 : vector<32xf32> to vector<32x1xf32>
    %139 = vector.broadcast %138 : vector<32x1xf32> to vector<32x4xf32>
    %140 = arith.subf %136, %139 : vector<32x4xf32>
    %141 = math.exp %140 : vector<32x4xf32>
    %cst_67 = arith.constant dense<0.000000e+00> : vector<32xf32>
    %142 = vector.multi_reduction <add>, %141, %cst_67 [1] : vector<32x4xf32> to vector<32xf32>
    %143 = vector.shape_cast %142 : vector<32xf32> to vector<32x1xf32>
    %144 = tpu.reciprocal %143 {approx = true} : vector<32x1xf32> -> vector<32x1xf32>
    %145 = vector.broadcast %144 : vector<32x1xf32> to vector<32x4xf32>
    %146 = arith.mulf %141, %145 : vector<32x4xf32>
    %cst_68 = arith.constant dense<0xFF800000> : vector<32xf32>
    %147 = vector.multi_reduction <maximumf>, %146, %cst_68 [1] : vector<32x4xf32> to vector<32xf32>
    %148 = vector.shape_cast %147 : vector<32xf32> to vector<32x1xf32>
    %149 = vector.broadcast %148 : vector<32x1xf32> to vector<32x4xf32>
    %150 = arith.cmpf oge, %146, %149 : vector<32x4xf32>
    %cst_69 = arith.constant -1.000000e+00 : f32
    %151 = vector.broadcast %cst_69 : f32 to vector<32x4xf32>
    %152 = arith.select %150, %151, %146 : vector<32x4xi1>, vector<32x4xf32>
    %cst_70 = arith.constant dense<0xFF800000> : vector<32xf32>
    %153 = vector.multi_reduction <maximumf>, %152, %cst_70 [1] : vector<32x4xf32> to vector<32xf32>
    %154 = vector.shape_cast %153 : vector<32xf32> to vector<32x1xf32>
    %155 = vector.broadcast %154 : vector<32x1xf32> to vector<32x4xf32>
    %156 = arith.cmpf oge, %146, %155 : vector<32x4xf32>
    %157 = arith.extui %156 : vector<32x4xi1> to vector<32x4xi32>
    %158 = arith.sitofp %157 : vector<32x4xi32> to vector<32x4xf32>
    %159 = arith.mulf %146, %158 : vector<32x4xf32>
    %cst_71 = arith.constant dense<0.000000e+00> : vector<32xf32>
    %160 = vector.multi_reduction <add>, %159, %cst_71 [1] : vector<32x4xf32> to vector<32xf32>
    %161 = vector.shape_cast %160 : vector<32xf32> to vector<32x1xf32>
    %162 = tpu.reciprocal %161 {approx = true} : vector<32x1xf32> -> vector<32x1xf32>
    %163 = vector.broadcast %162 : vector<32x1xf32> to vector<32x4xf32>
    %164 = arith.mulf %159, %163 : vector<32x4xf32>
    %165 = arith.truncf %133 : vector<32x64xf32> to vector<32x64xbf16>
    %c0_72 = arith.constant 0 : index
    %c0_73 = arith.constant 0 : index
    %c0_74 = arith.constant 0 : index
    %166 = vector.load %arg13[%c0_72, %c0_73, %c0_74] : memref<2x64x1024xbf16, #tpu.memory_space<vmem>>, vector<1x64x1024xbf16>
    %167 = vector.shape_cast %166 : vector<1x64x1024xbf16> to vector<64x1024xbf16>
    %cst_75 = arith.constant dense<0.000000e+00> : vector<32x1024xf32>
    %168 = tpu.matmul %165, %167, %cst_75 {dimension_numbers = #tpu.dot_dimension_numbers<[1], [0], [0], [1], [0, 0, 1, 1], [], []>} : vector<32x64xbf16>, vector<64x1024xbf16>, vector<32x1024xf32> -> vector<32x1024xf32>
    %169 = vector.extract_strided_slice %168 {offsets = [0, 0], sizes = [32, 512], strides = [1, 1]} : vector<32x1024xf32> to vector<32x512xf32>
    %170 = vector.extract_strided_slice %168 {offsets = [0, 512], sizes = [32, 512], strides = [1, 1]} : vector<32x1024xf32> to vector<32x512xf32>
    %171 = arith.negf %169 : vector<32x512xf32>
    %172 = math.exp %171 : vector<32x512xf32>
    %cst_76 = arith.constant 1.000000e+00 : f32
    %173 = vector.broadcast %cst_76 : f32 to vector<32x512xf32>
    %174 = arith.addf %173, %172 : vector<32x512xf32>
    %175 = arith.divf %173, %174 : vector<32x512xf32>
    %176 = arith.mulf %169, %175 : vector<32x512xf32>
    %177 = arith.mulf %176, %170 : vector<32x512xf32>
    %cst_77 = arith.constant dense<0.000000e+00> : vector<32x512xf32>
    %178 = tpu.matmul %164, %19, %cst_77 {dimension_numbers = #tpu.dot_dimension_numbers<[1], [0], [0], [1], [0, 0, 1, 1], [], []>} : vector<32x4xf32>, vector<4x512xf32>, vector<32x512xf32> -> vector<32x512xf32>
    %179 = arith.mulf %177, %178 : vector<32x512xf32>
    %180 = arith.truncf %179 : vector<32x512xf32> to vector<32x512xbf16>
    %c0_78 = arith.constant 0 : index
    %c0_79 = arith.constant 0 : index
    %c0_80 = arith.constant 0 : index
    %181 = vector.load %arg14[%c0_78, %c0_79, %c0_80] : memref<2x512x64xbf16, #tpu.memory_space<vmem>>, vector<1x512x64xbf16>
    %182 = vector.shape_cast %181 : vector<1x512x64xbf16> to vector<512x64xbf16>
    %cst_81 = arith.constant dense<0.000000e+00> : vector<32x64xf32>
    %183 = tpu.matmul %180, %182, %cst_81 {dimension_numbers = #tpu.dot_dimension_numbers<[1], [0], [0], [1], [0, 0, 1, 1], [], []>} : vector<32x512xbf16>, vector<512x64xbf16>, vector<32x64xf32> -> vector<32x64xf32>
    %184 = arith.addf %119, %183 : vector<32x64xf32>
    %c1_82 = arith.constant 1 : index
    %c0_83 = arith.constant 0 : index
    %c0_84 = arith.constant 0 : index
    %185 = vector.load %arg8[%c1_82, %c0_83, %c0_84] : memref<2x1x64xf32, #tpu.memory_space<vmem>>, vector<1x1x64xf32>
    %186 = vector.shape_cast %185 : vector<1x1x64xf32> to vector<1x64xf32>
    %187 = arith.mulf %184, %184 : vector<32x64xf32>
    %cst_85 = arith.constant dense<0.000000e+00> : vector<32xf32>
    %188 = vector.multi_reduction <add>, %187, %cst_85 [1] : vector<32x64xf32> to vector<32xf32>
    %189 = vector.shape_cast %188 : vector<32xf32> to vector<32x1xf32>
    %cst_86 = arith.constant 6.400000e+01 : f32
    %190 = vector.broadcast %cst_86 : f32 to vector<32x1xf32>
    %191 = arith.divf %189, %190 : vector<32x1xf32>
    %cst_87 = arith.constant 9.99999997E-7 : f32
    %192 = vector.broadcast %cst_87 : f32 to vector<32x1xf32>
    %193 = arith.addf %191, %192 : vector<32x1xf32>
    %194 = math.rsqrt %193 : vector<32x1xf32>
    %195 = vector.broadcast %194 : vector<32x1xf32> to vector<32x64xf32>
    %196 = arith.mulf %184, %195 : vector<32x64xf32>
    %197 = vector.broadcast %186 : vector<1x64xf32> to vector<32x64xf32>
    %198 = arith.mulf %196, %197 : vector<32x64xf32>
    %199 = arith.truncf %198 : vector<32x64xf32> to vector<32x64xbf16>
    %c1_88 = arith.constant 1 : index
    %c0_89 = arith.constant 0 : index
    %c0_90 = arith.constant 0 : index
    %200 = vector.load %arg9[%c1_88, %c0_89, %c0_90] : memref<2x64x192xbf16, #tpu.memory_space<vmem>>, vector<1x64x192xbf16>
    %201 = vector.shape_cast %200 : vector<1x64x192xbf16> to vector<64x192xbf16>
    %cst_91 = arith.constant dense<0.000000e+00> : vector<32x192xf32>
    %202 = tpu.matmul %199, %201, %cst_91 {dimension_numbers = #tpu.dot_dimension_numbers<[1], [0], [0], [1], [0, 0, 1, 1], [], []>} : vector<32x64xbf16>, vector<64x192xbf16>, vector<32x192xf32> -> vector<32x192xf32>
    %203 = vector.extract_strided_slice %202 {offsets = [0, 0], sizes = [32, 16], strides = [1, 1]} : vector<32x192xf32> to vector<32x16xf32>
    %204 = vector.extract_strided_slice %202 {offsets = [0, 64], sizes = [32, 16], strides = [1, 1]} : vector<32x192xf32> to vector<32x16xf32>
    %205 = vector.extract_strided_slice %202 {offsets = [0, 128], sizes = [32, 16], strides = [1, 1]} : vector<32x192xf32> to vector<32x16xf32>
    %206 = tpu.transpose %204, [1, 0] : vector<32x16xf32> -> vector<16x32xf32>
    %cst_92 = arith.constant dense<0.000000e+00> : vector<32x32xf32>
    %207 = tpu.matmul %203, %206, %cst_92 {dimension_numbers = #tpu.dot_dimension_numbers<[1], [0], [0], [1], [0, 0, 1, 1], [], []>} : vector<32x16xf32>, vector<16x32xf32>, vector<32x32xf32> -> vector<32x32xf32>
    %cst_93 = arith.constant 2.500000e-01 : f32
    %208 = vector.broadcast %cst_93 : f32 to vector<32x32xf32>
    %209 = arith.mulf %207, %208 : vector<32x32xf32>
    %210 = arith.addf %209, %18 : vector<32x32xf32>
    %cst_94 = arith.constant dense<0xFF800000> : vector<32xf32>
    %211 = vector.multi_reduction <maximumf>, %210, %cst_94 [1] : vector<32x32xf32> to vector<32xf32>
    %212 = vector.shape_cast %211 : vector<32xf32> to vector<32x1xf32>
    %213 = vector.broadcast %212 : vector<32x1xf32> to vector<32x32xf32>
    %214 = arith.subf %210, %213 : vector<32x32xf32>
    %215 = math.exp %214 : vector<32x32xf32>
    %cst_95 = arith.constant dense<0.000000e+00> : vector<32xf32>
    %216 = vector.multi_reduction <add>, %215, %cst_95 [1] : vector<32x32xf32> to vector<32xf32>
    %217 = vector.shape_cast %216 : vector<32xf32> to vector<32x1xf32>
    %218 = tpu.reciprocal %217 {approx = true} : vector<32x1xf32> -> vector<32x1xf32>
    %219 = vector.broadcast %218 : vector<32x1xf32> to vector<32x32xf32>
    %220 = arith.mulf %215, %219 : vector<32x32xf32>
    %cst_96 = arith.constant dense<0.000000e+00> : vector<32x16xf32>
    %221 = tpu.matmul %220, %205, %cst_96 {dimension_numbers = #tpu.dot_dimension_numbers<[1], [0], [0], [1], [0, 0, 1, 1], [], []>} : vector<32x32xf32>, vector<32x16xf32>, vector<32x16xf32> -> vector<32x16xf32>
    %222 = vector.extract_strided_slice %202 {offsets = [0, 16], sizes = [32, 16], strides = [1, 1]} : vector<32x192xf32> to vector<32x16xf32>
    %223 = vector.extract_strided_slice %202 {offsets = [0, 80], sizes = [32, 16], strides = [1, 1]} : vector<32x192xf32> to vector<32x16xf32>
    %224 = vector.extract_strided_slice %202 {offsets = [0, 144], sizes = [32, 16], strides = [1, 1]} : vector<32x192xf32> to vector<32x16xf32>
    %225 = tpu.transpose %223, [1, 0] : vector<32x16xf32> -> vector<16x32xf32>
    %cst_97 = arith.constant dense<0.000000e+00> : vector<32x32xf32>
    %226 = tpu.matmul %222, %225, %cst_97 {dimension_numbers = #tpu.dot_dimension_numbers<[1], [0], [0], [1], [0, 0, 1, 1], [], []>} : vector<32x16xf32>, vector<16x32xf32>, vector<32x32xf32> -> vector<32x32xf32>
    %cst_98 = arith.constant 2.500000e-01 : f32
    %227 = vector.broadcast %cst_98 : f32 to vector<32x32xf32>
    %228 = arith.mulf %226, %227 : vector<32x32xf32>
    %229 = arith.addf %228, %18 : vector<32x32xf32>
    %cst_99 = arith.constant dense<0xFF800000> : vector<32xf32>
    %230 = vector.multi_reduction <maximumf>, %229, %cst_99 [1] : vector<32x32xf32> to vector<32xf32>
    %231 = vector.shape_cast %230 : vector<32xf32> to vector<32x1xf32>
    %232 = vector.broadcast %231 : vector<32x1xf32> to vector<32x32xf32>
    %233 = arith.subf %229, %232 : vector<32x32xf32>
    %234 = math.exp %233 : vector<32x32xf32>
    %cst_100 = arith.constant dense<0.000000e+00> : vector<32xf32>
    %235 = vector.multi_reduction <add>, %234, %cst_100 [1] : vector<32x32xf32> to vector<32xf32>
    %236 = vector.shape_cast %235 : vector<32xf32> to vector<32x1xf32>
    %237 = tpu.reciprocal %236 {approx = true} : vector<32x1xf32> -> vector<32x1xf32>
    %238 = vector.broadcast %237 : vector<32x1xf32> to vector<32x32xf32>
    %239 = arith.mulf %234, %238 : vector<32x32xf32>
    %cst_101 = arith.constant dense<0.000000e+00> : vector<32x16xf32>
    %240 = tpu.matmul %239, %224, %cst_101 {dimension_numbers = #tpu.dot_dimension_numbers<[1], [0], [0], [1], [0, 0, 1, 1], [], []>} : vector<32x32xf32>, vector<32x16xf32>, vector<32x16xf32> -> vector<32x16xf32>
    %241 = vector.extract_strided_slice %202 {offsets = [0, 32], sizes = [32, 16], strides = [1, 1]} : vector<32x192xf32> to vector<32x16xf32>
    %242 = vector.extract_strided_slice %202 {offsets = [0, 96], sizes = [32, 16], strides = [1, 1]} : vector<32x192xf32> to vector<32x16xf32>
    %243 = vector.extract_strided_slice %202 {offsets = [0, 160], sizes = [32, 16], strides = [1, 1]} : vector<32x192xf32> to vector<32x16xf32>
    %244 = tpu.transpose %242, [1, 0] : vector<32x16xf32> -> vector<16x32xf32>
    %cst_102 = arith.constant dense<0.000000e+00> : vector<32x32xf32>
    %245 = tpu.matmul %241, %244, %cst_102 {dimension_numbers = #tpu.dot_dimension_numbers<[1], [0], [0], [1], [0, 0, 1, 1], [], []>} : vector<32x16xf32>, vector<16x32xf32>, vector<32x32xf32> -> vector<32x32xf32>
    %cst_103 = arith.constant 2.500000e-01 : f32
    %246 = vector.broadcast %cst_103 : f32 to vector<32x32xf32>
    %247 = arith.mulf %245, %246 : vector<32x32xf32>
    %248 = arith.addf %247, %18 : vector<32x32xf32>
    %cst_104 = arith.constant dense<0xFF800000> : vector<32xf32>
    %249 = vector.multi_reduction <maximumf>, %248, %cst_104 [1] : vector<32x32xf32> to vector<32xf32>
    %250 = vector.shape_cast %249 : vector<32xf32> to vector<32x1xf32>
    %251 = vector.broadcast %250 : vector<32x1xf32> to vector<32x32xf32>
    %252 = arith.subf %248, %251 : vector<32x32xf32>
    %253 = math.exp %252 : vector<32x32xf32>
    %cst_105 = arith.constant dense<0.000000e+00> : vector<32xf32>
    %254 = vector.multi_reduction <add>, %253, %cst_105 [1] : vector<32x32xf32> to vector<32xf32>
    %255 = vector.shape_cast %254 : vector<32xf32> to vector<32x1xf32>
    %256 = tpu.reciprocal %255 {approx = true} : vector<32x1xf32> -> vector<32x1xf32>
    %257 = vector.broadcast %256 : vector<32x1xf32> to vector<32x32xf32>
    %258 = arith.mulf %253, %257 : vector<32x32xf32>
    %cst_106 = arith.constant dense<0.000000e+00> : vector<32x16xf32>
    %259 = tpu.matmul %258, %243, %cst_106 {dimension_numbers = #tpu.dot_dimension_numbers<[1], [0], [0], [1], [0, 0, 1, 1], [], []>} : vector<32x32xf32>, vector<32x16xf32>, vector<32x16xf32> -> vector<32x16xf32>
    %260 = vector.extract_strided_slice %202 {offsets = [0, 48], sizes = [32, 16], strides = [1, 1]} : vector<32x192xf32> to vector<32x16xf32>
    %261 = vector.extract_strided_slice %202 {offsets = [0, 112], sizes = [32, 16], strides = [1, 1]} : vector<32x192xf32> to vector<32x16xf32>
    %262 = vector.extract_strided_slice %202 {offsets = [0, 176], sizes = [32, 16], strides = [1, 1]} : vector<32x192xf32> to vector<32x16xf32>
    %263 = tpu.transpose %261, [1, 0] : vector<32x16xf32> -> vector<16x32xf32>
    %cst_107 = arith.constant dense<0.000000e+00> : vector<32x32xf32>
    %264 = tpu.matmul %260, %263, %cst_107 {dimension_numbers = #tpu.dot_dimension_numbers<[1], [0], [0], [1], [0, 0, 1, 1], [], []>} : vector<32x16xf32>, vector<16x32xf32>, vector<32x32xf32> -> vector<32x32xf32>
    %cst_108 = arith.constant 2.500000e-01 : f32
    %265 = vector.broadcast %cst_108 : f32 to vector<32x32xf32>
    %266 = arith.mulf %264, %265 : vector<32x32xf32>
    %267 = arith.addf %266, %18 : vector<32x32xf32>
    %cst_109 = arith.constant dense<0xFF800000> : vector<32xf32>
    %268 = vector.multi_reduction <maximumf>, %267, %cst_109 [1] : vector<32x32xf32> to vector<32xf32>
    %269 = vector.shape_cast %268 : vector<32xf32> to vector<32x1xf32>
    %270 = vector.broadcast %269 : vector<32x1xf32> to vector<32x32xf32>
    %271 = arith.subf %267, %270 : vector<32x32xf32>
    %272 = math.exp %271 : vector<32x32xf32>
    %cst_110 = arith.constant dense<0.000000e+00> : vector<32xf32>
    %273 = vector.multi_reduction <add>, %272, %cst_110 [1] : vector<32x32xf32> to vector<32xf32>
    %274 = vector.shape_cast %273 : vector<32xf32> to vector<32x1xf32>
    %275 = tpu.reciprocal %274 {approx = true} : vector<32x1xf32> -> vector<32x1xf32>
    %276 = vector.broadcast %275 : vector<32x1xf32> to vector<32x32xf32>
    %277 = arith.mulf %272, %276 : vector<32x32xf32>
    %cst_111 = arith.constant dense<0.000000e+00> : vector<32x16xf32>
    %278 = tpu.matmul %277, %262, %cst_111 {dimension_numbers = #tpu.dot_dimension_numbers<[1], [0], [0], [1], [0, 0, 1, 1], [], []>} : vector<32x32xf32>, vector<32x16xf32>, vector<32x16xf32> -> vector<32x16xf32>
    %279 = tpu.concatenate %221, %240, %259, %278 in 1 : vector<32x16xf32>, vector<32x16xf32>, vector<32x16xf32>, vector<32x16xf32> -> vector<32x64xf32>
    %280 = arith.truncf %279 : vector<32x64xf32> to vector<32x64xbf16>
    %c1_112 = arith.constant 1 : index
    %c0_113 = arith.constant 0 : index
    %c0_114 = arith.constant 0 : index
    %281 = vector.load %arg10[%c1_112, %c0_113, %c0_114] : memref<2x64x64xbf16, #tpu.memory_space<vmem>>, vector<1x64x64xbf16>
    %282 = vector.shape_cast %281 : vector<1x64x64xbf16> to vector<64x64xbf16>
    %cst_115 = arith.constant dense<0.000000e+00> : vector<32x64xf32>
    %283 = tpu.matmul %280, %282, %cst_115 {dimension_numbers = #tpu.dot_dimension_numbers<[1], [0], [0], [1], [0, 0, 1, 1], [], []>} : vector<32x64xbf16>, vector<64x64xbf16>, vector<32x64xf32> -> vector<32x64xf32>
    %284 = arith.addf %184, %283 : vector<32x64xf32>
    %c1_116 = arith.constant 1 : index
    %c0_117 = arith.constant 0 : index
    %c0_118 = arith.constant 0 : index
    %285 = vector.load %arg11[%c1_116, %c0_117, %c0_118] : memref<2x1x64xf32, #tpu.memory_space<vmem>>, vector<1x1x64xf32>
    %286 = vector.shape_cast %285 : vector<1x1x64xf32> to vector<1x64xf32>
    %287 = arith.mulf %284, %284 : vector<32x64xf32>
    %cst_119 = arith.constant dense<0.000000e+00> : vector<32xf32>
    %288 = vector.multi_reduction <add>, %287, %cst_119 [1] : vector<32x64xf32> to vector<32xf32>
    %289 = vector.shape_cast %288 : vector<32xf32> to vector<32x1xf32>
    %cst_120 = arith.constant 6.400000e+01 : f32
    %290 = vector.broadcast %cst_120 : f32 to vector<32x1xf32>
    %291 = arith.divf %289, %290 : vector<32x1xf32>
    %cst_121 = arith.constant 9.99999997E-7 : f32
    %292 = vector.broadcast %cst_121 : f32 to vector<32x1xf32>
    %293 = arith.addf %291, %292 : vector<32x1xf32>
    %294 = math.rsqrt %293 : vector<32x1xf32>
    %295 = vector.broadcast %294 : vector<32x1xf32> to vector<32x64xf32>
    %296 = arith.mulf %284, %295 : vector<32x64xf32>
    %297 = vector.broadcast %286 : vector<1x64xf32> to vector<32x64xf32>
    %298 = arith.mulf %296, %297 : vector<32x64xf32>
    %c1_122 = arith.constant 1 : index
    %c0_123 = arith.constant 0 : index
    %c0_124 = arith.constant 0 : index
    %299 = vector.load %arg12[%c1_122, %c0_123, %c0_124] : memref<2x64x4xf32, #tpu.memory_space<vmem>>, vector<1x64x4xf32>
    %300 = vector.shape_cast %299 : vector<1x64x4xf32> to vector<64x4xf32>
    %cst_125 = arith.constant dense<0.000000e+00> : vector<32x4xf32>
    %301 = tpu.matmul %298, %300, %cst_125 {dimension_numbers = #tpu.dot_dimension_numbers<[1], [0], [0], [1], [0, 0, 1, 1], [], []>} : vector<32x64xf32>, vector<64x4xf32>, vector<32x4xf32> -> vector<32x4xf32>
    %cst_126 = arith.constant dense<0xFF800000> : vector<32xf32>
    %302 = vector.multi_reduction <maximumf>, %301, %cst_126 [1] : vector<32x4xf32> to vector<32xf32>
    %303 = vector.shape_cast %302 : vector<32xf32> to vector<32x1xf32>
    %304 = vector.broadcast %303 : vector<32x1xf32> to vector<32x4xf32>
    %305 = arith.subf %301, %304 : vector<32x4xf32>
    %306 = math.exp %305 : vector<32x4xf32>
    %cst_127 = arith.constant dense<0.000000e+00> : vector<32xf32>
    %307 = vector.multi_reduction <add>, %306, %cst_127 [1] : vector<32x4xf32> to vector<32xf32>
    %308 = vector.shape_cast %307 : vector<32xf32> to vector<32x1xf32>
    %309 = tpu.reciprocal %308 {approx = true} : vector<32x1xf32> -> vector<32x1xf32>
    %310 = vector.broadcast %309 : vector<32x1xf32> to vector<32x4xf32>
    %311 = arith.mulf %306, %310 : vector<32x4xf32>
    %cst_128 = arith.constant dense<0xFF800000> : vector<32xf32>
    %312 = vector.multi_reduction <maximumf>, %311, %cst_128 [1] : vector<32x4xf32> to vector<32xf32>
    %313 = vector.shape_cast %312 : vector<32xf32> to vector<32x1xf32>
    %314 = vector.broadcast %313 : vector<32x1xf32> to vector<32x4xf32>
    %315 = arith.cmpf oge, %311, %314 : vector<32x4xf32>
    %cst_129 = arith.constant -1.000000e+00 : f32
    %316 = vector.broadcast %cst_129 : f32 to vector<32x4xf32>
    %317 = arith.select %315, %316, %311 : vector<32x4xi1>, vector<32x4xf32>
    %cst_130 = arith.constant dense<0xFF800000> : vector<32xf32>
    %318 = vector.multi_reduction <maximumf>, %317, %cst_130 [1] : vector<32x4xf32> to vector<32xf32>
    %319 = vector.shape_cast %318 : vector<32xf32> to vector<32x1xf32>
    %320 = vector.broadcast %319 : vector<32x1xf32> to vector<32x4xf32>
    %321 = arith.cmpf oge, %311, %320 : vector<32x4xf32>
    %322 = arith.extui %321 : vector<32x4xi1> to vector<32x4xi32>
    %323 = arith.sitofp %322 : vector<32x4xi32> to vector<32x4xf32>
    %324 = arith.mulf %311, %323 : vector<32x4xf32>
    %cst_131 = arith.constant dense<0.000000e+00> : vector<32xf32>
    %325 = vector.multi_reduction <add>, %324, %cst_131 [1] : vector<32x4xf32> to vector<32xf32>
    %326 = vector.shape_cast %325 : vector<32xf32> to vector<32x1xf32>
    %327 = tpu.reciprocal %326 {approx = true} : vector<32x1xf32> -> vector<32x1xf32>
    %328 = vector.broadcast %327 : vector<32x1xf32> to vector<32x4xf32>
    %329 = arith.mulf %324, %328 : vector<32x4xf32>
    %330 = arith.truncf %298 : vector<32x64xf32> to vector<32x64xbf16>
    %c1_132 = arith.constant 1 : index
    %c0_133 = arith.constant 0 : index
    %c0_134 = arith.constant 0 : index
    %331 = vector.load %arg13[%c1_132, %c0_133, %c0_134] : memref<2x64x1024xbf16, #tpu.memory_space<vmem>>, vector<1x64x1024xbf16>
    %332 = vector.shape_cast %331 : vector<1x64x1024xbf16> to vector<64x1024xbf16>
    %cst_135 = arith.constant dense<0.000000e+00> : vector<32x1024xf32>
    %333 = tpu.matmul %330, %332, %cst_135 {dimension_numbers = #tpu.dot_dimension_numbers<[1], [0], [0], [1], [0, 0, 1, 1], [], []>} : vector<32x64xbf16>, vector<64x1024xbf16>, vector<32x1024xf32> -> vector<32x1024xf32>
    %334 = vector.extract_strided_slice %333 {offsets = [0, 0], sizes = [32, 512], strides = [1, 1]} : vector<32x1024xf32> to vector<32x512xf32>
    %335 = vector.extract_strided_slice %333 {offsets = [0, 512], sizes = [32, 512], strides = [1, 1]} : vector<32x1024xf32> to vector<32x512xf32>
    %336 = arith.negf %334 : vector<32x512xf32>
    %337 = math.exp %336 : vector<32x512xf32>
    %cst_136 = arith.constant 1.000000e+00 : f32
    %338 = vector.broadcast %cst_136 : f32 to vector<32x512xf32>
    %339 = arith.addf %338, %337 : vector<32x512xf32>
    %340 = arith.divf %338, %339 : vector<32x512xf32>
    %341 = arith.mulf %334, %340 : vector<32x512xf32>
    %342 = arith.mulf %341, %335 : vector<32x512xf32>
    %cst_137 = arith.constant dense<0.000000e+00> : vector<32x512xf32>
    %343 = tpu.matmul %329, %19, %cst_137 {dimension_numbers = #tpu.dot_dimension_numbers<[1], [0], [0], [1], [0, 0, 1, 1], [], []>} : vector<32x4xf32>, vector<4x512xf32>, vector<32x512xf32> -> vector<32x512xf32>
    %344 = arith.mulf %342, %343 : vector<32x512xf32>
    %345 = arith.truncf %344 : vector<32x512xf32> to vector<32x512xbf16>
    %c1_138 = arith.constant 1 : index
    %c0_139 = arith.constant 0 : index
    %c0_140 = arith.constant 0 : index
    %346 = vector.load %arg14[%c1_138, %c0_139, %c0_140] : memref<2x512x64xbf16, #tpu.memory_space<vmem>>, vector<1x512x64xbf16>
    %347 = vector.shape_cast %346 : vector<1x512x64xbf16> to vector<512x64xbf16>
    %cst_141 = arith.constant dense<0.000000e+00> : vector<32x64xf32>
    %348 = tpu.matmul %345, %347, %cst_141 {dimension_numbers = #tpu.dot_dimension_numbers<[1], [0], [0], [1], [0, 0, 1, 1], [], []>} : vector<32x512xbf16>, vector<512x64xbf16>, vector<32x64xf32> -> vector<32x64xf32>
    %349 = arith.addf %284, %348 : vector<32x64xf32>
    %c0_142 = arith.constant 0 : index
    %c0_143 = arith.constant 0 : index
    %350 = vector.load %arg15[%c0_142, %c0_143] : memref<1x64xf32, #tpu.memory_space<vmem>>, vector<1x64xf32>
    %351 = arith.mulf %349, %349 : vector<32x64xf32>
    %cst_144 = arith.constant dense<0.000000e+00> : vector<32xf32>
    %352 = vector.multi_reduction <add>, %351, %cst_144 [1] : vector<32x64xf32> to vector<32xf32>
    %353 = vector.shape_cast %352 : vector<32xf32> to vector<32x1xf32>
    %cst_145 = arith.constant 6.400000e+01 : f32
    %354 = vector.broadcast %cst_145 : f32 to vector<32x1xf32>
    %355 = arith.divf %353, %354 : vector<32x1xf32>
    %cst_146 = arith.constant 9.99999997E-7 : f32
    %356 = vector.broadcast %cst_146 : f32 to vector<32x1xf32>
    %357 = arith.addf %355, %356 : vector<32x1xf32>
    %358 = math.rsqrt %357 : vector<32x1xf32>
    %359 = vector.broadcast %358 : vector<32x1xf32> to vector<32x64xf32>
    %360 = arith.mulf %349, %359 : vector<32x64xf32>
    %361 = vector.broadcast %350 : vector<1x64xf32> to vector<32x64xf32>
    %362 = arith.mulf %360, %361 : vector<32x64xf32>
    %363 = arith.truncf %362 : vector<32x64xf32> to vector<32x64xbf16>
    %c0_147 = arith.constant 0 : index
    %c0_148 = arith.constant 0 : index
    %364 = vector.load %arg16[%c0_147, %c0_148] : memref<64x256xbf16, #tpu.memory_space<vmem>>, vector<64x256xbf16>
    %cst_149 = arith.constant dense<0.000000e+00> : vector<32x256xf32>
    %365 = tpu.matmul %363, %364, %cst_149 {dimension_numbers = #tpu.dot_dimension_numbers<[1], [0], [0], [1], [0, 0, 1, 1], [], []>} : vector<32x64xbf16>, vector<64x256xbf16>, vector<32x256xf32> -> vector<32x256xf32>
    %c0_150 = arith.constant 0 : index
    %c0_151 = arith.constant 0 : index
    %366 = vector.load %arg17[%c0_150, %c0_151] : memref<32x256xf32, #tpu.memory_space<vmem>>, vector<32x256xf32>
    tpu.vector_store %arg17[%c0_150, %c0_151], %365 {strides = array<i32>} : memref<32x256xf32, #tpu.memory_space<vmem>>, vector<32x256xf32>,
    return
  }
  func.func @transform_0(%arg0: i32) -> (i32, i32) {
    %c0_i32 = arith.constant 0 : i32
    %c0_i32_0 = arith.constant 0 : i32
    %c0_i32_1 = arith.constant 0 : i32
    return %c0_i32, %c0_i32_0 : i32, i32
  }
  func.func @transform_1(%arg0: i32) -> (i32, i32) {
    %c0_i32 = arith.constant 0 : i32
    %c0_i32_0 = arith.constant 0 : i32
    %c0_i32_1 = arith.constant 0 : i32
    return %c0_i32, %c0_i32_0 : i32, i32
  }
  func.func @transform_2(%arg0: i32) -> (i32, i32) {
    %c0_i32 = arith.constant 0 : i32
    %c0_i32_0 = arith.constant 0 : i32
    %c0_i32_1 = arith.constant 0 : i32
    return %c0_i32, %c0_i32_0 : i32, i32
  }
  func.func @transform_3(%arg0: i32) -> (i32, i32) {
    %c0_i32 = arith.constant 0 : i32
    %c0_i32_0 = arith.constant 0 : i32
    %c0_i32_1 = arith.constant 0 : i32
    return %c0_i32, %c0_i32_0 : i32, i32
  }
  func.func @transform_4(%arg0: i32) -> (i32, i32) {
    %c0_i32 = arith.constant 0 : i32
    %c0_i32_0 = arith.constant 0 : i32
    %c0_i32_1 = arith.constant 0 : i32
    return %c0_i32, %c0_i32_0 : i32, i32
  }
  func.func @transform_5(%arg0: i32) -> (i32, i32) {
    %c0_i32 = arith.constant 0 : i32
    %c0_i32_0 = arith.constant 0 : i32
    %c0_i32_1 = arith.constant 0 : i32
    return %c0_i32, %c0_i32_0 : i32, i32
  }
  func.func @transform_6(%arg0: i32) -> (i32, i32) {
    %c0_i32 = arith.constant 0 : i32
    %c0_i32_0 = arith.constant 0 : i32
    %c0_i32_1 = arith.constant 0 : i32
    return %c0_i32, %c0_i32_0 : i32, i32
  }
  func.func @transform_7(%arg0: i32) -> (i32, i32, i32) {
    %c0_i32 = arith.constant 0 : i32
    %c0_i32_0 = arith.constant 0 : i32
    %c0_i32_1 = arith.constant 0 : i32
    %c0_i32_2 = arith.constant 0 : i32
    return %c0_i32, %c0_i32_0, %c0_i32_1 : i32, i32, i32
  }
  func.func @transform_8(%arg0: i32) -> (i32, i32, i32) {
    %c0_i32 = arith.constant 0 : i32
    %c0_i32_0 = arith.constant 0 : i32
    %c0_i32_1 = arith.constant 0 : i32
    %c0_i32_2 = arith.constant 0 : i32
    return %c0_i32, %c0_i32_0, %c0_i32_1 : i32, i32, i32
  }
  func.func @transform_9(%arg0: i32) -> (i32, i32, i32) {
    %c0_i32 = arith.constant 0 : i32
    %c0_i32_0 = arith.constant 0 : i32
    %c0_i32_1 = arith.constant 0 : i32
    %c0_i32_2 = arith.constant 0 : i32
    return %c0_i32, %c0_i32_0, %c0_i32_1 : i32, i32, i32
  }
  func.func @transform_10(%arg0: i32) -> (i32, i32, i32) {
    %c0_i32 = arith.constant 0 : i32
    %c0_i32_0 = arith.constant 0 : i32
    %c0_i32_1 = arith.constant 0 : i32
    %c0_i32_2 = arith.constant 0 : i32
    return %c0_i32, %c0_i32_0, %c0_i32_1 : i32, i32, i32
  }
  func.func @transform_11(%arg0: i32) -> (i32, i32, i32) {
    %c0_i32 = arith.constant 0 : i32
    %c0_i32_0 = arith.constant 0 : i32
    %c0_i32_1 = arith.constant 0 : i32
    %c0_i32_2 = arith.constant 0 : i32
    return %c0_i32, %c0_i32_0, %c0_i32_1 : i32, i32, i32
  }
  func.func @transform_12(%arg0: i32) -> (i32, i32, i32) {
    %c0_i32 = arith.constant 0 : i32
    %c0_i32_0 = arith.constant 0 : i32
    %c0_i32_1 = arith.constant 0 : i32
    %c0_i32_2 = arith.constant 0 : i32
    return %c0_i32, %c0_i32_0, %c0_i32_1 : i32, i32, i32
  }
  func.func @transform_13(%arg0: i32) -> (i32, i32, i32) {
    %c0_i32 = arith.constant 0 : i32
    %c0_i32_0 = arith.constant 0 : i32
    %c0_i32_1 = arith.constant 0 : i32
    %c0_i32_2 = arith.constant 0 : i32
    return %c0_i32, %c0_i32_0, %c0_i32_1 : i32, i32, i32
  }
  func.func @transform_14(%arg0: i32) -> (i32, i32) {
    %c0_i32 = arith.constant 0 : i32
    %c0_i32_0 = arith.constant 0 : i32
    %c0_i32_1 = arith.constant 0 : i32
    return %c0_i32, %c0_i32_0 : i32, i32
  }
  func.func @transform_15(%arg0: i32) -> (i32, i32) {
    %c0_i32 = arith.constant 0 : i32
    %c0_i32_0 = arith.constant 0 : i32
    %c0_i32_1 = arith.constant 0 : i32
    return %c0_i32, %c0_i32_0 : i32, i32
  }
  func.func @transform_16(%arg0: i32) -> (i32, i32) {
    %c0_i32 = arith.constant 0 : i32
    %c0_i32_0 = arith.constant 0 : i32
    %c0_i32_1 = arith.constant 0 : i32
    return %c0_i32, %c0_i32_0 : i32, i32
  }
}

</mosaic_0001>

<llo_original>
// kernel: tpu_custom_call.1
$region0: #{tpu_custom_call.1}
  #allocation0 [shape = 'u32[]', space=smem, size = 0x4, offset = 0x4, fixed_abs, tag = 'smem constant byte address 0x4 - core index']
  #allocation1 [shape = 'u32[72,128]{1,0:T(1,128)}', space=vmem, size = 0x9000, scoped, tag = 'internal scratch']
  #allocation2 [shape = 'f32[32,64]{1,0:T(8,128)}', space=vmem, size = 0x4000, scoped, tag = 'scratch operand']
  %s0 = inlined_call_operand.vmem [shape: f32[30,8], index: 0, kind: input, shape index: {}]
  %s1 = inlined_call_operand.vmem [shape: f32[2,64], index: 1, kind: input, shape index: {}]
  %s2 = inlined_call_operand.vmem [shape: f32[30,64], index: 2, kind: input, shape index: {}]
  %s3 = inlined_call_operand.vmem [shape: f32[32,32], index: 3, kind: input, shape index: {}]
  %s4 = inlined_call_operand.vmem [shape: f32[4,512], index: 4, kind: input, shape index: {}]
  %s5 = inlined_call_operand.vmem [shape: bf16[8,64], index: 5, kind: input, shape index: {}]
  %s6 = inlined_call_operand.vmem [shape: f32[1,64], index: 6, kind: input, shape index: {}]
  %s7 = inlined_call_operand.vmem [shape: f32[2,1,64], index: 7, kind: input, shape index: {}]
  %s8 = inlined_call_operand.vmem [shape: bf16[2,64,192], index: 8, kind: input, shape index: {}]
  %s9 = inlined_call_operand.vmem [shape: bf16[2,64,64], index: 9, kind: input, shape index: {}]
  %s10 = inlined_call_operand.vmem [shape: f32[2,1,64], index: 10, kind: input, shape index: {}]
  %s11 = inlined_call_operand.vmem [shape: f32[2,64,4], index: 11, kind: input, shape index: {}]
  %s12 = inlined_call_operand.vmem [shape: bf16[2,64,1024], index: 12, kind: input, shape index: {}]
  %s13 = inlined_call_operand.vmem [shape: bf16[2,512,64], index: 13, kind: input, shape index: {}]
  %s14 = inlined_call_operand.vmem [shape: f32[1,64], index: 14, kind: input, shape index: {}]
  %s15 = inlined_call_operand.vmem [shape: bf16[64,256], index: 15, kind: input, shape index: {}]
  %s16 = inlined_call_operand.hbm [shape: f32[32,256], index: 16, kind: output, shape index: {}]
  %s17 = sld [smem:[#allocation0]]
  $region74: #{tpu_custom_call.1} parent=0
    _
  %s19 = ssub.s32 1, %s17
  %s20 = scalar_select 0, %s19, %s17
  $region1: #{tpu_custom_call.1} parent=0
    #allocation3 [shape = 'u8[32768]{0}', space=vmem, size = 0x8000, scoped, tag = 'output window, operand 0, single buffered']
    #allocation4 [shape = 's32[1]{0}', space=sflag, size = 0x4, scoped, tag = 'scoped memory for tpu_custom_call.1']
    %21 = vsyncpa [#allocation4], 0
    // Predicated region
    $region2: #{tpu_custom_call.1} parent=1 // pred_check
      _
    $region3: #{tpu_custom_call.1} parent=1 // pred_check_branch
      %23 = sbr.rel (0) target = $region5
    $region4: #{tpu_custom_call.1} parent=1 // pred_region
      _
    $region5: #{tpu_custom_call.1} parent=1 // pred_fallthru
      _
    // Predicated region
    $region6: #{tpu_custom_call.1} parent=1 // pred_check
      _
    $region7: #{tpu_custom_call.1} parent=1 // pred_check_branch
      %25 = sbr.rel (0) target = $region9
    $region8: #{tpu_custom_call.1} parent=1 // pred_region
      _
    $region9: #{tpu_custom_call.1} parent=1 // pred_fallthru
      _
    // Predicated region
    $region10: #{tpu_custom_call.1} parent=1 // pred_check
      _
    $region11: #{tpu_custom_call.1} parent=1 // pred_check_branch
      %27 = sbr.rel (0) target = $region13
    $region12: #{tpu_custom_call.1} parent=1 // pred_region
      _
    $region13: #{tpu_custom_call.1} parent=1 // pred_fallthru
      _
    // Predicated region
    $region14: #{tpu_custom_call.1} parent=1 // pred_check
      _
    $region15: #{tpu_custom_call.1} parent=1 // pred_check_branch
      %29 = sbr.rel (0) target = $region17
    $region16: #{tpu_custom_call.1} parent=1 // pred_region
      _
    $region17: #{tpu_custom_call.1} parent=1 // pred_fallthru
      _
    // Predicated region
    $region18: #{tpu_custom_call.1} parent=1 // pred_check
      _
    $region19: #{tpu_custom_call.1} parent=1 // pred_check_branch
      %31 = sbr.rel (0) target = $region21
    $region20: #{tpu_custom_call.1} parent=1 // pred_region
      _
    $region21: #{tpu_custom_call.1} parent=1 // pred_fallthru
      _
    // Predicated region
    $region22: #{tpu_custom_call.1} parent=1 // pred_check
      _
    $region23: #{tpu_custom_call.1} parent=1 // pred_check_branch
      %33 = sbr.rel (0) target = $region25
    $region24: #{tpu_custom_call.1} parent=1 // pred_region
      _
    $region25: #{tpu_custom_call.1} parent=1 // pred_fallthru
      _
    // Predicated region
    $region26: #{tpu_custom_call.1} parent=1 // pred_check
      _
    $region27: #{tpu_custom_call.1} parent=1 // pred_check_branch
      %35 = sbr.rel (0) target = $region29
    $region28: #{tpu_custom_call.1} parent=1 // pred_region
      _
    $region29: #{tpu_custom_call.1} parent=1 // pred_fallthru
      _
    // Predicated region
    $region30: #{tpu_custom_call.1} parent=1 // pred_check
      _
    $region31: #{tpu_custom_call.1} parent=1 // pred_check_branch
      %37 = sbr.rel (0) target = $region33
    $region32: #{tpu_custom_call.1} parent=1 // pred_region
      _
    $region33: #{tpu_custom_call.1} parent=1 // pred_fallthru
      _
    // Predicated region
    $region34: #{tpu_custom_call.1} parent=1 // pred_check
      _
    $region35: #{tpu_custom_call.1} parent=1 // pred_check_branch
      %39 = sbr.rel (0) target = $region37
    $region36: #{tpu_custom_call.1} parent=1 // pred_region
      _
    $region37: #{tpu_custom_call.1} parent=1 // pred_fallthru
      _
    // Predicated region
    $region38: #{tpu_custom_call.1} parent=1 // pred_check
      _
    $region39: #{tpu_custom_call.1} parent=1 // pred_check_branch
      %41 = sbr.rel (0) target = $region41
    $region40: #{tpu_custom_call.1} parent=1 // pred_region
      _
    $region41: #{tpu_custom_call.1} parent=1 // pred_fallthru
      _
    // Predicated region
    $region42: #{tpu_custom_call.1} parent=1 // pred_check
      _
    $region43: #{tpu_custom_call.1} parent=1 // pred_check_branch
      %43 = sbr.rel (0) target = $region45
    $region44: #{tpu_custom_call.1} parent=1 // pred_region
      _
    $region45: #{tpu_custom_call.1} parent=1 // pred_fallthru
      _
    // Predicated region
    $region46: #{tpu_custom_call.1} parent=1 // pred_check
      _
    $region47: #{tpu_custom_call.1} parent=1 // pred_check_branch
      %45 = sbr.rel (0) target = $region49
    $region48: #{tpu_custom_call.1} parent=1 // pred_region
      _
    $region49: #{tpu_custom_call.1} parent=1 // pred_fallthru
      _
    // Predicated region
    $region50: #{tpu_custom_call.1} parent=1 // pred_check
      _
    $region51: #{tpu_custom_call.1} parent=1 // pred_check_branch
      %47 = sbr.rel (0) target = $region53
    $region52: #{tpu_custom_call.1} parent=1 // pred_region
      _
    $region53: #{tpu_custom_call.1} parent=1 // pred_fallthru
      _
    // Predicated region
    $region54: #{tpu_custom_call.1} parent=1 // pred_check
      _
    $region55: #{tpu_custom_call.1} parent=1 // pred_check_branch
      %49 = sbr.rel (0) target = $region57
    $region56: #{tpu_custom_call.1} parent=1 // pred_region
      _
    $region57: #{tpu_custom_call.1} parent=1 // pred_fallthru
      _
    // Predicated region
    $region58: #{tpu_custom_call.1} parent=1 // pred_check
      _
    $region59: #{tpu_custom_call.1} parent=1 // pred_check_branch
      %51 = sbr.rel (0) target = $region61
    $region60: #{tpu_custom_call.1} parent=1 // pred_region
      _
    $region61: #{tpu_custom_call.1} parent=1 // pred_fallthru
      _
    // Predicated region
    $region62: #{tpu_custom_call.1} parent=1 // pred_check
      _
    $region63: #{tpu_custom_call.1} parent=1 // pred_check_branch
      %53 = sbr.rel (0) target = $region65
    $region64: #{tpu_custom_call.1} parent=1 // pred_region
      _
    $region65: #{tpu_custom_call.1} parent=1 // pred_fallthru
      _
    %v55 = vld [vmem:[%s0] sm:$0xff]
    %v56 = vld [vmem:[%s0 + $0x8] sm:$0xff]
    %v57 = vld [vmem:[%s0 + $0x10] sm:$0xff]
    %v58 = vld [vmem:[%s0 + $0x18] sm:$0x3f]
    %v59 = vpack.c.bf16 %v56, %v55
    %v60 = vpack.c.bf16 %v58, %v57
    %v61 = vld [vmem:[%s5] sm:$0xf]
    %v62 = vld [vmem:[%s6] sm:$0x1]
    %v64 = vperm.slane %v62, 0
    %vm66 = vcmask 64512
    %v68 = vsel %vm66, %v59, 0
    %v71 = vsel %vm66, %v60, 0
    %vm73 = vcmask 1043456
    %v75 = vsel %vm73, %v61, 0
    %77 = vmatpush.bf16.msra.mxu0 0
    %78 = vmatpush.bf16.msra.mxu0 0
    %79 = vmatpush.bf16.msra.mxu0 0
    %80 = vmatpush.bf16.msra.mxu0 0
    %81 = vmatpush.bf16.msra.mxu0 0
    %82 = vmatpush.bf16.msra.mxu0 0
    %83 = vmatpush.bf16.msra.mxu0 0
    %84 = vmatpush.bf16.msra.mxu0 %v75
    %85 = vmatmul.bf16.gmra.mxu0 %v68
    %v86 = vpop.f32.mrf.mxu0
    %v87 = vadd.f32 %v64, %v86
    %v88 = vpop.f32.mrf.mxu0
    %v89 = vadd.f32 %v64, %v88
    %90 = vmatmul.bf16.gmra.mxu0 %v71
    %v91 = vpop.f32.mrf.mxu0
    %v92 = vadd.f32 %v64, %v91
    %v93 = vpop.f32.mrf.mxu0
    %v94 = vadd.f32 %v64, %v93
    %95 = vdwg.mxu0
    %v96 = vld [vmem:[%s2] sm:$0xff]
    %v97 = vld [vmem:[%s2 + $0x8] sm:$0xff]
    %v98 = vld [vmem:[%s2 + $0x10] sm:$0xff]
    %v99 = vld [vmem:[%s2 + $0x18] sm:$0x3f]
    %v100 = vadd.f32 %v87, %v96
    %v101 = vadd.f32 %v89, %v97
    %v102 = vadd.f32 %v92, %v98
    %v103 = vadd.f32 %v94, %v99
    %v104 = vld [vmem:[%s1] sm:$0x1]
    %vm105 = vcmask 516096
    %106 = vst.msk [vmem:[#allocation2] sm:$0x1] %vm105, %v104
    %vm107 = vcmask 523264
    %108 = vst.msk [vmem:[#allocation2 + $0x1] sm:$0xff] %vm107, %v100
    %vm109 = vcmask 522240
    %110 = vst.msk [vmem:[#allocation2 + $0x9] sm:$0x7f] %vm109, %v101
    %v111 = vld [vmem:[%s1 + $0x1] sm:$0x1]
    %112 = vst.msk [vmem:[#allocation2 + $0x10] sm:$0x1] %vm105, %v111
    %vm113 = vcmask 523271
    %114 = vst.msk [vmem:[#allocation2 + $0xa] sm:$0x80] %vm113, %v101
    %115 = vst.msk [vmem:[#allocation2 + $0x12] sm:$0xff] %vm107, %v102
    %vm116 = vcmask 521216
    %117 = vst.msk [vmem:[#allocation2 + $0x1a] sm:$0x3f] %vm116, %v103
    %v118 = vld [vmem:[#allocation2] sm:$0xff]
    %v119 = vld [vmem:[#allocation2 + $0x8] sm:$0xff]
    %v120 = vld [vmem:[#allocation2 + $0x10] sm:$0xff]
    %v121 = vld [vmem:[#allocation2 + $0x18] sm:$0xff]
    %v122 = vld [vmem:[%s3] sm:$0xff]
    %v123 = vld [vmem:[%s3 + $0x8] sm:$0xff]
    %v124 = vld [vmem:[%s3 + $0x10] sm:$0xff]
    %v125 = vld [vmem:[%s3 + $0x18] sm:$0xff]
    %v126 = vld [vmem:[%s4] sm:$0xff]
    %v127 = vld [vmem:[%s4 + $0x8] sm:$0xff]
    %v128 = vld [vmem:[%s7] sm:$0x1]
    %v129 = vmul.f32 %v118, %v118
    %v130 = vmul.f32 %v119, %v119
    %v131 = vmul.f32 %v120, %v120
    %v132 = vmul.f32 %v121, %v121
    %v133 = vsel %vm107, %v129, 0.0
    %134 = vadd.xlane.f32.xlu0 %v133
    %v135 = vpop.xlane.xlu0 %134
    %v136 = vsel %vm107, %v130, 0.0
    %137 = vadd.xlane.f32.xlu0 %v136
    %v138 = vpop.xlane.xlu0 %137
    %v139 = vsel %vm107, %v131, 0.0
    %140 = vadd.xlane.f32.xlu0 %v139
    %v141 = vpop.xlane.xlu0 %140
    %v142 = vsel %vm107, %v132, 0.0
    %143 = vadd.xlane.f32.xlu0 %v142
    %v144 = vpop.xlane.xlu0 %143
    %v145 = vrcp.pop 64.0
    %v146 = vmul.f32 64.0, %v145
    %v147 = vsub.f32 1.0, %v146
    %v148 = vmul.f32 %v145, %v147
    %v149 = vadd.f32 %v145, %v148
    %vm150 = vweird.f32 %v145
    %v151 = vsel %vm150, %v145, %v149
    %v152 = vmul.f32 %v135, %v151
    %v153 = vmul.f32 %v138, %v151
    %v154 = vmul.f32 %v141, %v151
    %v155 = vmul.f32 %v144, %v151
    %v156 = vadd.f32 %v152, 1e-06
    %v157 = vadd.f32 %v153, 1e-06
    %v158 = vadd.f32 %v154, 1e-06
    %v159 = vadd.f32 %v155, 1e-06
    %v160 = vrsqrt.pop %v156
    %v161 = vmul.f32 %v160, %v156
    %v162 = vmul.f32 %v161, %v160
    %v163 = vmul.f32 0.5, %v162
    %v164 = vsub.f32 1.5, %v163
    %v165 = vmul.f32 %v160, %v164
    %vm166 = vweird.f32 %v156
    %vm167 = vweird.f32 %v160
    %vm168 = vmor %vm166, %vm167
    %v169 = vsel %vm168, %v160, %v165
    %v170 = vrsqrt.pop %v157
    %v171 = vmul.f32 %v170, %v157
    %v172 = vmul.f32 %v171, %v170
    %v173 = vmul.f32 0.5, %v172
    %v174 = vsub.f32 1.5, %v173
    %v175 = vmul.f32 %v170, %v174
    %vm176 = vweird.f32 %v157
    %vm177 = vweird.f32 %v170
    %vm178 = vmor %vm176, %vm177
    %v179 = vsel %vm178, %v170, %v175
    %v180 = vrsqrt.pop %v158
    %v181 = vmul.f32 %v180, %v158
    %v182 = vmul.f32 %v181, %v180
    %v183 = vmul.f32 0.5, %v182
    %v184 = vsub.f32 1.5, %v183
    %v185 = vmul.f32 %v180, %v184
    %vm186 = vweird.f32 %v158
    %vm187 = vweird.f32 %v180
    %vm188 = vmor %vm186, %vm187
    %v189 = vsel %vm188, %v180, %v185
    %v190 = vrsqrt.pop %v159
    %v191 = vmul.f32 %v190, %v159
    %v192 = vmul.f32 %v191, %v190
    %v193 = vmul.f32 0.5, %v192
    %v194 = vsub.f32 1.5, %v193
    %v195 = vmul.f32 %v190, %v194
    %vm196 = vweird.f32 %v159
    %vm197 = vweird.f32 %v190
    %vm198 = vmor %vm196, %vm197
    %v199 = vsel %vm198, %v190, %v195
    %v200 = vmul.f32 %v118, %v169
    %v201 = vmul.f32 %v119, %v179
    %v202 = vmul.f32 %v120, %v189
    %v203 = vmul.f32 %v121, %v199
    %v205 = vperm.slane %v128, 0
    %v207 = vmul.f32 %v200, %v205
    %v208 = vmul.f32 %v201, %v205
    %v209 = vmul.f32 %v202, %v205
    %v210 = vmul.f32 %v203, %v205
    %v211 = vpack.c.bf16 %v208, %v207
    %v212 = vpack.c.bf16 %v210, %v209
    %v213 = vld [vmem:[%s8] sm:$0xff]
    %v214 = vld [vmem:[%s8 + $0x8] sm:$0xff]
    %v215 = vld [vmem:[%s8 + $0x10] sm:$0xff]
    %v216 = vld [vmem:[%s8 + $0x18] sm:$0xff]
    %v217 = vld [vmem:[%s8 + $0x20] sm:$0xff]
    %v218 = vld [vmem:[%s8 + $0x28] sm:$0xff]
    %v219 = vld [vmem:[%s8 + $0x30] sm:$0xff]
    %v220 = vld [vmem:[%s8 + $0x38] sm:$0xff]
    %v229 = vunpack.c.l.b16 %v213
    %v230 = vunpack.c.h.b16 %v213
    %v231 = vunpack.c.l.b16 %v214
    %v232 = vunpack.c.h.b16 %v214
    %v233 = vunpack.c.l.b16 %v215
    %v234 = vunpack.c.h.b16 %v215
    %v235 = vunpack.c.l.b16 %v216
    %v236 = vunpack.c.h.b16 %v216
    %v237 = vunpack.c.l.b16 %v217
    %v238 = vunpack.c.h.b16 %v217
    %v239 = vunpack.c.l.b16 %v218
    %v240 = vunpack.c.h.b16 %v218
    %v241 = vunpack.c.l.b16 %v219
    %v242 = vunpack.c.h.b16 %v219
    %v243 = vunpack.c.l.b16 %v220
    %v244 = vunpack.c.h.b16 %v220
    %v245 = vpack.c.b16 %v231, %v229
    %v246 = vpack.c.b16 %v232, %v230
    %v247 = vpack.c.b16 %v235, %v233
    %v248 = vpack.c.b16 %v236, %v234
    %v249 = vpack.c.b16 %v239, %v237
    %v250 = vpack.c.b16 %v240, %v238
    %v251 = vpack.c.b16 %v243, %v241
    %v252 = vpack.c.b16 %v244, %v242
    %v262 = vsel %vm107, %v211, 0
    %v265 = vsel %vm107, %v212, 0
    %267 = vmatpush.bf16.msra.mxu0 0
    %268 = vmatpush.bf16.msra.mxu0 0
    %269 = vmatpush.bf16.msra.mxu0 0
    %270 = vmatpush.bf16.msra.mxu0 0
    %271 = vmatpush.bf16.msra.mxu0 %v251
    %272 = vmatpush.bf16.msra.mxu0 %v249
    %273 = vmatpush.bf16.msra.mxu0 %v247
    %274 = vmatpush.bf16.msra.mxu0 %v245
    %275 = vmatmul.bf16.gmra.mxu0 %v262
    %v276 = vpop.f32.mrf.mxu0
    %v277 = vadd.f32 0.0, %v276
    %v278 = vpop.f32.mrf.mxu0
    %v279 = vadd.f32 0.0, %v278
    %280 = vmatmul.bf16.gmra.mxu0 %v265
    %v281 = vpop.f32.mrf.mxu0
    %v282 = vadd.f32 0.0, %v281
    %v283 = vpop.f32.mrf.mxu0
    %v284 = vadd.f32 0.0, %v283
    %285 = vdwg.mxu0
    %286 = vmatpush.bf16.msra.mxu0 0
    %287 = vmatpush.bf16.msra.mxu0 0
    %288 = vmatpush.bf16.msra.mxu0 0
    %289 = vmatpush.bf16.msra.mxu0 0
    %290 = vmatpush.bf16.msra.mxu0 %v252
    %291 = vmatpush.bf16.msra.mxu0 %v250
    %292 = vmatpush.bf16.msra.mxu0 %v248
    %293 = vmatpush.bf16.msra.mxu0 %v246
    %294 = vmatmul.bf16.gmra.mxu0 %v262
    %v295 = vpop.f32.mrf.mxu0
    %v296 = vadd.f32 0.0, %v295
    %v297 = vpop.f32.mrf.mxu0
    %v298 = vadd.f32 0.0, %v297
    %299 = vmatmul.bf16.gmra.mxu0 %v265
    %v300 = vpop.f32.mrf.mxu0
    %v301 = vadd.f32 0.0, %v300
    %v302 = vpop.f32.mrf.mxu0
    %v303 = vadd.f32 0.0, %v302
    %304 = vdwg.mxu0
    %309 = vrot.lane.b32.xlu0 %v277, 64
    %v310 = vpop.permute.xlu0 %309
    %311 = vrot.lane.b32.xlu0 %v279, 64
    %v312 = vpop.permute.xlu0 %311
    %313 = vrot.lane.b32.xlu0 %v282, 64
    %v314 = vpop.permute.xlu0 %313
    %315 = vrot.lane.b32.xlu0 %v284, 64
    %v316 = vpop.permute.xlu0 %315
    %vm317 = vcmask 130048
    %v318 = vsel %vm317, %v277, 0
    %v320 = vsel %vm317, %v279, 0
    %v322 = vsel %vm317, %v282, 0
    %v324 = vsel %vm317, %v284, 0
    %v326 = vsel %vm317, %v310, 0
    %v328 = vsel %vm317, %v312, 0
    %v330 = vsel %vm317, %v314, 0
    %v332 = vsel %vm317, %v316, 0
    %334 = vmatpush.xpose.msra.mxu0 0.0
    %335 = vmatpush.xpose.msra.mxu0 0.0
    %336 = vmatpush.xpose.msra.mxu0 0.0
    %337 = vmatpush.xpose.msra.mxu0 0.0
    %338 = vmatpush.xpose.msra.mxu0 0.0
    %339 = vmatpush.xpose.msra.mxu0 0.0
    %340 = vmatpush.xpose.msra.mxu0 0.0
    %341 = vmatpush.xpose.msra.mxu0 0.0
    %342 = vmatpush.xpose.msra.mxu0 0.0
    %343 = vmatpush.xpose.msra.mxu0 0.0
    %344 = vmatpush.xpose.msra.mxu0 0.0
    %345 = vmatpush.xpose.msra.mxu0 0.0
    %346 = vmatpush.xpose.msra.mxu0 %v332
    %347 = vmatpush.xpose.msra.mxu0 %v330
    %348 = vmatpush.xpose.msra.mxu0 %v328
    %349 = vmatpush.xpose.msra.mxu0 %v326
    %350 = vmatmul.f32.gmra.mxu0 %v318
    %v351 = vpop.f32.mrf.mxu0
    %v352 = vadd.f32 0.0, %v351
    %353 = vmatmul.f32.gmra.mxu0 %v320
    %v354 = vpop.f32.mrf.mxu0
    %v355 = vadd.f32 0.0, %v354
    %356 = vmatmul.f32.gmra.mxu0 %v322
    %v357 = vpop.f32.mrf.mxu0
    %v358 = vadd.f32 0.0, %v357
    %359 = vmatmul.f32.gmra.mxu0 %v324
    %v360 = vpop.f32.mrf.mxu0
    %v361 = vadd.f32 0.0, %v360
    %362 = vdwg.mxu0
    %v363 = vmul.f32 %v352, 0.25
    %v364 = vmul.f32 %v355, 0.25
    %v365 = vmul.f32 %v358, 0.25
    %v366 = vmul.f32 %v361, 0.25
    %v367 = vadd.f32 %v363, %v122
    %v368 = vadd.f32 %v364, %v123
    %v369 = vadd.f32 %v365, %v124
    %v370 = vadd.f32 %v366, %v125
    %vm371 = vcmask 261120
    %v372 = vsel %vm371, %v367, -inf
    %373 = vmax.xlane.f32.xlu0 %v372
    %v374 = vpop.xlane.xlu0 %373
    %v375 = vsel %vm371, %v368, -inf
    %376 = vmax.xlane.f32.xlu0 %v375
    %v377 = vpop.xlane.xlu0 %376
    %v378 = vsel %vm371, %v369, -inf
    %379 = vmax.xlane.f32.xlu0 %v378
    %v380 = vpop.xlane.xlu0 %379
    %v381 = vsel %vm371, %v370, -inf
    %382 = vmax.xlane.f32.xlu0 %v381
    %v383 = vpop.xlane.xlu0 %382
    %v384 = vsub.f32 %v367, %v374
    %v385 = vsub.f32 %v368, %v377
    %v386 = vsub.f32 %v369, %v380
    %v387 = vsub.f32 %v370, %v383
    %v388 = vmul.f32 %v384, 1.442695
    %v389 = vpow.pop %v388
    %v390 = vmul.f32 %v385, 1.442695
    %v391 = vpow.pop %v390
    %v392 = vmul.f32 %v386, 1.442695
    %v393 = vpow.pop %v392
    %v394 = vmul.f32 %v387, 1.442695
    %v395 = vpow.pop %v394
    %v396 = vsel %vm371, %v389, 0.0
    %397 = vadd.xlane.f32.xlu0 %v396
    %v398 = vpop.xlane.xlu0 %397
    %v399 = vsel %vm371, %v391, 0.0
    %400 = vadd.xlane.f32.xlu0 %v399
    %v401 = vpop.xlane.xlu0 %400
    %v402 = vsel %vm371, %v393, 0.0
    %403 = vadd.xlane.f32.xlu0 %v402
    %v404 = vpop.xlane.xlu0 %403
    %v405 = vsel %vm371, %v395, 0.0
    %406 = vadd.xlane.f32.xlu0 %v405
    %v407 = vpop.xlane.xlu0 %406
    %v408 = vrcp.pop %v398
    %v409 = vrcp.pop %v401
    %v410 = vrcp.pop %v404
    %v411 = vrcp.pop %v407
    %v412 = vmul.f32 %v389, %v408
    %v413 = vmul.f32 %v391, %v409
    %v414 = vmul.f32 %v393, %v410
    %v415 = vmul.f32 %v395, %v411
    %v417 = vsel %vm371, %v412, 0
    %v420 = vsel %vm371, %v413, 0
    %v423 = vsel %vm371, %v414, 0
    %v426 = vsel %vm371, %v415, 0
    %428 = vmatpush.msra.mxu0 0.0
    %429 = vmatpush.msra.mxu0 0.0
    %430 = vmatpush.msra.mxu0 0.0
    %431 = vmatpush.msra.mxu0 0.0
    %432 = vmatpush.msra.mxu0 0.0
    %433 = vmatpush.msra.mxu0 0.0
    %434 = vmatpush.msra.mxu0 0.0
    %435 = vmatpush.msra.mxu0 0.0
    %436 = vmatpush.msra.mxu0 0.0
    %437 = vmatpush.msra.mxu0 0.0
    %438 = vmatpush.msra.mxu0 0.0
    %439 = vmatpush.msra.mxu0 0.0
    %440 = vmatpush.msra.mxu0 %v303
    %441 = vmatpush.msra.mxu0 %v301
    %442 = vmatpush.msra.mxu0 %v298
    %443 = vmatpush.msra.mxu0 %v296
    %444 = vmatmul.f32.gmra.mxu0 %v417
    %v445 = vpop.f32.mrf.mxu0
    %v446 = vadd.f32 0.0, %v445
    %447 = vmatmul.f32.gmra.mxu0 %v420
    %v448 = vpop.f32.mrf.mxu0
    %v449 = vadd.f32 0.0, %v448
    %450 = vmatmul.f32.gmra.mxu0 %v423
    %v451 = vpop.f32.mrf.mxu0
    %v452 = vadd.f32 0.0, %v451
    %453 = vmatmul.f32.gmra.mxu0 %v426
    %v454 = vpop.f32.mrf.mxu0
    %v455 = vadd.f32 0.0, %v454
    %456 = vdwg.mxu0
    %457 = vrot.lane.b32.xlu0 %v277, 112
    %v458 = vpop.permute.xlu0 %457
    %459 = vrot.lane.b32.xlu0 %v279, 112
    %v460 = vpop.permute.xlu0 %459
    %461 = vrot.lane.b32.xlu0 %v282, 112
    %v462 = vpop.permute.xlu0 %461
    %463 = vrot.lane.b32.xlu0 %v284, 112
    %v464 = vpop.permute.xlu0 %463
    %465 = vrot.lane.b32.xlu0 %v277, 48
    %v466 = vpop.permute.xlu0 %465
    %467 = vrot.lane.b32.xlu0 %v279, 48
    %v468 = vpop.permute.xlu0 %467
    %469 = vrot.lane.b32.xlu0 %v282, 48
    %v470 = vpop.permute.xlu0 %469
    %471 = vrot.lane.b32.xlu0 %v284, 48
    %v472 = vpop.permute.xlu0 %471
    %v473 = vsel %vm317, %v458, 0
    %v475 = vsel %vm317, %v460, 0
    %v477 = vsel %vm317, %v462, 0
    %v479 = vsel %vm317, %v464, 0
    %v481 = vsel %vm317, %v466, 0
    %v483 = vsel %vm317, %v468, 0
    %v485 = vsel %vm317, %v470, 0
    %v487 = vsel %vm317, %v472, 0
    %489 = vmatpush.xpose.msra.mxu0 0.0
    %490 = vmatpush.xpose.msra.mxu0 0.0
    %491 = vmatpush.xpose.msra.mxu0 0.0
    %492 = vmatpush.xpose.msra.mxu0 0.0
    %493 = vmatpush.xpose.msra.mxu0 0.0
    %494 = vmatpush.xpose.msra.mxu0 0.0
    %495 = vmatpush.xpose.msra.mxu0 0.0
    %496 = vmatpush.xpose.msra.mxu0 0.0
    %497 = vmatpush.xpose.msra.mxu0 0.0
    %498 = vmatpush.xpose.msra.mxu0 0.0
    %499 = vmatpush.xpose.msra.mxu0 0.0
    %500 = vmatpush.xpose.msra.mxu0 0.0
    %501 = vmatpush.xpose.msra.mxu0 %v487
    %502 = vmatpush.xpose.msra.mxu0 %v485
    %503 = vmatpush.xpose.msra.mxu0 %v483
    %504 = vmatpush.xpose.msra.mxu0 %v481
    %505 = vmatmul.f32.gmra.mxu0 %v473
    %v506 = vpop.f32.mrf.mxu0
    %v507 = vadd.f32 0.0, %v506
    %508 = vmatmul.f32.gmra.mxu0 %v475
    %v509 = vpop.f32.mrf.mxu0
    %v510 = vadd.f32 0.0, %v509
    %511 = vmatmul.f32.gmra.mxu0 %v477
    %v512 = vpop.f32.mrf.mxu0
    %v513 = vadd.f32 0.0, %v512
    %514 = vmatmul.f32.gmra.mxu0 %v479
    %v515 = vpop.f32.mrf.mxu0
    %v516 = vadd.f32 0.0, %v515
    %517 = vdwg.mxu0
    %v518 = vmul.f32 %v507, 0.25
    %v519 = vmul.f32 %v510, 0.25
    %v520 = vmul.f32 %v513, 0.25
    %v521 = vmul.f32 %v516, 0.25
    %v522 = vadd.f32 %v518, %v122
    %v523 = vadd.f32 %v519, %v123
    %v524 = vadd.f32 %v520, %v124
    %v525 = vadd.f32 %v521, %v125
    %v526 = vsel %vm371, %v522, -inf
    %527 = vmax.xlane.f32.xlu0 %v526
    %v528 = vpop.xlane.xlu0 %527
    %v529 = vsel %vm371, %v523, -inf
    %530 = vmax.xlane.f32.xlu0 %v529
    %v531 = vpop.xlane.xlu0 %530
    %v532 = vsel %vm371, %v524, -inf
    %533 = vmax.xlane.f32.xlu0 %v532
    %v534 = vpop.xlane.xlu0 %533
    %v535 = vsel %vm371, %v525, -inf
    %536 = vmax.xlane.f32.xlu0 %v535
    %v537 = vpop.xlane.xlu0 %536
    %v538 = vsub.f32 %v522, %v528
    %v539 = vsub.f32 %v523, %v531
    %v540 = vsub.f32 %v524, %v534
    %v541 = vsub.f32 %v525, %v537
    %v542 = vmul.f32 %v538, 1.442695
    %v543 = vpow.pop %v542
    %v544 = vmul.f32 %v539, 1.442695
    %v545 = vpow.pop %v544
    %v546 = vmul.f32 %v540, 1.442695
    %v547 = vpow.pop %v546
    %v548 = vmul.f32 %v541, 1.442695
    %v549 = vpow.pop %v548
    %v550 = vsel %vm371, %v543, 0.0
    %551 = vadd.xlane.f32.xlu0 %v550
    %v552 = vpop.xlane.xlu0 %551
    %v553 = vsel %vm371, %v545, 0.0
    %554 = vadd.xlane.f32.xlu0 %v553
    %v555 = vpop.xlane.xlu0 %554
    %v556 = vsel %vm371, %v547, 0.0
    %557 = vadd.xlane.f32.xlu0 %v556
    %v558 = vpop.xlane.xlu0 %557
    %v559 = vsel %vm371, %v549, 0.0
    %560 = vadd.xlane.f32.xlu0 %v559
    %v561 = vpop.xlane.xlu0 %560
    %v562 = vrcp.pop %v552
    %v563 = vrcp.pop %v555
    %v564 = vrcp.pop %v558
    %v565 = vrcp.pop %v561
    %v566 = vmul.f32 %v543, %v562
    %v567 = vmul.f32 %v545, %v563
    %v568 = vmul.f32 %v547, %v564
    %v569 = vmul.f32 %v549, %v565
    %574 = vrot.lane.b32.xlu0 %v296, 112
    %v575 = vpop.permute.xlu0 %574
    %576 = vrot.lane.b32.xlu0 %v298, 112
    %v577 = vpop.permute.xlu0 %576
    %578 = vrot.lane.b32.xlu0 %v301, 112
    %v579 = vpop.permute.xlu0 %578
    %580 = vrot.lane.b32.xlu0 %v303, 112
    %v581 = vpop.permute.xlu0 %580
    %v587 = vsel %vm371, %v566, 0
    %v590 = vsel %vm371, %v567, 0
    %v593 = vsel %vm371, %v568, 0
    %v596 = vsel %vm371, %v569, 0
    %598 = vmatpush.msra.mxu0 0.0
    %599 = vmatpush.msra.mxu0 0.0
    %600 = vmatpush.msra.mxu0 0.0
    %601 = vmatpush.msra.mxu0 0.0
    %602 = vmatpush.msra.mxu0 0.0
    %603 = vmatpush.msra.mxu0 0.0
    %604 = vmatpush.msra.mxu0 0.0
    %605 = vmatpush.msra.mxu0 0.0
    %606 = vmatpush.msra.mxu0 0.0
    %607 = vmatpush.msra.mxu0 0.0
    %608 = vmatpush.msra.mxu0 0.0
    %609 = vmatpush.msra.mxu0 0.0
    %610 = vmatpush.msra.mxu0 %v581
    %611 = vmatpush.msra.mxu0 %v579
    %612 = vmatpush.msra.mxu0 %v577
    %613 = vmatpush.msra.mxu0 %v575
    %614 = vmatmul.f32.gmra.mxu0 %v587
    %v615 = vpop.f32.mrf.mxu0
    %v616 = vadd.f32 0.0, %v615
    %617 = vmatmul.f32.gmra.mxu0 %v590
    %v618 = vpop.f32.mrf.mxu0
    %v619 = vadd.f32 0.0, %v618
    %620 = vmatmul.f32.gmra.mxu0 %v593
    %v621 = vpop.f32.mrf.mxu0
    %v622 = vadd.f32 0.0, %v621
    %623 = vmatmul.f32.gmra.mxu0 %v596
    %v624 = vpop.f32.mrf.mxu0
    %v625 = vadd.f32 0.0, %v624
    %626 = vdwg.mxu0
    %627 = vrot.lane.b32.xlu0 %v277, 96
    %v628 = vpop.permute.xlu0 %627
    %629 = vrot.lane.b32.xlu0 %v279, 96
    %v630 = vpop.permute.xlu0 %629
    %631 = vrot.lane.b32.xlu0 %v282, 96
    %v632 = vpop.permute.xlu0 %631
    %633 = vrot.lane.b32.xlu0 %v284, 96
    %v634 = vpop.permute.xlu0 %633
    %635 = vrot.lane.b32.xlu0 %v277, 32
    %v636 = vpop.permute.xlu0 %635
    %637 = vrot.lane.b32.xlu0 %v279, 32
    %v638 = vpop.permute.xlu0 %637
    %639 = vrot.lane.b32.xlu0 %v282, 32
    %v640 = vpop.permute.xlu0 %639
    %641 = vrot.lane.b32.xlu0 %v284, 32
    %v642 = vpop.permute.xlu0 %641
    %v643 = vsel %vm317, %v628, 0
    %v645 = vsel %vm317, %v630, 0
    %v647 = vsel %vm317, %v632, 0
    %v649 = vsel %vm317, %v634, 0
    %v651 = vsel %vm317, %v636, 0
    %v653 = vsel %vm317, %v638, 0
    %v655 = vsel %vm317, %v640, 0
    %v657 = vsel %vm317, %v642, 0
    %659 = vmatpush.xpose.msra.mxu0 0.0
    %660 = vmatpush.xpose.msra.mxu0 0.0
    %661 = vmatpush.xpose.msra.mxu0 0.0
    %662 = vmatpush.xpose.msra.mxu0 0.0
    %663 = vmatpush.xpose.msra.mxu0 0.0
    %664 = vmatpush.xpose.msra.mxu0 0.0
    %665 = vmatpush.xpose.msra.mxu0 0.0
    %666 = vmatpush.xpose.msra.mxu0 0.0
    %667 = vmatpush.xpose.msra.mxu0 0.0
    %668 = vmatpush.xpose.msra.mxu0 0.0
    %669 = vmatpush.xpose.msra.mxu0 0.0
    %670 = vmatpush.xpose.msra.mxu0 0.0
    %671 = vmatpush.xpose.msra.mxu0 %v657
    %672 = vmatpush.xpose.msra.mxu0 %v655
    %673 = vmatpush.xpose.msra.mxu0 %v653
    %674 = vmatpush.xpose.msra.mxu0 %v651
    %675 = vmatmul.f32.gmra.mxu0 %v643
    %v676 = vpop.f32.mrf.mxu0
    %v677 = vadd.f32 0.0, %v676
    %678 = vmatmul.f32.gmra.mxu0 %v645
    %v679 = vpop.f32.mrf.mxu0
    %v680 = vadd.f32 0.0, %v679
    %681 = vmatmul.f32.gmra.mxu0 %v647
    %v682 = vpop.f32.mrf.mxu0
    %v683 = vadd.f32 0.0, %v682
    %684 = vmatmul.f32.gmra.mxu0 %v649
    %v685 = vpop.f32.mrf.mxu0
    %v686 = vadd.f32 0.0, %v685
    %687 = vdwg.mxu0
    %v688 = vmul.f32 %v677, 0.25
    %v689 = vmul.f32 %v680, 0.25
    %v690 = vmul.f32 %v683, 0.25
    %v691 = vmul.f32 %v686, 0.25
    %v692 = vadd.f32 %v688, %v122
    %v693 = vadd.f32 %v689, %v123
    %v694 = vadd.f32 %v690, %v124
    %v695 = vadd.f32 %v691, %v125
    %v696 = vsel %vm371, %v692, -inf
    %697 = vmax.xlane.f32.xlu0 %v696
    %v698 = vpop.xlane.xlu0 %697
    %v699 = vsel %vm371, %v693, -inf
    %700 = vmax.xlane.f32.xlu0 %v699
    %v701 = vpop.xlane.xlu0 %700
    %v702 = vsel %vm371, %v694, -inf
    %703 = vmax.xlane.f32.xlu0 %v702
    %v704 = vpop.xlane.xlu0 %703
    %v705 = vsel %vm371, %v695, -inf
    %706 = vmax.xlane.f32.xlu0 %v705
    %v707 = vpop.xlane.xlu0 %706
    %v708 = vsub.f32 %v692, %v698
    %v709 = vsub.f32 %v693, %v701
    %v710 = vsub.f32 %v694, %v704
    %v711 = vsub.f32 %v695, %v707
    %v712 = vmul.f32 %v708, 1.442695
    %v713 = vpow.pop %v712
    %v714 = vmul.f32 %v709, 1.442695
    %v715 = vpow.pop %v714
    %v716 = vmul.f32 %v710, 1.442695
    %v717 = vpow.pop %v716
    %v718 = vmul.f32 %v711, 1.442695
    %v719 = vpow.pop %v718
    %v720 = vsel %vm371, %v713, 0.0
    %721 = vadd.xlane.f32.xlu0 %v720
    %v722 = vpop.xlane.xlu0 %721
    %v723 = vsel %vm371, %v715, 0.0
    %724 = vadd.xlane.f32.xlu0 %v723
    %v725 = vpop.xlane.xlu0 %724
    %v726 = vsel %vm371, %v717, 0.0
    %727 = vadd.xlane.f32.xlu0 %v726
    %v728 = vpop.xlane.xlu0 %727
    %v729 = vsel %vm371, %v719, 0.0
    %730 = vadd.xlane.f32.xlu0 %v729
    %v731 = vpop.xlane.xlu0 %730
    %v732 = vrcp.pop %v722
    %v733 = vrcp.pop %v725
    %v734 = vrcp.pop %v728
    %v735 = vrcp.pop %v731
    %v736 = vmul.f32 %v713, %v732
    %v737 = vmul.f32 %v715, %v733
    %v738 = vmul.f32 %v717, %v734
    %v739 = vmul.f32 %v719, %v735
    %740 = vrot.lane.b32.xlu0 %v296, 96
    %v741 = vpop.permute.xlu0 %740
    %742 = vrot.lane.b32.xlu0 %v298, 96
    %v743 = vpop.permute.xlu0 %742
    %744 = vrot.lane.b32.xlu0 %v301, 96
    %v745 = vpop.permute.xlu0 %744
    %746 = vrot.lane.b32.xlu0 %v303, 96
    %v747 = vpop.permute.xlu0 %746
    %v753 = vsel %vm371, %v736, 0
    %v756 = vsel %vm371, %v737, 0
    %v759 = vsel %vm371, %v738, 0
    %v762 = vsel %vm371, %v739, 0
    %764 = vmatpush.msra.mxu0 0.0
    %765 = vmatpush.msra.mxu0 0.0
    %766 = vmatpush.msra.mxu0 0.0
    %767 = vmatpush.msra.mxu0 0.0
    %768 = vmatpush.msra.mxu0 0.0
    %769 = vmatpush.msra.mxu0 0.0
    %770 = vmatpush.msra.mxu0 0.0
    %771 = vmatpush.msra.mxu0 0.0
    %772 = vmatpush.msra.mxu0 0.0
    %773 = vmatpush.msra.mxu0 0.0
    %774 = vmatpush.msra.mxu0 0.0
    %775 = vmatpush.msra.mxu0 0.0
    %776 = vmatpush.msra.mxu0 %v747
    %777 = vmatpush.msra.mxu0 %v745
    %778 = vmatpush.msra.mxu0 %v743
    %779 = vmatpush.msra.mxu0 %v741
    %780 = vmatmul.f32.gmra.mxu0 %v753
    %v781 = vpop.f32.mrf.mxu0
    %v782 = vadd.f32 0.0, %v781
    %783 = vmatmul.f32.gmra.mxu0 %v756
    %v784 = vpop.f32.mrf.mxu0
    %v785 = vadd.f32 0.0, %v784
    %786 = vmatmul.f32.gmra.mxu0 %v759
    %v787 = vpop.f32.mrf.mxu0
    %v788 = vadd.f32 0.0, %v787
    %789 = vmatmul.f32.gmra.mxu0 %v762
    %v790 = vpop.f32.mrf.mxu0
    %v791 = vadd.f32 0.0, %v790
    %792 = vdwg.mxu0
    %793 = vrot.lane.b32.xlu0 %v277, 80
    %v794 = vpop.permute.xlu0 %793
    %795 = vrot.lane.b32.xlu0 %v279, 80
    %v796 = vpop.permute.xlu0 %795
    %797 = vrot.lane.b32.xlu0 %v282, 80
    %v798 = vpop.permute.xlu0 %797
    %799 = vrot.lane.b32.xlu0 %v284, 80
    %v800 = vpop.permute.xlu0 %799
    %801 = vrot.lane.b32.xlu0 %v277, 16
    %v802 = vpop.permute.xlu0 %801
    %803 = vrot.lane.b32.xlu0 %v279, 16
    %v804 = vpop.permute.xlu0 %803
    %805 = vrot.lane.b32.xlu0 %v282, 16
    %v806 = vpop.permute.xlu0 %805
    %807 = vrot.lane.b32.xlu0 %v284, 16
    %v808 = vpop.permute.xlu0 %807
    %v809 = vsel %vm317, %v794, 0
    %v811 = vsel %vm317, %v796, 0
    %v813 = vsel %vm317, %v798, 0
    %v815 = vsel %vm317, %v800, 0
    %v817 = vsel %vm317, %v802, 0
    %v819 = vsel %vm317, %v804, 0
    %v821 = vsel %vm317, %v806, 0
    %v823 = vsel %vm317, %v808, 0
    %825 = vmatpush.xpose.msra.mxu0 0.0
    %826 = vmatpush.xpose.msra.mxu0 0.0
    %827 = vmatpush.xpose.msra.mxu0 0.0
    %828 = vmatpush.xpose.msra.mxu0 0.0
    %829 = vmatpush.xpose.msra.mxu0 0.0
    %830 = vmatpush.xpose.msra.mxu0 0.0
    %831 = vmatpush.xpose.msra.mxu0 0.0
    %832 = vmatpush.xpose.msra.mxu0 0.0
    %833 = vmatpush.xpose.msra.mxu0 0.0
    %834 = vmatpush.xpose.msra.mxu0 0.0
    %835 = vmatpush.xpose.msra.mxu0 0.0
    %836 = vmatpush.xpose.msra.mxu0 0.0
    %837 = vmatpush.xpose.msra.mxu0 %v823
    %838 = vmatpush.xpose.msra.mxu0 %v821
    %839 = vmatpush.xpose.msra.mxu0 %v819
    %840 = vmatpush.xpose.msra.mxu0 %v817
    %841 = vmatmul.f32.gmra.mxu0 %v809
    %v842 = vpop.f32.mrf.mxu0
    %v843 = vadd.f32 0.0, %v842
    %844 = vmatmul.f32.gmra.mxu0 %v811
    %v845 = vpop.f32.mrf.mxu0
    %v846 = vadd.f32 0.0, %v845
    %847 = vmatmul.f32.gmra.mxu0 %v813
    %v848 = vpop.f32.mrf.mxu0
    %v849 = vadd.f32 0.0, %v848
    %850 = vmatmul.f32.gmra.mxu0 %v815
    %v851 = vpop.f32.mrf.mxu0
    %v852 = vadd.f32 0.0, %v851
    %853 = vdwg.mxu0
    %v854 = vmul.f32 %v843, 0.25
    %v855 = vmul.f32 %v846, 0.25
    %v856 = vmul.f32 %v849, 0.25
    %v857 = vmul.f32 %v852, 0.25
    %v858 = vadd.f32 %v854, %v122
    %v859 = vadd.f32 %v855, %v123
    %v860 = vadd.f32 %v856, %v124
    %v861 = vadd.f32 %v857, %v125
    %v862 = vsel %vm371, %v858, -inf
    %863 = vmax.xlane.f32.xlu0 %v862
    %v864 = vpop.xlane.xlu0 %863
    %v865 = vsel %vm371, %v859, -inf
    %866 = vmax.xlane.f32.xlu0 %v865
    %v867 = vpop.xlane.xlu0 %866
    %v868 = vsel %vm371, %v860, -inf
    %869 = vmax.xlane.f32.xlu0 %v868
    %v870 = vpop.xlane.xlu0 %869
    %v871 = vsel %vm371, %v861, -inf
    %872 = vmax.xlane.f32.xlu0 %v871
    %v873 = vpop.xlane.xlu0 %872
    %v874 = vsub.f32 %v858, %v864
    %v875 = vsub.f32 %v859, %v867
    %v876 = vsub.f32 %v860, %v870
    %v877 = vsub.f32 %v861, %v873
    %v878 = vmul.f32 %v874, 1.442695
    %v879 = vpow.pop %v878
    %v880 = vmul.f32 %v875, 1.442695
    %v881 = vpow.pop %v880
    %v882 = vmul.f32 %v876, 1.442695
    %v883 = vpow.pop %v882
    %v884 = vmul.f32 %v877, 1.442695
    %v885 = vpow.pop %v884
    %v886 = vsel %vm371, %v879, 0.0
    %887 = vadd.xlane.f32.xlu0 %v886
    %v888 = vpop.xlane.xlu0 %887
    %v889 = vsel %vm371, %v881, 0.0
    %890 = vadd.xlane.f32.xlu0 %v889
    %v891 = vpop.xlane.xlu0 %890
    %v892 = vsel %vm371, %v883, 0.0
    %893 = vadd.xlane.f32.xlu0 %v892
    %v894 = vpop.xlane.xlu0 %893
    %v895 = vsel %vm371, %v885, 0.0
    %896 = vadd.xlane.f32.xlu0 %v895
    %v897 = vpop.xlane.xlu0 %896
    %v898 = vrcp.pop %v888
    %v899 = vrcp.pop %v891
    %v900 = vrcp.pop %v894
    %v901 = vrcp.pop %v897
    %v902 = vmul.f32 %v879, %v898
    %v903 = vmul.f32 %v881, %v899
    %v904 = vmul.f32 %v883, %v900
    %v905 = vmul.f32 %v885, %v901
    %906 = vrot.lane.b32.xlu0 %v296, 80
    %v907 = vpop.permute.xlu0 %906
    %908 = vrot.lane.b32.xlu0 %v298, 80
    %v909 = vpop.permute.xlu0 %908
    %910 = vrot.lane.b32.xlu0 %v301, 80
    %v911 = vpop.permute.xlu0 %910
    %912 = vrot.lane.b32.xlu0 %v303, 80
    %v913 = vpop.permute.xlu0 %912
    %v919 = vsel %vm371, %v902, 0
    %v922 = vsel %vm371, %v903, 0
    %v925 = vsel %vm371, %v904, 0
    %v928 = vsel %vm371, %v905, 0
    %930 = vmatpush.msra.mxu0 0.0
    %931 = vmatpush.msra.mxu0 0.0
    %932 = vmatpush.msra.mxu0 0.0
    %933 = vmatpush.msra.mxu0 0.0
    %934 = vmatpush.msra.mxu0 0.0
    %935 = vmatpush.msra.mxu0 0.0
    %936 = vmatpush.msra.mxu0 0.0
    %937 = vmatpush.msra.mxu0 0.0
    %938 = vmatpush.msra.mxu0 0.0
    %939 = vmatpush.msra.mxu0 0.0
    %940 = vmatpush.msra.mxu0 0.0
    %941 = vmatpush.msra.mxu0 0.0
    %942 = vmatpush.msra.mxu0 %v913
    %943 = vmatpush.msra.mxu0 %v911
    %944 = vmatpush.msra.mxu0 %v909
    %945 = vmatpush.msra.mxu0 %v907
    %946 = vmatmul.f32.gmra.mxu0 %v919
    %v947 = vpop.f32.mrf.mxu0
    %v948 = vadd.f32 0.0, %v947
    %949 = vmatmul.f32.gmra.mxu0 %v922
    %v950 = vpop.f32.mrf.mxu0
    %v951 = vadd.f32 0.0, %v950
    %952 = vmatmul.f32.gmra.mxu0 %v925
    %v953 = vpop.f32.mrf.mxu0
    %v954 = vadd.f32 0.0, %v953
    %955 = vmatmul.f32.gmra.mxu0 %v928
    %v956 = vpop.f32.mrf.mxu0
    %v957 = vadd.f32 0.0, %v956
    %958 = vdwg.mxu0
    %963 = vrot.lane.b32.xlu0 %v616, 16
    %v964 = vpop.permute.xlu0 %963
    %965 = vrot.lane.b32.xlu0 %v619, 16
    %v966 = vpop.permute.xlu0 %965
    %967 = vrot.lane.b32.xlu0 %v622, 16
    %v968 = vpop.permute.xlu0 %967
    %969 = vrot.lane.b32.xlu0 %v625, 16
    %v970 = vpop.permute.xlu0 %969
    %979 = vrot.lane.b32.xlu0 %v782, 32
    %v980 = vpop.permute.xlu0 %979
    %981 = vrot.lane.b32.xlu0 %v785, 32
    %v982 = vpop.permute.xlu0 %981
    %983 = vrot.lane.b32.xlu0 %v788, 32
    %v984 = vpop.permute.xlu0 %983
    %985 = vrot.lane.b32.xlu0 %v791, 32
    %v986 = vpop.permute.xlu0 %985
    %995 = vrot.lane.b32.xlu0 %v948, 48
    %v996 = vpop.permute.xlu0 %995
    %997 = vrot.lane.b32.xlu0 %v951, 48
    %v998 = vpop.permute.xlu0 %997
    %999 = vrot.lane.b32.xlu0 %v954, 48
    %v1000 = vpop.permute.xlu0 %999
    %1001 = vrot.lane.b32.xlu0 %v957, 48
    %v1002 = vpop.permute.xlu0 %1001
    %v1007 = vsel %vm317, %v446, %v964
    %v1008 = vsel %vm317, %v449, %v966
    %v1009 = vsel %vm317, %v452, %v968
    %v1010 = vsel %vm317, %v455, %v970
    %v1011 = vsel %vm371, %v1007, %v980
    %v1012 = vsel %vm371, %v1008, %v982
    %v1013 = vsel %vm371, %v1009, %v984
    %v1014 = vsel %vm371, %v1010, %v986
    %vm1015 = vcmask 392192
    %v1016 = vsel %vm1015, %v1011, %v996
    %v1017 = vsel %vm1015, %v1012, %v998
    %v1018 = vsel %vm1015, %v1013, %v1000
    %v1019 = vsel %vm1015, %v1014, %v1002
    %v1020 = vpack.c.bf16 %v1017, %v1016
    %v1021 = vpack.c.bf16 %v1019, %v1018
    %v1022 = vld [vmem:[%s9] sm:$0xf]
    %v1023 = vld [vmem:[%s9 + $0x4] sm:$0xf]
    %v1024 = vld [vmem:[%s9 + $0x8] sm:$0xf]
    %v1025 = vld [vmem:[%s9 + $0xc] sm:$0xf]
    %v1026 = vld [vmem:[%s9 + $0x10] sm:$0xf]
    %v1027 = vld [vmem:[%s9 + $0x14] sm:$0xf]
    %v1028 = vld [vmem:[%s9 + $0x18] sm:$0xf]
    %v1029 = vld [vmem:[%s9 + $0x1c] sm:$0xf]
    %v1038 = vunpack.c.l.b16 %v1022
    %v1039 = vunpack.c.l.b16 %v1023
    %v1040 = vunpack.c.l.b16 %v1024
    %v1041 = vunpack.c.l.b16 %v1025
    %v1042 = vunpack.c.l.b16 %v1026
    %v1043 = vunpack.c.l.b16 %v1027
    %v1044 = vunpack.c.l.b16 %v1028
    %v1045 = vunpack.c.l.b16 %v1029
    %v1046 = vpack.c.b16 %v1039, %v1038
    %v1047 = vpack.c.b16 %v1041, %v1040
    %v1048 = vpack.c.b16 %v1043, %v1042
    %v1049 = vpack.c.b16 %v1045, %v1044
    %v1055 = vsel %vm107, %v1020, 0
    %v1058 = vsel %vm107, %v1021, 0
    %1060 = vmatpush.bf16.msra.mxu0 0
    %1061 = vmatpush.bf16.msra.mxu0 0
    %1062 = vmatpush.bf16.msra.mxu0 0
    %1063 = vmatpush.bf16.msra.mxu0 0
    %1064 = vmatpush.bf16.msra.mxu0 %v1049
    %1065 = vmatpush.bf16.msra.mxu0 %v1048
    %1066 = vmatpush.bf16.msra.mxu0 %v1047
    %1067 = vmatpush.bf16.msra.mxu0 %v1046
    %1068 = vmatmul.bf16.gmra.mxu0 %v1055
    %v1069 = vpop.f32.mrf.mxu0
    %v1070 = vadd.f32 0.0, %v1069
    %v1071 = vpop.f32.mrf.mxu0
    %v1072 = vadd.f32 0.0, %v1071
    %1073 = vmatmul.bf16.gmra.mxu0 %v1058
    %v1074 = vpop.f32.mrf.mxu0
    %v1075 = vadd.f32 0.0, %v1074
    %v1076 = vpop.f32.mrf.mxu0
    %v1077 = vadd.f32 0.0, %v1076
    %1078 = vdwg.mxu0
    %v1079 = vadd.f32 %v118, %v1070
    %v1080 = vadd.f32 %v119, %v1072
    %v1081 = vadd.f32 %v120, %v1075
    %v1082 = vadd.f32 %v121, %v1077
    %v1083 = vld [vmem:[%s10] sm:$0x1]
    %v1084 = vmul.f32 %v1079, %v1079
    %v1085 = vmul.f32 %v1080, %v1080
    %v1086 = vmul.f32 %v1081, %v1081
    %v1087 = vmul.f32 %v1082, %v1082
    %v1088 = vsel %vm107, %v1084, 0.0
    %1089 = vadd.xlane.f32.xlu0 %v1088
    %v1090 = vpop.xlane.xlu0 %1089
    %v1091 = vsel %vm107, %v1085, 0.0
    %1092 = vadd.xlane.f32.xlu0 %v1091
    %v1093 = vpop.xlane.xlu0 %1092
    %v1094 = vsel %vm107, %v1086, 0.0
    %1095 = vadd.xlane.f32.xlu0 %v1094
    %v1096 = vpop.xlane.xlu0 %1095
    %v1097 = vsel %vm107, %v1087, 0.0
    %1098 = vadd.xlane.f32.xlu0 %v1097
    %v1099 = vpop.xlane.xlu0 %1098
    %v1100 = vmul.f32 %v1090, %v151
    %v1101 = vmul.f32 %v1093, %v151
    %v1102 = vmul.f32 %v1096, %v151
    %v1103 = vmul.f32 %v1099, %v151
    %v1104 = vadd.f32 %v1100, 1e-06
    %v1105 = vadd.f32 %v1101, 1e-06
    %v1106 = vadd.f32 %v1102, 1e-06
    %v1107 = vadd.f32 %v1103, 1e-06
    %v1108 = vrsqrt.pop %v1104
    %v1109 = vmul.f32 %v1108, %v1104
    %v1110 = vmul.f32 %v1109, %v1108
    %v1111 = vmul.f32 0.5, %v1110
    %v1112 = vsub.f32 1.5, %v1111
    %v1113 = vmul.f32 %v1108, %v1112
    %vm1114 = vweird.f32 %v1104
    %vm1115 = vweird.f32 %v1108
    %vm1116 = vmor %vm1114, %vm1115
    %v1117 = vsel %vm1116, %v1108, %v1113
    %v1118 = vrsqrt.pop %v1105
    %v1119 = vmul.f32 %v1118, %v1105
    %v1120 = vmul.f32 %v1119, %v1118
    %v1121 = vmul.f32 0.5, %v1120
    %v1122 = vsub.f32 1.5, %v1121
    %v1123 = vmul.f32 %v1118, %v1122
    %vm1124 = vweird.f32 %v1105
    %vm1125 = vweird.f32 %v1118
    %vm1126 = vmor %vm1124, %vm1125
    %v1127 = vsel %vm1126, %v1118, %v1123
    %v1128 = vrsqrt.pop %v1106
    %v1129 = vmul.f32 %v1128, %v1106
    %v1130 = vmul.f32 %v1129, %v1128
    %v1131 = vmul.f32 0.5, %v1130
    %v1132 = vsub.f32 1.5, %v1131
    %v1133 = vmul.f32 %v1128, %v1132
    %vm1134 = vweird.f32 %v1106
    %vm1135 = vweird.f32 %v1128
    %vm1136 = vmor %vm1134, %vm1135
    %v1137 = vsel %vm1136, %v1128, %v1133
    %v1138 = vrsqrt.pop %v1107
    %v1139 = vmul.f32 %v1138, %v1107
    %v1140 = vmul.f32 %v1139, %v1138
    %v1141 = vmul.f32 0.5, %v1140
    %v1142 = vsub.f32 1.5, %v1141
    %v1143 = vmul.f32 %v1138, %v1142
    %vm1144 = vweird.f32 %v1107
    %vm1145 = vweird.f32 %v1138
    %vm1146 = vmor %vm1144, %vm1145
    %v1147 = vsel %vm1146, %v1138, %v1143
    %v1148 = vmul.f32 %v1079, %v1117
    %v1149 = vmul.f32 %v1080, %v1127
    %v1150 = vmul.f32 %v1081, %v1137
    %v1151 = vmul.f32 %v1082, %v1147
    %v1153 = vperm.slane %v1083, 0
    %v1155 = vmul.f32 %v1148, %v1153
    %v1156 = vmul.f32 %v1149, %v1153
    %v1157 = vmul.f32 %v1150, %v1153
    %v1158 = vmul.f32 %v1151, %v1153
    %v1159 = vld [vmem:[%s11] sm:$0xff]
    %v1160 = vld [vmem:[%s11 + $0x8] sm:$0xff]
    %v1161 = vld [vmem:[%s11 + $0x10] sm:$0xff]
    %v1162 = vld [vmem:[%s11 + $0x18] sm:$0xff]
    %v1163 = vld [vmem:[%s11 + $0x20] sm:$0xff]
    %v1164 = vld [vmem:[%s11 + $0x28] sm:$0xff]
    %v1165 = vld [vmem:[%s11 + $0x30] sm:$0xff]
    %v1166 = vld [vmem:[%s11 + $0x38] sm:$0xff]
    %v1168 = vsel %vm107, %v1155, 0
    %v1171 = vsel %vm107, %v1156, 0
    %v1174 = vsel %vm107, %v1157, 0
    %v1177 = vsel %vm107, %v1158, 0
    %1179 = vmatpush.msra.mxu0 0.0
    %1180 = vmatpush.msra.mxu0 0.0
    %1181 = vmatpush.msra.mxu0 0.0
    %1182 = vmatpush.msra.mxu0 0.0
    %1183 = vmatpush.msra.mxu0 0.0
    %1184 = vmatpush.msra.mxu0 0.0
    %1185 = vmatpush.msra.mxu0 0.0
    %1186 = vmatpush.msra.mxu0 0.0
    %1187 = vmatpush.msra.mxu0 %v1166
    %1188 = vmatpush.msra.mxu0 %v1165
    %1189 = vmatpush.msra.mxu0 %v1164
    %1190 = vmatpush.msra.mxu0 %v1163
    %1191 = vmatpush.msra.mxu0 %v1162
    %1192 = vmatpush.msra.mxu0 %v1161
    %1193 = vmatpush.msra.mxu0 %v1160
    %1194 = vmatpush.msra.mxu0 %v1159
    %1195 = vmatmul.f32.gmra.mxu0 %v1168
    %v1196 = vpop.f32.mrf.mxu0
    %v1197 = vadd.f32 0.0, %v1196
    %1198 = vmatmul.f32.gmra.mxu0 %v1171
    %v1199 = vpop.f32.mrf.mxu0
    %v1200 = vadd.f32 0.0, %v1199
    %1201 = vmatmul.f32.gmra.mxu0 %v1174
    %v1202 = vpop.f32.mrf.mxu0
    %v1203 = vadd.f32 0.0, %v1202
    %1204 = vmatmul.f32.gmra.mxu0 %v1177
    %v1205 = vpop.f32.mrf.mxu0
    %v1206 = vadd.f32 0.0, %v1205
    %1207 = vdwg.mxu0
    %vm1208 = vcmask 31744
    %v1209 = vsel %vm1208, %v1197, -inf
    %1210 = vmax.xlane.f32.xlu0 %v1209
    %v1211 = vpop.xlane.xlu0 %1210
    %v1212 = vsel %vm1208, %v1200, -inf
    %1213 = vmax.xlane.f32.xlu0 %v1212
    %v1214 = vpop.xlane.xlu0 %1213
    %v1215 = vsel %vm1208, %v1203, -inf
    %1216 = vmax.xlane.f32.xlu0 %v1215
    %v1217 = vpop.xlane.xlu0 %1216
    %v1218 = vsel %vm1208, %v1206, -inf
    %1219 = vmax.xlane.f32.xlu0 %v1218
    %v1220 = vpop.xlane.xlu0 %1219
    %v1221 = vsub.f32 %v1197, %v1211
    %v1222 = vsub.f32 %v1200, %v1214
    %v1223 = vsub.f32 %v1203, %v1217
    %v1224 = vsub.f32 %v1206, %v1220
    %v1225 = vmul.f32 %v1221, 1.442695
    %v1226 = vpow.pop %v1225
    %v1227 = vmul.f32 %v1222, 1.442695
    %v1228 = vpow.pop %v1227
    %v1229 = vmul.f32 %v1223, 1.442695
    %v1230 = vpow.pop %v1229
    %v1231 = vmul.f32 %v1224, 1.442695
    %v1232 = vpow.pop %v1231
    %v1233 = vsel %vm1208, %v1226, 0.0
    %1234 = vadd.xlane.f32.xlu0 %v1233
    %v1235 = vpop.xlane.xlu0 %1234
    %v1236 = vsel %vm1208, %v1228, 0.0
    %1237 = vadd.xlane.f32.xlu0 %v1236
    %v1238 = vpop.xlane.xlu0 %1237
    %v1239 = vsel %vm1208, %v1230, 0.0
    %1240 = vadd.xlane.f32.xlu0 %v1239
    %v1241 = vpop.xlane.xlu0 %1240
    %v1242 = vsel %vm1208, %v1232, 0.0
    %1243 = vadd.xlane.f32.xlu0 %v1242
    %v1244 = vpop.xlane.xlu0 %1243
    %v1245 = vrcp.pop %v1235
    %v1246 = vrcp.pop %v1238
    %v1247 = vrcp.pop %v1241
    %v1248 = vrcp.pop %v1244
    %v1249 = vmul.f32 %v1226, %v1245
    %v1250 = vmul.f32 %v1228, %v1246
    %v1251 = vmul.f32 %v1230, %v1247
    %v1252 = vmul.f32 %v1232, %v1248
    %v1253 = vsel %vm1208, %v1249, -inf
    %1254 = vmax.xlane.f32.xlu0 %v1253
    %v1255 = vpop.xlane.xlu0 %1254
    %v1256 = vsel %vm1208, %v1250, -inf
    %1257 = vmax.xlane.f32.xlu0 %v1256
    %v1258 = vpop.xlane.xlu0 %1257
    %v1259 = vsel %vm1208, %v1251, -inf
    %1260 = vmax.xlane.f32.xlu0 %v1259
    %v1261 = vpop.xlane.xlu0 %1260
    %v1262 = vsel %vm1208, %v1252, -inf
    %1263 = vmax.xlane.f32.xlu0 %v1262
    %v1264 = vpop.xlane.xlu0 %1263
    %vm1265 = vcmp.ge.f32.partialorder %v1249, %v1255
    %vm1266 = vcmp.ge.f32.partialorder %v1250, %v1258
    %vm1267 = vcmp.ge.f32.partialorder %v1251, %v1261
    %vm1268 = vcmp.ge.f32.partialorder %v1252, %v1264
    %v1269 = vsel %vm1265, -1.0, %v1249
    %v1270 = vsel %vm1266, -1.0, %v1250
    %v1271 = vsel %vm1267, -1.0, %v1251
    %v1272 = vsel %vm1268, -1.0, %v1252
    %v1273 = vsel %vm1208, %v1269, -inf
    %1274 = vmax.xlane.f32.xlu0 %v1273
    %v1275 = vpop.xlane.xlu0 %1274
    %v1276 = vsel %vm1208, %v1270, -inf
    %1277 = vmax.xlane.f32.xlu0 %v1276
    %v1278 = vpop.xlane.xlu0 %1277
    %v1279 = vsel %vm1208, %v1271, -inf
    %1280 = vmax.xlane.f32.xlu0 %v1279
    %v1281 = vpop.xlane.xlu0 %1280
    %v1282 = vsel %vm1208, %v1272, -inf
    %1283 = vmax.xlane.f32.xlu0 %v1282
    %v1284 = vpop.xlane.xlu0 %1283
    %vm1285 = vcmp.ge.f32.partialorder %v1249, %v1275
    %vm1286 = vcmp.ge.f32.partialorder %v1250, %v1278
    %vm1287 = vcmp.ge.f32.partialorder %v1251, %v1281
    %vm1288 = vcmp.ge.f32.partialorder %v1252, %v1284
    %v1289 = vsel %vm1285, 1, 0
    %v1290 = vsel %vm1286, 1, 0
    %v1291 = vsel %vm1287, 1, 0
    %v1292 = vsel %vm1288, 1, 0
    %v1293 = vcvt.s32.f32 %v1289
    %v1294 = vcvt.s32.f32 %v1290
    %v1295 = vcvt.s32.f32 %v1291
    %v1296 = vcvt.s32.f32 %v1292
    %v1297 = vmul.f32 %v1249, %v1293
    %v1298 = vmul.f32 %v1250, %v1294
    %v1299 = vmul.f32 %v1251, %v1295
    %v1300 = vmul.f32 %v1252, %v1296
    %v1301 = vsel %vm1208, %v1297, 0.0
    %1302 = vadd.xlane.f32.xlu0 %v1301
    %v1303 = vpop.xlane.xlu0 %1302
    %v1304 = vsel %vm1208, %v1298, 0.0
    %1305 = vadd.xlane.f32.xlu0 %v1304
    %v1306 = vpop.xlane.xlu0 %1305
    %v1307 = vsel %vm1208, %v1299, 0.0
    %1308 = vadd.xlane.f32.xlu0 %v1307
    %v1309 = vpop.xlane.xlu0 %1308
    %v1310 = vsel %vm1208, %v1300, 0.0
    %1311 = vadd.xlane.f32.xlu0 %v1310
    %v1312 = vpop.xlane.xlu0 %1311
    %v1313 = vrcp.pop %v1303
    %v1314 = vrcp.pop %v1306
    %v1315 = vrcp.pop %v1309
    %v1316 = vrcp.pop %v1312
    %v1317 = vmul.f32 %v1297, %v1313
    %v1318 = vmul.f32 %v1298, %v1314
    %v1319 = vmul.f32 %v1299, %v1315
    %v1320 = vmul.f32 %v1300, %v1316
    %v1321 = vpack.c.bf16 %v1156, %v1155
    %v1322 = vpack.c.bf16 %v1158, %v1157
    %v1323 = vld [vmem:[%s12] sm:$0xff]
    %v1324 = vld [vmem:[%s12 + $0x8] sm:$0xff]
    %v1325 = vld [vmem:[%s12 + $0x10] sm:$0xff]
    %v1326 = vld [vmem:[%s12 + $0x18] sm:$0xff]
    %v1327 = vld [vmem:[%s12 + $0x20] sm:$0xff]
    %v1328 = vld [vmem:[%s12 + $0x28] sm:$0xff]
    %v1329 = vld [vmem:[%s12 + $0x30] sm:$0xff]
    %v1330 = vld [vmem:[%s12 + $0x38] sm:$0xff]
    %v1331 = vld [vmem:[%s12 + $0x40] sm:$0xff]
    %v1332 = vld [vmem:[%s12 + $0x48] sm:$0xff]
    %v1333 = vld [vmem:[%s12 + $0x50] sm:$0xff]
    %v1334 = vld [vmem:[%s12 + $0x58] sm:$0xff]
    %v1335 = vld [vmem:[%s12 + $0x60] sm:$0xff]
    %v1336 = vld [vmem:[%s12 + $0x68] sm:$0xff]
    %v1337 = vld [vmem:[%s12 + $0x70] sm:$0xff]
    %v1338 = vld [vmem:[%s12 + $0x78] sm:$0xff]
    %v1339 = vld [vmem:[%s12 + $0x80] sm:$0xff]
    %v1340 = vld [vmem:[%s12 + $0x88] sm:$0xff]
    %v1341 = vld [vmem:[%s12 + $0x90] sm:$0xff]
    %v1342 = vld [vmem:[%s12 + $0x98] sm:$0xff]
    %v1343 = vld [vmem:[%s12 + $0xa0] sm:$0xff]
    %v1344 = vld [vmem:[%s12 + $0xa8] sm:$0xff]
    %v1345 = vld [vmem:[%s12 + $0xb0] sm:$0xff]
    %v1346 = vld [vmem:[%s12 + $0xb8] sm:$0xff]
    %v1347 = vld [vmem:[%s12 + $0xc0] sm:$0xff]
    %v1348 = vld [vmem:[%s12 + $0xc8] sm:$0xff]
    %v1349 = vld [vmem:[%s12 + $0xd0] sm:$0xff]
    %v1350 = vld [vmem:[%s12 + $0xd8] sm:$0xff]
    %v1351 = vld [vmem:[%s12 + $0xe0] sm:$0xff]
    %v1352 = vld [vmem:[%s12 + $0xe8] sm:$0xff]
    %v1353 = vld [vmem:[%s12 + $0xf0] sm:$0xff]
    %v1354 = vld [vmem:[%s12 + $0xf8] sm:$0xff]
    %v1387 = vunpack.c.l.b16 %v1323
    %v1388 = vunpack.c.h.b16 %v1323
    %v1389 = vunpack.c.l.b16 %v1324
    %v1390 = vunpack.c.h.b16 %v1324
    %v1391 = vunpack.c.l.b16 %v1325
    %v1392 = vunpack.c.h.b16 %v1325
    %v1393 = vunpack.c.l.b16 %v1326
    %v1394 = vunpack.c.h.b16 %v1326
    %v1395 = vunpack.c.l.b16 %v1327
    %v1396 = vunpack.c.h.b16 %v1327
    %v1397 = vunpack.c.l.b16 %v1328
    %v1398 = vunpack.c.h.b16 %v1328
    %v1399 = vunpack.c.l.b16 %v1329
    %v1400 = vunpack.c.h.b16 %v1329
    %v1401 = vunpack.c.l.b16 %v1330
    %v1402 = vunpack.c.h.b16 %v1330
    %v1403 = vunpack.c.l.b16 %v1331
    %v1404 = vunpack.c.h.b16 %v1331
    %v1405 = vunpack.c.l.b16 %v1332
    %v1406 = vunpack.c.h.b16 %v1332
    %v1407 = vunpack.c.l.b16 %v1333
    %v1408 = vunpack.c.h.b16 %v1333
    %v1409 = vunpack.c.l.b16 %v1334
    %v1410 = vunpack.c.h.b16 %v1334
    %v1411 = vunpack.c.l.b16 %v1335
    %v1412 = vunpack.c.h.b16 %v1335
    %v1413 = vunpack.c.l.b16 %v1336
    %v1414 = vunpack.c.h.b16 %v1336
    %v1415 = vunpack.c.l.b16 %v1337
    %v1416 = vunpack.c.h.b16 %v1337
    %v1417 = vunpack.c.l.b16 %v1338
    %v1418 = vunpack.c.h.b16 %v1338
    %v1419 = vunpack.c.l.b16 %v1339
    %v1420 = vunpack.c.h.b16 %v1339
    %v1421 = vunpack.c.l.b16 %v1340
    %v1422 = vunpack.c.h.b16 %v1340
    %v1423 = vunpack.c.l.b16 %v1341
    %v1424 = vunpack.c.h.b16 %v1341
    %v1425 = vunpack.c.l.b16 %v1342
    %v1426 = vunpack.c.h.b16 %v1342
    %v1427 = vunpack.c.l.b16 %v1343
    %v1428 = vunpack.c.h.b16 %v1343
    %v1429 = vunpack.c.l.b16 %v1344
    %v1430 = vunpack.c.h.b16 %v1344
    %v1431 = vunpack.c.l.b16 %v1345
    %v1432 = vunpack.c.h.b16 %v1345
    %v1433 = vunpack.c.l.b16 %v1346
    %v1434 = vunpack.c.h.b16 %v1346
    %v1435 = vunpack.c.l.b16 %v1347
    %v1436 = vunpack.c.h.b16 %v1347
    %v1437 = vunpack.c.l.b16 %v1348
    %v1438 = vunpack.c.h.b16 %v1348
    %v1439 = vunpack.c.l.b16 %v1349
    %v1440 = vunpack.c.h.b16 %v1349
    %v1441 = vunpack.c.l.b16 %v1350
    %v1442 = vunpack.c.h.b16 %v1350
    %v1443 = vunpack.c.l.b16 %v1351
    %v1444 = vunpack.c.h.b16 %v1351
    %v1445 = vunpack.c.l.b16 %v1352
    %v1446 = vunpack.c.h.b16 %v1352
    %v1447 = vunpack.c.l.b16 %v1353
    %v1448 = vunpack.c.h.b16 %v1353
    %v1449 = vunpack.c.l.b16 %v1354
    %v1450 = vunpack.c.h.b16 %v1354
    %v1451 = vpack.c.b16 %v1395, %v1387
    %v1452 = vpack.c.b16 %v1396, %v1388
    %v1453 = vpack.c.b16 %v1397, %v1389
    %v1454 = vpack.c.b16 %v1398, %v1390
    %v1455 = vpack.c.b16 %v1399, %v1391
    %v1456 = vpack.c.b16 %v1400, %v1392
    %v1457 = vpack.c.b16 %v1401, %v1393
    %v1458 = vpack.c.b16 %v1402, %v1394
    %v1459 = vpack.c.b16 %v1411, %v1403
    %v1460 = vpack.c.b16 %v1412, %v1404
    %v1461 = vpack.c.b16 %v1413, %v1405
    %v1462 = vpack.c.b16 %v1414, %v1406
    %v1463 = vpack.c.b16 %v1415, %v1407
    %v1464 = vpack.c.b16 %v1416, %v1408
    %v1465 = vpack.c.b16 %v1417, %v1409
    %v1466 = vpack.c.b16 %v1418, %v1410
    %v1467 = vpack.c.b16 %v1427, %v1419
    %v1468 = vpack.c.b16 %v1428, %v1420
    %v1469 = vpack.c.b16 %v1429, %v1421
    %v1470 = vpack.c.b16 %v1430, %v1422
    %v1471 = vpack.c.b16 %v1431, %v1423
    %v1472 = vpack.c.b16 %v1432, %v1424
    %v1473 = vpack.c.b16 %v1433, %v1425
    %v1474 = vpack.c.b16 %v1434, %v1426
    %v1475 = vpack.c.b16 %v1443, %v1435
    %v1476 = vpack.c.b16 %v1444, %v1436
    %v1477 = vpack.c.b16 %v1445, %v1437
    %v1478 = vpack.c.b16 %v1446, %v1438
    %v1479 = vpack.c.b16 %v1447, %v1439
    %v1480 = vpack.c.b16 %v1448, %v1440
    %v1481 = vpack.c.b16 %v1449, %v1441
    %v1482 = vpack.c.b16 %v1450, %v1442
    %v1516 = vsel %vm107, %v1321, 0
    %v1519 = vsel %vm107, %v1322, 0
    %1521 = vmatpush.bf16.msra.mxu0 0
    %1522 = vmatpush.bf16.msra.mxu0 0
    %1523 = vmatpush.bf16.msra.mxu0 0
    %1524 = vmatpush.bf16.msra.mxu0 0
    %1525 = vmatpush.bf16.msra.mxu0 %v1475
    %1526 = vmatpush.bf16.msra.mxu0 %v1467
    %1527 = vmatpush.bf16.msra.mxu0 %v1459
    %1528 = vmatpush.bf16.msra.mxu0 %v1451
    %1529 = vmatmul.bf16.gmra.mxu0 %v1516
    %v1530 = vpop.f32.mrf.mxu0
    %v1531 = vadd.f32 0.0, %v1530
    %v1532 = vpop.f32.mrf.mxu0
    %v1533 = vadd.f32 0.0, %v1532
    %1534 = vmatmul.bf16.gmra.mxu0 %v1519
    %v1535 = vpop.f32.mrf.mxu0
    %v1536 = vadd.f32 0.0, %v1535
    %v1537 = vpop.f32.mrf.mxu0
    %v1538 = vadd.f32 0.0, %v1537
    %1539 = vdwg.mxu0
    %1540 = vmatpush.bf16.msra.mxu0 0
    %1541 = vmatpush.bf16.msra.mxu0 0
    %1542 = vmatpush.bf16.msra.mxu0 0
    %1543 = vmatpush.bf16.msra.mxu0 0
    %1544 = vmatpush.bf16.msra.mxu0 %v1476
    %1545 = vmatpush.bf16.msra.mxu0 %v1468
    %1546 = vmatpush.bf16.msra.mxu0 %v1460
    %1547 = vmatpush.bf16.msra.mxu0 %v1452
    %1548 = vmatmul.bf16.gmra.mxu0 %v1516
    %v1549 = vpop.f32.mrf.mxu0
    %v1550 = vadd.f32 0.0, %v1549
    %v1551 = vpop.f32.mrf.mxu0
    %v1552 = vadd.f32 0.0, %v1551
    %1553 = vmatmul.bf16.gmra.mxu0 %v1519
    %v1554 = vpop.f32.mrf.mxu0
    %v1555 = vadd.f32 0.0, %v1554
    %v1556 = vpop.f32.mrf.mxu0
    %v1557 = vadd.f32 0.0, %v1556
    %1558 = vdwg.mxu0
    %1559 = vmatpush.bf16.msra.mxu0 0
    %1560 = vmatpush.bf16.msra.mxu0 0
    %1561 = vmatpush.bf16.msra.mxu0 0
    %1562 = vmatpush.bf16.msra.mxu0 0
    %1563 = vmatpush.bf16.msra.mxu0 %v1477
    %1564 = vmatpush.bf16.msra.mxu0 %v1469
    %1565 = vmatpush.bf16.msra.mxu0 %v1461
    %1566 = vmatpush.bf16.msra.mxu0 %v1453
    %1567 = vmatmul.bf16.gmra.mxu0 %v1516
    %v1568 = vpop.f32.mrf.mxu0
    %v1569 = vadd.f32 0.0, %v1568
    %v1570 = vpop.f32.mrf.mxu0
    %v1571 = vadd.f32 0.0, %v1570
    %1572 = vmatmul.bf16.gmra.mxu0 %v1519
    %v1573 = vpop.f32.mrf.mxu0
    %v1574 = vadd.f32 0.0, %v1573
    %v1575 = vpop.f32.mrf.mxu0
    %v1576 = vadd.f32 0.0, %v1575
    %1577 = vdwg.mxu0
    %1578 = vmatpush.bf16.msra.mxu0 0
    %1579 = vmatpush.bf16.msra.mxu0 0
    %1580 = vmatpush.bf16.msra.mxu0 0
    %1581 = vmatpush.bf16.msra.mxu0 0
    %1582 = vmatpush.bf16.msra.mxu0 %v1478
    %1583 = vmatpush.bf16.msra.mxu0 %v1470
    %1584 = vmatpush.bf16.msra.mxu0 %v1462
    %1585 = vmatpush.bf16.msra.mxu0 %v1454
    %1586 = vmatmul.bf16.gmra.mxu0 %v1516
    %v1587 = vpop.f32.mrf.mxu0
    %v1588 = vadd.f32 0.0, %v1587
    %v1589 = vpop.f32.mrf.mxu0
    %v1590 = vadd.f32 0.0, %v1589
    %1591 = vmatmul.bf16.gmra.mxu0 %v1519
    %v1592 = vpop.f32.mrf.mxu0
    %v1593 = vadd.f32 0.0, %v1592
    %v1594 = vpop.f32.mrf.mxu0
    %v1595 = vadd.f32 0.0, %v1594
    %1596 = vdwg.mxu0
    %1597 = vmatpush.bf16.msra.mxu0 0
    %1598 = vmatpush.bf16.msra.mxu0 0
    %1599 = vmatpush.bf16.msra.mxu0 0
    %1600 = vmatpush.bf16.msra.mxu0 0
    %1601 = vmatpush.bf16.msra.mxu0 %v1479
    %1602 = vmatpush.bf16.msra.mxu0 %v1471
    %1603 = vmatpush.bf16.msra.mxu0 %v1463
    %1604 = vmatpush.bf16.msra.mxu0 %v1455
    %1605 = vmatmul.bf16.gmra.mxu0 %v1516
    %v1606 = vpop.f32.mrf.mxu0
    %v1607 = vadd.f32 0.0, %v1606
    %v1608 = vpop.f32.mrf.mxu0
    %v1609 = vadd.f32 0.0, %v1608
    %1610 = vmatmul.bf16.gmra.mxu0 %v1519
    %v1611 = vpop.f32.mrf.mxu0
    %v1612 = vadd.f32 0.0, %v1611
    %v1613 = vpop.f32.mrf.mxu0
    %v1614 = vadd.f32 0.0, %v1613
    %1615 = vdwg.mxu0
    %1616 = vmatpush.bf16.msra.mxu0 0
    %1617 = vmatpush.bf16.msra.mxu0 0
    %1618 = vmatpush.bf16.msra.mxu0 0
    %1619 = vmatpush.bf16.msra.mxu0 0
    %1620 = vmatpush.bf16.msra.mxu0 %v1480
    %1621 = vmatpush.bf16.msra.mxu0 %v1472
    %1622 = vmatpush.bf16.msra.mxu0 %v1464
    %1623 = vmatpush.bf16.msra.mxu0 %v1456
    %1624 = vmatmul.bf16.gmra.mxu0 %v1516
    %v1625 = vpop.f32.mrf.mxu0
    %v1626 = vadd.f32 0.0, %v1625
    %v1627 = vpop.f32.mrf.mxu0
    %v1628 = vadd.f32 0.0, %v1627
    %1629 = vmatmul.bf16.gmra.mxu0 %v1519
    %v1630 = vpop.f32.mrf.mxu0
    %v1631 = vadd.f32 0.0, %v1630
    %v1632 = vpop.f32.mrf.mxu0
    %v1633 = vadd.f32 0.0, %v1632
    %1634 = vdwg.mxu0
    %1635 = vmatpush.bf16.msra.mxu0 0
    %1636 = vmatpush.bf16.msra.mxu0 0
    %1637 = vmatpush.bf16.msra.mxu0 0
    %1638 = vmatpush.bf16.msra.mxu0 0
    %1639 = vmatpush.bf16.msra.mxu0 %v1481
    %1640 = vmatpush.bf16.msra.mxu0 %v1473
    %1641 = vmatpush.bf16.msra.mxu0 %v1465
    %1642 = vmatpush.bf16.msra.mxu0 %v1457
    %1643 = vmatmul.bf16.gmra.mxu0 %v1516
    %v1644 = vpop.f32.mrf.mxu0
    %v1645 = vadd.f32 0.0, %v1644
    %v1646 = vpop.f32.mrf.mxu0
    %v1647 = vadd.f32 0.0, %v1646
    %1648 = vmatmul.bf16.gmra.mxu0 %v1519
    %v1649 = vpop.f32.mrf.mxu0
    %v1650 = vadd.f32 0.0, %v1649
    %v1651 = vpop.f32.mrf.mxu0
    %v1652 = vadd.f32 0.0, %v1651
    %1653 = vdwg.mxu0
    %1654 = vmatpush.bf16.msra.mxu0 0
    %1655 = vmatpush.bf16.msra.mxu0 0
    %1656 = vmatpush.bf16.msra.mxu0 0
    %1657 = vmatpush.bf16.msra.mxu0 0
    %1658 = vmatpush.bf16.msra.mxu0 %v1482
    %1659 = vmatpush.bf16.msra.mxu0 %v1474
    %1660 = vmatpush.bf16.msra.mxu0 %v1466
    %1661 = vmatpush.bf16.msra.mxu0 %v1458
    %1662 = vmatmul.bf16.gmra.mxu0 %v1516
    %v1663 = vpop.f32.mrf.mxu0
    %v1664 = vadd.f32 0.0, %v1663
    %v1665 = vpop.f32.mrf.mxu0
    %v1666 = vadd.f32 0.0, %v1665
    %1667 = vmatmul.bf16.gmra.mxu0 %v1519
    %v1668 = vpop.f32.mrf.mxu0
    %v1669 = vadd.f32 0.0, %v1668
    %v1670 = vpop.f32.mrf.mxu0
    %v1671 = vadd.f32 0.0, %v1670
    %1672 = vdwg.mxu0
    %v1673 = vxor.u32 %v1531, 2147483648
    %v1674 = vxor.u32 %v1550, 2147483648
    %v1675 = vxor.u32 %v1569, 2147483648
    %v1676 = vxor.u32 %v1588, 2147483648
    %v1677 = vxor.u32 %v1533, 2147483648
    %v1678 = vxor.u32 %v1552, 2147483648
    %v1679 = vxor.u32 %v1571, 2147483648
    %v1680 = vxor.u32 %v1590, 2147483648
    %v1681 = vxor.u32 %v1536, 2147483648
    %v1682 = vxor.u32 %v1555, 2147483648
    %v1683 = vxor.u32 %v1574, 2147483648
    %v1684 = vxor.u32 %v1593, 2147483648
    %v1685 = vxor.u32 %v1538, 2147483648
    %v1686 = vxor.u32 %v1557, 2147483648
    %v1687 = vxor.u32 %v1576, 2147483648
    %v1688 = vxor.u32 %v1595, 2147483648
    %v1689 = vmul.f32 %v1673, 1.442695
    %v1690 = vpow.pop %v1689
    %v1691 = vmul.f32 %v1674, 1.442695
    %v1692 = vpow.pop %v1691
    %v1693 = vmul.f32 %v1675, 1.442695
    %v1694 = vpow.pop %v1693
    %v1695 = vmul.f32 %v1676, 1.442695
    %v1696 = vpow.pop %v1695
    %v1697 = vmul.f32 %v1677, 1.442695
    %v1698 = vpow.pop %v1697
    %v1699 = vmul.f32 %v1678, 1.442695
    %v1700 = vpow.pop %v1699
    %v1701 = vmul.f32 %v1679, 1.442695
    %v1702 = vpow.pop %v1701
    %v1703 = vmul.f32 %v1680, 1.442695
    %v1704 = vpow.pop %v1703
    %v1705 = vmul.f32 %v1681, 1.442695
    %v1706 = vpow.pop %v1705
    %v1707 = vmul.f32 %v1682, 1.442695
    %v1708 = vpow.pop %v1707
    %v1709 = vmul.f32 %v1683, 1.442695
    %v1710 = vpow.pop %v1709
    %v1711 = vmul.f32 %v1684, 1.442695
    %v1712 = vpow.pop %v1711
    %v1713 = vmul.f32 %v1685, 1.442695
    %v1714 = vpow.pop %v1713
    %v1715 = vmul.f32 %v1686, 1.442695
    %v1716 = vpow.pop %v1715
    %v1717 = vmul.f32 %v1687, 1.442695
    %v1718 = vpow.pop %v1717
    %v1719 = vmul.f32 %v1688, 1.442695
    %v1720 = vpow.pop %v1719
    %v1721 = vadd.f32 %v1690, 1.0
    %v1722 = vadd.f32 %v1692, 1.0
    %v1723 = vadd.f32 %v1694, 1.0
    %v1724 = vadd.f32 %v1696, 1.0
    %v1725 = vadd.f32 %v1698, 1.0
    %v1726 = vadd.f32 %v1700, 1.0
    %v1727 = vadd.f32 %v1702, 1.0
    %v1728 = vadd.f32 %v1704, 1.0
    %v1729 = vadd.f32 %v1706, 1.0
    %v1730 = vadd.f32 %v1708, 1.0
    %v1731 = vadd.f32 %v1710, 1.0
    %v1732 = vadd.f32 %v1712, 1.0
    %v1733 = vadd.f32 %v1714, 1.0
    %v1734 = vadd.f32 %v1716, 1.0
    %v1735 = vadd.f32 %v1718, 1.0
    %v1736 = vadd.f32 %v1720, 1.0
    %v1737 = vrcp.pop %v1721
    %v1738 = vmul.f32 %v1721, %v1737
    %v1739 = vsub.f32 1.0, %v1738
    %v1740 = vmul.f32 %v1737, %v1739
    %v1741 = vadd.f32 %v1737, %v1740
    %vm1742 = vweird.f32 %v1721
    %vm1743 = vweird.f32 %v1737
    %vm1744 = vmor %vm1742, %vm1743
    %v1745 = vsel %vm1744, %v1737, %v1741
    %v1746 = vand.u32 2147483647, %v1721
    %vm1747 = vcmp.eq.f32.partialorder %v1746, 8.507059e+37
    %v1748 = vand.u32 %v1721, 2147483648
    %v1749 = vor.u32 1.1754944e-38, %v1748
    %v1750 = vsel %vm1747, %v1749, %v1745
    %v1751 = vmul.f32 1.0, %v1750
    %v1752 = vrcp.pop %v1722
    %v1753 = vmul.f32 %v1722, %v1752
    %v1754 = vsub.f32 1.0, %v1753
    %v1755 = vmul.f32 %v1752, %v1754
    %v1756 = vadd.f32 %v1752, %v1755
    %vm1757 = vweird.f32 %v1722
    %vm1758 = vweird.f32 %v1752
    %vm1759 = vmor %vm1757, %vm1758
    %v1760 = vsel %vm1759, %v1752, %v1756
    %v1761 = vand.u32 2147483647, %v1722
    %vm1762 = vcmp.eq.f32.partialorder %v1761, 8.507059e+37
    %v1763 = vand.u32 %v1722, 2147483648
    %v1764 = vor.u32 1.1754944e-38, %v1763
    %v1765 = vsel %vm1762, %v1764, %v1760
    %v1766 = vmul.f32 1.0, %v1765
    %v1767 = vrcp.pop %v1723
    %v1768 = vmul.f32 %v1723, %v1767
    %v1769 = vsub.f32 1.0, %v1768
    %v1770 = vmul.f32 %v1767, %v1769
    %v1771 = vadd.f32 %v1767, %v1770
    %vm1772 = vweird.f32 %v1723
    %vm1773 = vweird.f32 %v1767
    %vm1774 = vmor %vm1772, %vm1773
    %v1775 = vsel %vm1774, %v1767, %v1771
    %v1776 = vand.u32 2147483647, %v1723
    %vm1777 = vcmp.eq.f32.partialorder %v1776, 8.507059e+37
    %v1778 = vand.u32 %v1723, 2147483648
    %v1779 = vor.u32 1.1754944e-38, %v1778
    %v1780 = vsel %vm1777, %v1779, %v1775
    %v1781 = vmul.f32 1.0, %v1780
    %v1782 = vrcp.pop %v1724
    %v1783 = vmul.f32 %v1724, %v1782
    %v1784 = vsub.f32 1.0, %v1783
    %v1785 = vmul.f32 %v1782, %v1784
    %v1786 = vadd.f32 %v1782, %v1785
    %vm1787 = vweird.f32 %v1724
    %vm1788 = vweird.f32 %v1782
    %vm1789 = vmor %vm1787, %vm1788
    %v1790 = vsel %vm1789, %v1782, %v1786
    %v1791 = vand.u32 2147483647, %v1724
    %vm1792 = vcmp.eq.f32.partialorder %v1791, 8.507059e+37
    %v1793 = vand.u32 %v1724, 2147483648
    %v1794 = vor.u32 1.1754944e-38, %v1793
    %v1795 = vsel %vm1792, %v1794, %v1790
    %v1796 = vmul.f32 1.0, %v1795
    %v1797 = vrcp.pop %v1725
    %v1798 = vmul.f32 %v1725, %v1797
    %v1799 = vsub.f32 1.0, %v1798
    %v1800 = vmul.f32 %v1797, %v1799
    %v1801 = vadd.f32 %v1797, %v1800
    %vm1802 = vweird.f32 %v1725
    %vm1803 = vweird.f32 %v1797
    %vm1804 = vmor %vm1802, %vm1803
    %v1805 = vsel %vm1804, %v1797, %v1801
    %v1806 = vand.u32 2147483647, %v1725
    %vm1807 = vcmp.eq.f32.partialorder %v1806, 8.507059e+37
    %v1808 = vand.u32 %v1725, 2147483648
    %v1809 = vor.u32 1.1754944e-38, %v1808
    %v1810 = vsel %vm1807, %v1809, %v1805
    %v1811 = vmul.f32 1.0, %v1810
    %v1812 = vrcp.pop %v1726
    %v1813 = vmul.f32 %v1726, %v1812
    %v1814 = vsub.f32 1.0, %v1813
    %v1815 = vmul.f32 %v1812, %v1814
    %v1816 = vadd.f32 %v1812, %v1815
    %vm1817 = vweird.f32 %v1726
    %vm1818 = vweird.f32 %v1812
    %vm1819 = vmor %vm1817, %vm1818
    %v1820 = vsel %vm1819, %v1812, %v1816
    %v1821 = vand.u32 2147483647, %v1726
    %vm1822 = vcmp.eq.f32.partialorder %v1821, 8.507059e+37
    %v1823 = vand.u32 %v1726, 2147483648
    %v1824 = vor.u32 1.1754944e-38, %v1823
    %v1825 = vsel %vm1822, %v1824, %v1820
    %v1826 = vmul.f32 1.0, %v1825
    %v1827 = vrcp.pop %v1727
    %v1828 = vmul.f32 %v1727, %v1827
    %v1829 = vsub.f32 1.0, %v1828
    %v1830 = vmul.f32 %v1827, %v1829
    %v1831 = vadd.f32 %v1827, %v1830
    %vm1832 = vweird.f32 %v1727
    %vm1833 = vweird.f32 %v1827
    %vm1834 = vmor %vm1832, %vm1833
    %v1835 = vsel %vm1834, %v1827, %v1831
    %v1836 = vand.u32 2147483647, %v1727
    %vm1837 = vcmp.eq.f32.partialorder %v1836, 8.507059e+37
    %v1838 = vand.u32 %v1727, 2147483648
    %v1839 = vor.u32 1.1754944e-38, %v1838
    %v1840 = vsel %vm1837, %v1839, %v1835
    %v1841 = vmul.f32 1.0, %v1840
    %v1842 = vrcp.pop %v1728
    %v1843 = vmul.f32 %v1728, %v1842
    %v1844 = vsub.f32 1.0, %v1843
    %v1845 = vmul.f32 %v1842, %v1844
    %v1846 = vadd.f32 %v1842, %v1845
    %vm1847 = vweird.f32 %v1728
    %vm1848 = vweird.f32 %v1842
    %vm1849 = vmor %vm1847, %vm1848
    %v1850 = vsel %vm1849, %v1842, %v1846
    %v1851 = vand.u32 2147483647, %v1728
    %vm1852 = vcmp.eq.f32.partialorder %v1851, 8.507059e+37
    %v1853 = vand.u32 %v1728, 2147483648
    %v1854 = vor.u32 1.1754944e-38, %v1853
    %v1855 = vsel %vm1852, %v1854, %v1850
    %v1856 = vmul.f32 1.0, %v1855
    %v1857 = vrcp.pop %v1729
    %v1858 = vmul.f32 %v1729, %v1857
    %v1859 = vsub.f32 1.0, %v1858
    %v1860 = vmul.f32 %v1857, %v1859
    %v1861 = vadd.f32 %v1857, %v1860
    %vm1862 = vweird.f32 %v1729
    %vm1863 = vweird.f32 %v1857
    %vm1864 = vmor %vm1862, %vm1863
    %v1865 = vsel %vm1864, %v1857, %v1861
    %v1866 = vand.u32 2147483647, %v1729
    %vm1867 = vcmp.eq.f32.partialorder %v1866, 8.507059e+37
    %v1868 = vand.u32 %v1729, 2147483648
    %v1869 = vor.u32 1.1754944e-38, %v1868
    %v1870 = vsel %vm1867, %v1869, %v1865
    %v1871 = vmul.f32 1.0, %v1870
    %v1872 = vrcp.pop %v1730
    %v1873 = vmul.f32 %v1730, %v1872
    %v1874 = vsub.f32 1.0, %v1873
    %v1875 = vmul.f32 %v1872, %v1874
    %v1876 = vadd.f32 %v1872, %v1875
    %vm1877 = vweird.f32 %v1730
    %vm1878 = vweird.f32 %v1872
    %vm1879 = vmor %vm1877, %vm1878
    %v1880 = vsel %vm1879, %v1872, %v1876
    %v1881 = vand.u32 2147483647, %v1730
    %vm1882 = vcmp.eq.f32.partialorder %v1881, 8.507059e+37
    %v1883 = vand.u32 %v1730, 2147483648
    %v1884 = vor.u32 1.1754944e-38, %v1883
    %v1885 = vsel %vm1882, %v1884, %v1880
    %v1886 = vmul.f32 1.0, %v1885
    %v1887 = vrcp.pop %v1731
    %v1888 = vmul.f32 %v1731, %v1887
    %v1889 = vsub.f32 1.0, %v1888
    %v1890 = vmul.f32 %v1887, %v1889
    %v1891 = vadd.f32 %v1887, %v1890
    %vm1892 = vweird.f32 %v1731
    %vm1893 = vweird.f32 %v1887
    %vm1894 = vmor %vm1892, %vm1893
    %v1895 = vsel %vm1894, %v1887, %v1891
    %v1896 = vand.u32 2147483647, %v1731
    %vm1897 = vcmp.eq.f32.partialorder %v1896, 8.507059e+37
    %v1898 = vand.u32 %v1731, 2147483648
    %v1899 = vor.u32 1.1754944e-38, %v1898
    %v1900 = vsel %vm1897, %v1899, %v1895
    %v1901 = vmul.f32 1.0, %v1900
    %v1902 = vrcp.pop %v1732
    %v1903 = vmul.f32 %v1732, %v1902
    %v1904 = vsub.f32 1.0, %v1903
    %v1905 = vmul.f32 %v1902, %v1904
    %v1906 = vadd.f32 %v1902, %v1905
    %vm1907 = vweird.f32 %v1732
    %vm1908 = vweird.f32 %v1902
    %vm1909 = vmor %vm1907, %vm1908
    %v1910 = vsel %vm1909, %v1902, %v1906
    %v1911 = vand.u32 2147483647, %v1732
    %vm1912 = vcmp.eq.f32.partialorder %v1911, 8.507059e+37
    %v1913 = vand.u32 %v1732, 2147483648
    %v1914 = vor.u32 1.1754944e-38, %v1913
    %v1915 = vsel %vm1912, %v1914, %v1910
    %v1916 = vmul.f32 1.0, %v1915
    %v1917 = vrcp.pop %v1733
    %v1918 = vmul.f32 %v1733, %v1917
    %v1919 = vsub.f32 1.0, %v1918
    %v1920 = vmul.f32 %v1917, %v1919
    %v1921 = vadd.f32 %v1917, %v1920
    %vm1922 = vweird.f32 %v1733
    %vm1923 = vweird.f32 %v1917
    %vm1924 = vmor %vm1922, %vm1923
    %v1925 = vsel %vm1924, %v1917, %v1921
    %v1926 = vand.u32 2147483647, %v1733
    %vm1927 = vcmp.eq.f32.partialorder %v1926, 8.507059e+37
    %v1928 = vand.u32 %v1733, 2147483648
    %v1929 = vor.u32 1.1754944e-38, %v1928
    %v1930 = vsel %vm1927, %v1929, %v1925
    %v1931 = vmul.f32 1.0, %v1930
    %v1932 = vrcp.pop %v1734
    %v1933 = vmul.f32 %v1734, %v1932
    %v1934 = vsub.f32 1.0, %v1933
    %v1935 = vmul.f32 %v1932, %v1934
    %v1936 = vadd.f32 %v1932, %v1935
    %vm1937 = vweird.f32 %v1734
    %vm1938 = vweird.f32 %v1932
    %vm1939 = vmor %vm1937, %vm1938
    %v1940 = vsel %vm1939, %v1932, %v1936
    %v1941 = vand.u32 2147483647, %v1734
    %vm1942 = vcmp.eq.f32.partialorder %v1941, 8.507059e+37
    %v1943 = vand.u32 %v1734, 2147483648
    %v1944 = vor.u32 1.1754944e-38, %v1943
    %v1945 = vsel %vm1942, %v1944, %v1940
    %v1946 = vmul.f32 1.0, %v1945
    %v1947 = vrcp.pop %v1735
    %v1948 = vmul.f32 %v1735, %v1947
    %v1949 = vsub.f32 1.0, %v1948
    %v1950 = vmul.f32 %v1947, %v1949
    %v1951 = vadd.f32 %v1947, %v1950
    %vm1952 = vweird.f32 %v1735
    %vm1953 = vweird.f32 %v1947
    %vm1954 = vmor %vm1952, %vm1953
    %v1955 = vsel %vm1954, %v1947, %v1951
    %v1956 = vand.u32 2147483647, %v1735
    %vm1957 = vcmp.eq.f32.partialorder %v1956, 8.507059e+37
    %v1958 = vand.u32 %v1735, 2147483648
    %v1959 = vor.u32 1.1754944e-38, %v1958
    %v1960 = vsel %vm1957, %v1959, %v1955
    %v1961 = vmul.f32 1.0, %v1960
    %v1962 = vrcp.pop %v1736
    %v1963 = vmul.f32 %v1736, %v1962
    %v1964 = vsub.f32 1.0, %v1963
    %v1965 = vmul.f32 %v1962, %v1964
    %v1966 = vadd.f32 %v1962, %v1965
    %vm1967 = vweird.f32 %v1736
    %vm1968 = vweird.f32 %v1962
    %vm1969 = vmor %vm1967, %vm1968
    %v1970 = vsel %vm1969, %v1962, %v1966
    %v1971 = vand.u32 2147483647, %v1736
    %vm1972 = vcmp.eq.f32.partialorder %v1971, 8.507059e+37
    %v1973 = vand.u32 %v1736, 2147483648
    %v1974 = vor.u32 1.1754944e-38, %v1973
    %v1975 = vsel %vm1972, %v1974, %v1970
    %v1976 = vmul.f32 1.0, %v1975
    %v1977 = vmul.f32 %v1531, %v1751
    %v1978 = vmul.f32 %v1550, %v1766
    %v1979 = vmul.f32 %v1569, %v1781
    %v1980 = vmul.f32 %v1588, %v1796
    %v1981 = vmul.f32 %v1533, %v1811
    %v1982 = vmul.f32 %v1552, %v1826
    %v1983 = vmul.f32 %v1571, %v1841
    %v1984 = vmul.f32 %v1590, %v1856
    %v1985 = vmul.f32 %v1536, %v1871
    %v1986 = vmul.f32 %v1555, %v1886
    %v1987 = vmul.f32 %v1574, %v1901
    %v1988 = vmul.f32 %v1593, %v1916
    %v1989 = vmul.f32 %v1538, %v1931
    %v1990 = vmul.f32 %v1557, %v1946
    %v1991 = vmul.f32 %v1576, %v1961
    %v1992 = vmul.f32 %v1595, %v1976
    %v1993 = vmul.f32 %v1977, %v1607
    %v1994 = vmul.f32 %v1978, %v1626
    %v1995 = vmul.f32 %v1979, %v1645
    %v1996 = vmul.f32 %v1980, %v1664
    %v1997 = vmul.f32 %v1981, %v1609
    %v1998 = vmul.f32 %v1982, %v1628
    %v1999 = vmul.f32 %v1983, %v1647
    %v2000 = vmul.f32 %v1984, %v1666
    %v2001 = vmul.f32 %v1985, %v1612
    %v2002 = vmul.f32 %v1986, %v1631
    %v2003 = vmul.f32 %v1987, %v1650
    %v2004 = vmul.f32 %v1988, %v1669
    %v2005 = vmul.f32 %v1989, %v1614
    %v2006 = vmul.f32 %v1990, %v1633
    %v2007 = vmul.f32 %v1991, %v1652
    %v2008 = vmul.f32 %v1992, %v1671
    %2011 = vst [vmem:[#allocation1] ss:$2 sm:$0xff] %v126
    %s2012 = scalar_lea.vmem [#allocation1], 16
    %2013 = vst [vmem:[%s2012] ss:$2 sm:$0xff] %v127
    %v2014 = vld.sshfl [vmem:[#allocation1] sm:$0xff pattern:$0x75316420]
    %v2015 = vld.sshfl [vmem:[#allocation1 + $0x8] sm:$0xff pattern:$0x75316420]
    %v2016 = vld.sshfl [vmem:[#allocation1 + $0x10] sm:$0xff pattern:$0x75316420]
    %v2017 = vld.sshfl [vmem:[#allocation1 + $0x18] sm:$0xff pattern:$0x75316420]
    %v2019 = vsel %vm1208, %v1317, 0
    %v2022 = vsel %vm1208, %v1318, 0
    %v2025 = vsel %vm1208, %v1319, 0
    %v2028 = vsel %vm1208, %v1320, 0
    %v2030 = vsel %vm73, %v2014, 0
    %v2032 = vsel %vm73, %v2015, 0
    %v2034 = vsel %vm73, %v2016, 0
    %v2036 = vsel %vm73, %v2017, 0
    %2038 = vmatpush.msra.mxu0 0.0
    %2039 = vmatpush.msra.mxu0 0.0
    %2040 = vmatpush.msra.mxu0 0.0
    %2041 = vmatpush.msra.mxu0 0.0
    %2042 = vmatpush.msra.mxu0 0.0
    %2043 = vmatpush.msra.mxu0 0.0
    %2044 = vmatpush.msra.mxu0 0.0
    %2045 = vmatpush.msra.mxu0 0.0
    %2046 = vmatpush.msra.mxu0 0.0
    %2047 = vmatpush.msra.mxu0 0.0
    %2048 = vmatpush.msra.mxu0 0.0
    %2049 = vmatpush.msra.mxu0 0.0
    %2050 = vmatpush.msra.mxu0 0.0
    %2051 = vmatpush.msra.mxu0 0.0
    %2052 = vmatpush.msra.mxu0 0.0
    %2053 = vmatpush.msra.mxu0 %v2030
    %2054 = vmatmul.f32.gmra.mxu0 %v2019
    %v2055 = vpop.f32.mrf.mxu0
    %v2056 = vadd.f32 0.0, %v2055
    %2057 = vmatmul.f32.gmra.mxu0 %v2022
    %v2058 = vpop.f32.mrf.mxu0
    %v2059 = vadd.f32 0.0, %v2058
    %2060 = vmatmul.f32.gmra.mxu0 %v2025
    %v2061 = vpop.f32.mrf.mxu0
    %v2062 = vadd.f32 0.0, %v2061
    %2063 = vmatmul.f32.gmra.mxu0 %v2028
    %v2064 = vpop.f32.mrf.mxu0
    %v2065 = vadd.f32 0.0, %v2064
    %2066 = vdwg.mxu0
    %2067 = vmatpush.msra.mxu0 0.0
    %2068 = vmatpush.msra.mxu0 0.0
    %2069 = vmatpush.msra.mxu0 0.0
    %2070 = vmatpush.msra.mxu0 0.0
    %2071 = vmatpush.msra.mxu0 0.0
    %2072 = vmatpush.msra.mxu0 0.0
    %2073 = vmatpush.msra.mxu0 0.0
    %2074 = vmatpush.msra.mxu0 0.0
    %2075 = vmatpush.msra.mxu0 0.0
    %2076 = vmatpush.msra.mxu0 0.0
    %2077 = vmatpush.msra.mxu0 0.0
    %2078 = vmatpush.msra.mxu0 0.0
    %2079 = vmatpush.msra.mxu0 0.0
    %2080 = vmatpush.msra.mxu0 0.0
    %2081 = vmatpush.msra.mxu0 0.0
    %2082 = vmatpush.msra.mxu0 %v2032
    %2083 = vmatmul.f32.gmra.mxu0 %v2019
    %v2084 = vpop.f32.mrf.mxu0
    %v2085 = vadd.f32 0.0, %v2084
    %2086 = vmatmul.f32.gmra.mxu0 %v2022
    %v2087 = vpop.f32.mrf.mxu0
    %v2088 = vadd.f32 0.0, %v2087
    %2089 = vmatmul.f32.gmra.mxu0 %v2025
    %v2090 = vpop.f32.mrf.mxu0
    %v2091 = vadd.f32 0.0, %v2090
    %2092 = vmatmul.f32.gmra.mxu0 %v2028
    %v2093 = vpop.f32.mrf.mxu0
    %v2094 = vadd.f32 0.0, %v2093
    %2095 = vdwg.mxu0
    %2096 = vmatpush.msra.mxu0 0.0
    %2097 = vmatpush.msra.mxu0 0.0
    %2098 = vmatpush.msra.mxu0 0.0
    %2099 = vmatpush.msra.mxu0 0.0
    %2100 = vmatpush.msra.mxu0 0.0
    %2101 = vmatpush.msra.mxu0 0.0
    %2102 = vmatpush.msra.mxu0 0.0
    %2103 = vmatpush.msra.mxu0 0.0
    %2104 = vmatpush.msra.mxu0 0.0
    %2105 = vmatpush.msra.mxu0 0.0
    %2106 = vmatpush.msra.mxu0 0.0
    %2107 = vmatpush.msra.mxu0 0.0
    %2108 = vmatpush.msra.mxu0 0.0
    %2109 = vmatpush.msra.mxu0 0.0
    %2110 = vmatpush.msra.mxu0 0.0
    %2111 = vmatpush.msra.mxu0 %v2034
    %2112 = vmatmul.f32.gmra.mxu0 %v2019
    %v2113 = vpop.f32.mrf.mxu0
    %v2114 = vadd.f32 0.0, %v2113
    %2115 = vmatmul.f32.gmra.mxu0 %v2022
    %v2116 = vpop.f32.mrf.mxu0
    %v2117 = vadd.f32 0.0, %v2116
    %2118 = vmatmul.f32.gmra.mxu0 %v2025
    %v2119 = vpop.f32.mrf.mxu0
    %v2120 = vadd.f32 0.0, %v2119
    %2121 = vmatmul.f32.gmra.mxu0 %v2028
    %v2122 = vpop.f32.mrf.mxu0
    %v2123 = vadd.f32 0.0, %v2122
    %2124 = vdwg.mxu0
    %2125 = vmatpush.msra.mxu0 0.0
    %2126 = vmatpush.msra.mxu0 0.0
    %2127 = vmatpush.msra.mxu0 0.0
    %2128 = vmatpush.msra.mxu0 0.0
    %2129 = vmatpush.msra.mxu0 0.0
    %2130 = vmatpush.msra.mxu0 0.0
    %2131 = vmatpush.msra.mxu0 0.0
    %2132 = vmatpush.msra.mxu0 0.0
    %2133 = vmatpush.msra.mxu0 0.0
    %2134 = vmatpush.msra.mxu0 0.0
    %2135 = vmatpush.msra.mxu0 0.0
    %2136 = vmatpush.msra.mxu0 0.0
    %2137 = vmatpush.msra.mxu0 0.0
    %2138 = vmatpush.msra.mxu0 0.0
    %2139 = vmatpush.msra.mxu0 0.0
    %2140 = vmatpush.msra.mxu0 %v2036
    %2141 = vmatmul.f32.gmra.mxu0 %v2019
    %v2142 = vpop.f32.mrf.mxu0
    %v2143 = vadd.f32 0.0, %v2142
    %2144 = vmatmul.f32.gmra.mxu0 %v2022
    %v2145 = vpop.f32.mrf.mxu0
    %v2146 = vadd.f32 0.0, %v2145
    %2147 = vmatmul.f32.gmra.mxu0 %v2025
    %v2148 = vpop.f32.mrf.mxu0
    %v2149 = vadd.f32 0.0, %v2148
    %2150 = vmatmul.f32.gmra.mxu0 %v2028
    %v2151 = vpop.f32.mrf.mxu0
    %v2152 = vadd.f32 0.0, %v2151
    %2153 = vdwg.mxu0
    %v2154 = vmul.f32 %v1993, %v2056
    %v2155 = vmul.f32 %v1994, %v2085
    %v2156 = vmul.f32 %v1995, %v2114
    %v2157 = vmul.f32 %v1996, %v2143
    %v2158 = vmul.f32 %v1997, %v2059
    %v2159 = vmul.f32 %v1998, %v2088
    %v2160 = vmul.f32 %v1999, %v2117
    %v2161 = vmul.f32 %v2000, %v2146
    %v2162 = vmul.f32 %v2001, %v2062
    %v2163 = vmul.f32 %v2002, %v2091
    %v2164 = vmul.f32 %v2003, %v2120
    %v2165 = vmul.f32 %v2004, %v2149
    %v2166 = vmul.f32 %v2005, %v2065
    %v2167 = vmul.f32 %v2006, %v2094
    %v2168 = vmul.f32 %v2007, %v2123
    %v2169 = vmul.f32 %v2008, %v2152
    %v2170 = vpack.c.bf16 %v2158, %v2154
    %v2171 = vpack.c.bf16 %v2159, %v2155
    %v2172 = vpack.c.bf16 %v2160, %v2156
    %v2173 = vpack.c.bf16 %v2161, %v2157
    %v2174 = vpack.c.bf16 %v2166, %v2162
    %v2175 = vpack.c.bf16 %v2167, %v2163
    %v2176 = vpack.c.bf16 %v2168, %v2164
    %v2177 = vpack.c.bf16 %v2169, %v2165
    %v2178 = vld [vmem:[%s13] sm:$0xf]
    %v2179 = vld [vmem:[%s13 + $0x4] sm:$0xf]
    %v2180 = vld [vmem:[%s13 + $0x8] sm:$0xf]
    %v2181 = vld [vmem:[%s13 + $0xc] sm:$0xf]
    %v2182 = vld [vmem:[%s13 + $0x10] sm:$0xf]
    %v2183 = vld [vmem:[%s13 + $0x14] sm:$0xf]
    %v2184 = vld [vmem:[%s13 + $0x18] sm:$0xf]
    %v2185 = vld [vmem:[%s13 + $0x1c] sm:$0xf]
    %v2186 = vld [vmem:[%s13 + $0x20] sm:$0xf]
    %v2187 = vld [vmem:[%s13 + $0x24] sm:$0xf]
    %v2188 = vld [vmem:[%s13 + $0x28] sm:$0xf]
    %v2189 = vld [vmem:[%s13 + $0x2c] sm:$0xf]
    %v2190 = vld [vmem:[%s13 + $0x30] sm:$0xf]
    %v2191 = vld [vmem:[%s13 + $0x34] sm:$0xf]
    %v2192 = vld [vmem:[%s13 + $0x38] sm:$0xf]
    %v2193 = vld [vmem:[%s13 + $0x3c] sm:$0xf]
    %v2194 = vld [vmem:[%s13 + $0x40] sm:$0xf]
    %v2195 = vld [vmem:[%s13 + $0x44] sm:$0xf]
    %v2196 = vld [vmem:[%s13 + $0x48] sm:$0xf]
    %v2197 = vld [vmem:[%s13 + $0x4c] sm:$0xf]
    %v2198 = vld [vmem:[%s13 + $0x50] sm:$0xf]
    %v2199 = vld [vmem:[%s13 + $0x54] sm:$0xf]
    %v2200 = vld [vmem:[%s13 + $0x58] sm:$0xf]
    %v2201 = vld [vmem:[%s13 + $0x5c] sm:$0xf]
    %v2202 = vld [vmem:[%s13 + $0x60] sm:$0xf]
    %v2203 = vld [vmem:[%s13 + $0x64] sm:$0xf]
    %v2204 = vld [vmem:[%s13 + $0x68] sm:$0xf]
    %v2205 = vld [vmem:[%s13 + $0x6c] sm:$0xf]
    %v2206 = vld [vmem:[%s13 + $0x70] sm:$0xf]
    %v2207 = vld [vmem:[%s13 + $0x74] sm:$0xf]
    %v2208 = vld [vmem:[%s13 + $0x78] sm:$0xf]
    %v2209 = vld [vmem:[%s13 + $0x7c] sm:$0xf]
    %v2210 = vld [vmem:[%s13 + $0x80] sm:$0xf]
    %v2211 = vld [vmem:[%s13 + $0x84] sm:$0xf]
    %v2212 = vld [vmem:[%s13 + $0x88] sm:$0xf]
    %v2213 = vld [vmem:[%s13 + $0x8c] sm:$0xf]
    %v2214 = vld [vmem:[%s13 + $0x90] sm:$0xf]
    %v2215 = vld [vmem:[%s13 + $0x94] sm:$0xf]
    %v2216 = vld [vmem:[%s13 + $0x98] sm:$0xf]
    %v2217 = vld [vmem:[%s13 + $0x9c] sm:$0xf]
    %v2218 = vld [vmem:[%s13 + $0xa0] sm:$0xf]
    %v2219 = vld [vmem:[%s13 + $0xa4] sm:$0xf]
    %v2220 = vld [vmem:[%s13 + $0xa8] sm:$0xf]
    %v2221 = vld [vmem:[%s13 + $0xac] sm:$0xf]
    %v2222 = vld [vmem:[%s13 + $0xb0] sm:$0xf]
    %v2223 = vld [vmem:[%s13 + $0xb4] sm:$0xf]
    %v2224 = vld [vmem:[%s13 + $0xb8] sm:$0xf]
    %v2225 = vld [vmem:[%s13 + $0xbc] sm:$0xf]
    %v2226 = vld [vmem:[%s13 + $0xc0] sm:$0xf]
    %v2227 = vld [vmem:[%s13 + $0xc4] sm:$0xf]
    %v2228 = vld [vmem:[%s13 + $0xc8] sm:$0xf]
    %v2229 = vld [vmem:[%s13 + $0xcc] sm:$0xf]
    %v2230 = vld [vmem:[%s13 + $0xd0] sm:$0xf]
    %v2231 = vld [vmem:[%s13 + $0xd4] sm:$0xf]
    %v2232 = vld [vmem:[%s13 + $0xd8] sm:$0xf]
    %v2233 = vld [vmem:[%s13 + $0xdc] sm:$0xf]
    %v2234 = vld [vmem:[%s13 + $0xe0] sm:$0xf]
    %v2235 = vld [vmem:[%s13 + $0xe4] sm:$0xf]
    %v2236 = vld [vmem:[%s13 + $0xe8] sm:$0xf]
    %v2237 = vld [vmem:[%s13 + $0xec] sm:$0xf]
    %v2238 = vld [vmem:[%s13 + $0xf0] sm:$0xf]
    %v2239 = vld [vmem:[%s13 + $0xf4] sm:$0xf]
    %v2240 = vld [vmem:[%s13 + $0xf8] sm:$0xf]
    %v2241 = vld [vmem:[%s13 + $0xfc] sm:$0xf]
    %v2306 = vunpack.c.l.b16 %v2178
    %v2307 = vunpack.c.l.b16 %v2179
    %v2308 = vunpack.c.l.b16 %v2180
    %v2309 = vunpack.c.l.b16 %v2181
    %v2310 = vunpack.c.l.b16 %v2182
    %v2311 = vunpack.c.l.b16 %v2183
    %v2312 = vunpack.c.l.b16 %v2184
    %v2313 = vunpack.c.l.b16 %v2185
    %v2314 = vunpack.c.l.b16 %v2186
    %v2315 = vunpack.c.l.b16 %v2187
    %v2316 = vunpack.c.l.b16 %v2188
    %v2317 = vunpack.c.l.b16 %v2189
    %v2318 = vunpack.c.l.b16 %v2190
    %v2319 = vunpack.c.l.b16 %v2191
    %v2320 = vunpack.c.l.b16 %v2192
    %v2321 = vunpack.c.l.b16 %v2193
    %v2322 = vunpack.c.l.b16 %v2194
    %v2323 = vunpack.c.l.b16 %v2195
    %v2324 = vunpack.c.l.b16 %v2196
    %v2325 = vunpack.c.l.b16 %v2197
    %v2326 = vunpack.c.l.b16 %v2198
    %v2327 = vunpack.c.l.b16 %v2199
    %v2328 = vunpack.c.l.b16 %v2200
    %v2329 = vunpack.c.l.b16 %v2201
    %v2330 = vunpack.c.l.b16 %v2202
    %v2331 = vunpack.c.l.b16 %v2203
    %v2332 = vunpack.c.l.b16 %v2204
    %v2333 = vunpack.c.l.b16 %v2205
    %v2334 = vunpack.c.l.b16 %v2206
    %v2335 = vunpack.c.l.b16 %v2207
    %v2336 = vunpack.c.l.b16 %v2208
    %v2337 = vunpack.c.l.b16 %v2209
    %v2338 = vunpack.c.l.b16 %v2210
    %v2339 = vunpack.c.l.b16 %v2211
    %v2340 = vunpack.c.l.b16 %v2212
    %v2341 = vunpack.c.l.b16 %v2213
    %v2342 = vunpack.c.l.b16 %v2214
    %v2343 = vunpack.c.l.b16 %v2215
    %v2344 = vunpack.c.l.b16 %v2216
    %v2345 = vunpack.c.l.b16 %v2217
    %v2346 = vunpack.c.l.b16 %v2218
    %v2347 = vunpack.c.l.b16 %v2219
    %v2348 = vunpack.c.l.b16 %v2220
    %v2349 = vunpack.c.l.b16 %v2221
    %v2350 = vunpack.c.l.b16 %v2222
    %v2351 = vunpack.c.l.b16 %v2223
    %v2352 = vunpack.c.l.b16 %v2224
    %v2353 = vunpack.c.l.b16 %v2225
    %v2354 = vunpack.c.l.b16 %v2226
    %v2355 = vunpack.c.l.b16 %v2227
    %v2356 = vunpack.c.l.b16 %v2228
    %v2357 = vunpack.c.l.b16 %v2229
    %v2358 = vunpack.c.l.b16 %v2230
    %v2359 = vunpack.c.l.b16 %v2231
    %v2360 = vunpack.c.l.b16 %v2232
    %v2361 = vunpack.c.l.b16 %v2233
    %v2362 = vunpack.c.l.b16 %v2234
    %v2363 = vunpack.c.l.b16 %v2235
    %v2364 = vunpack.c.l.b16 %v2236
    %v2365 = vunpack.c.l.b16 %v2237
    %v2366 = vunpack.c.l.b16 %v2238
    %v2367 = vunpack.c.l.b16 %v2239
    %v2368 = vunpack.c.l.b16 %v2240
    %v2369 = vunpack.c.l.b16 %v2241
    %v2370 = vpack.c.b16 %v2307, %v2306
    %v2371 = vpack.c.b16 %v2309, %v2308
    %v2372 = vpack.c.b16 %v2311, %v2310
    %v2373 = vpack.c.b16 %v2313, %v2312
    %v2374 = vpack.c.b16 %v2315, %v2314
    %v2375 = vpack.c.b16 %v2317, %v2316
    %v2376 = vpack.c.b16 %v2319, %v2318
    %v2377 = vpack.c.b16 %v2321, %v2320
    %v2378 = vpack.c.b16 %v2323, %v2322
    %v2379 = vpack.c.b16 %v2325, %v2324
    %v2380 = vpack.c.b16 %v2327, %v2326
    %v2381 = vpack.c.b16 %v2329, %v2328
    %v2382 = vpack.c.b16 %v2331, %v2330
    %v2383 = vpack.c.b16 %v2333, %v2332
    %v2384 = vpack.c.b16 %v2335, %v2334
    %v2385 = vpack.c.b16 %v2337, %v2336
    %v2386 = vpack.c.b16 %v2339, %v2338
    %v2387 = vpack.c.b16 %v2341, %v2340
    %v2388 = vpack.c.b16 %v2343, %v2342
    %v2389 = vpack.c.b16 %v2345, %v2344
    %v2390 = vpack.c.b16 %v2347, %v2346
    %v2391 = vpack.c.b16 %v2349, %v2348
    %v2392 = vpack.c.b16 %v2351, %v2350
    %v2393 = vpack.c.b16 %v2353, %v2352
    %v2394 = vpack.c.b16 %v2355, %v2354
    %v2395 = vpack.c.b16 %v2357, %v2356
    %v2396 = vpack.c.b16 %v2359, %v2358
    %v2397 = vpack.c.b16 %v2361, %v2360
    %v2398 = vpack.c.b16 %v2363, %v2362
    %v2399 = vpack.c.b16 %v2365, %v2364
    %v2400 = vpack.c.b16 %v2367, %v2366
    %v2401 = vpack.c.b16 %v2369, %v2368
    %2434 = vmatpush.bf16.msra.mxu0 %v2377
    %2435 = vmatpush.bf16.msra.mxu0 %v2376
    %2436 = vmatpush.bf16.msra.mxu0 %v2375
    %2437 = vmatpush.bf16.msra.mxu0 %v2374
    %2438 = vmatpush.bf16.msra.mxu0 %v2373
    %2439 = vmatpush.bf16.msra.mxu0 %v2372
    %2440 = vmatpush.bf16.msra.mxu0 %v2371
    %2441 = vmatpush.bf16.msra.mxu0 %v2370
    %2442 = vmatmul.bf16.gmra.mxu0 %v2170
    %v2443 = vpop.f32.mrf.mxu0
    %v2444 = vadd.f32 0.0, %v2443
    %v2445 = vpop.f32.mrf.mxu0
    %v2446 = vadd.f32 0.0, %v2445
    %2447 = vmatmul.bf16.gmra.mxu0 %v2174
    %v2448 = vpop.f32.mrf.mxu0
    %v2449 = vadd.f32 0.0, %v2448
    %v2450 = vpop.f32.mrf.mxu0
    %v2451 = vadd.f32 0.0, %v2450
    %2452 = vdwg.mxu0
    %2453 = vmatpush.bf16.msra.mxu0 %v2385
    %2454 = vmatpush.bf16.msra.mxu0 %v2384
    %2455 = vmatpush.bf16.msra.mxu0 %v2383
    %2456 = vmatpush.bf16.msra.mxu0 %v2382
    %2457 = vmatpush.bf16.msra.mxu0 %v2381
    %2458 = vmatpush.bf16.msra.mxu0 %v2380
    %2459 = vmatpush.bf16.msra.mxu0 %v2379
    %2460 = vmatpush.bf16.msra.mxu0 %v2378
    %2461 = vmatmul.bf16.gmra.mxu0 %v2171
    %v2462 = vpop.f32.mrf.mxu0
    %v2463 = vadd.f32 %v2444, %v2462
    %v2464 = vpop.f32.mrf.mxu0
    %v2465 = vadd.f32 %v2446, %v2464
    %2466 = vmatmul.bf16.gmra.mxu0 %v2175
    %v2467 = vpop.f32.mrf.mxu0
    %v2468 = vadd.f32 %v2449, %v2467
    %v2469 = vpop.f32.mrf.mxu0
    %v2470 = vadd.f32 %v2451, %v2469
    %2471 = vdwg.mxu0
    %2472 = vmatpush.bf16.msra.mxu0 %v2393
    %2473 = vmatpush.bf16.msra.mxu0 %v2392
    %2474 = vmatpush.bf16.msra.mxu0 %v2391
    %2475 = vmatpush.bf16.msra.mxu0 %v2390
    %2476 = vmatpush.bf16.msra.mxu0 %v2389
    %2477 = vmatpush.bf16.msra.mxu0 %v2388
    %2478 = vmatpush.bf16.msra.mxu0 %v2387
    %2479 = vmatpush.bf16.msra.mxu0 %v2386
    %2480 = vmatmul.bf16.gmra.mxu0 %v2172
    %v2481 = vpop.f32.mrf.mxu0
    %v2482 = vadd.f32 %v2463, %v2481
    %v2483 = vpop.f32.mrf.mxu0
    %v2484 = vadd.f32 %v2465, %v2483
    %2485 = vmatmul.bf16.gmra.mxu0 %v2176
    %v2486 = vpop.f32.mrf.mxu0
    %v2487 = vadd.f32 %v2468, %v2486
    %v2488 = vpop.f32.mrf.mxu0
    %v2489 = vadd.f32 %v2470, %v2488
    %2490 = vdwg.mxu0
    %2491 = vmatpush.bf16.msra.mxu0 %v2401
    %2492 = vmatpush.bf16.msra.mxu0 %v2400
    %2493 = vmatpush.bf16.msra.mxu0 %v2399
    %2494 = vmatpush.bf16.msra.mxu0 %v2398
    %2495 = vmatpush.bf16.msra.mxu0 %v2397
    %2496 = vmatpush.bf16.msra.mxu0 %v2396
    %2497 = vmatpush.bf16.msra.mxu0 %v2395
    %2498 = vmatpush.bf16.msra.mxu0 %v2394
    %2499 = vmatmul.bf16.gmra.mxu0 %v2173
    %v2500 = vpop.f32.mrf.mxu0
    %v2501 = vadd.f32 %v2482, %v2500
    %v2502 = vpop.f32.mrf.mxu0
    %v2503 = vadd.f32 %v2484, %v2502
    %2504 = vmatmul.bf16.gmra.mxu0 %v2177
    %v2505 = vpop.f32.mrf.mxu0
    %v2506 = vadd.f32 %v2487, %v2505
    %v2507 = vpop.f32.mrf.mxu0
    %v2508 = vadd.f32 %v2489, %v2507
    %2509 = vdwg.mxu0
    %v2510 = vadd.f32 %v1079, %v2501
    %v2511 = vadd.f32 %v1080, %v2503
    %v2512 = vadd.f32 %v1081, %v2506
    %v2513 = vadd.f32 %v1082, %v2508
    %s2514 = scalar_lea.vmem %s7, 1
    %v2515 = vld [vmem:[%s2514] sm:$0x1]
    %v2516 = vmul.f32 %v2510, %v2510
    %v2517 = vmul.f32 %v2511, %v2511
    %v2518 = vmul.f32 %v2512, %v2512
    %v2519 = vmul.f32 %v2513, %v2513
    %v2520 = vsel %vm107, %v2516, 0.0
    %2521 = vadd.xlane.f32.xlu0 %v2520
    %v2522 = vpop.xlane.xlu0 %2521
    %v2523 = vsel %vm107, %v2517, 0.0
    %2524 = vadd.xlane.f32.xlu0 %v2523
    %v2525 = vpop.xlane.xlu0 %2524
    %v2526 = vsel %vm107, %v2518, 0.0
    %2527 = vadd.xlane.f32.xlu0 %v2526
    %v2528 = vpop.xlane.xlu0 %2527
    %v2529 = vsel %vm107, %v2519, 0.0
    %2530 = vadd.xlane.f32.xlu0 %v2529
    %v2531 = vpop.xlane.xlu0 %2530
    %v2532 = vmul.f32 %v2522, %v151
    %v2533 = vmul.f32 %v2525, %v151
    %v2534 = vmul.f32 %v2528, %v151
    %v2535 = vmul.f32 %v2531, %v151
    %v2536 = vadd.f32 %v2532, 1e-06
    %v2537 = vadd.f32 %v2533, 1e-06
    %v2538 = vadd.f32 %v2534, 1e-06
    %v2539 = vadd.f32 %v2535, 1e-06
    %v2540 = vrsqrt.pop %v2536
    %v2541 = vmul.f32 %v2540, %v2536
    %v2542 = vmul.f32 %v2541, %v2540
    %v2543 = vmul.f32 0.5, %v2542
    %v2544 = vsub.f32 1.5, %v2543
    %v2545 = vmul.f32 %v2540, %v2544
    %vm2546 = vweird.f32 %v2536
    %vm2547 = vweird.f32 %v2540
    %vm2548 = vmor %vm2546, %vm2547
    %v2549 = vsel %vm2548, %v2540, %v2545
    %v2550 = vrsqrt.pop %v2537
    %v2551 = vmul.f32 %v2550, %v2537
    %v2552 = vmul.f32 %v2551, %v2550
    %v2553 = vmul.f32 0.5, %v2552
    %v2554 = vsub.f32 1.5, %v2553
    %v2555 = vmul.f32 %v2550, %v2554
    %vm2556 = vweird.f32 %v2537
    %vm2557 = vweird.f32 %v2550
    %vm2558 = vmor %vm2556, %vm2557
    %v2559 = vsel %vm2558, %v2550, %v2555
    %v2560 = vrsqrt.pop %v2538
    %v2561 = vmul.f32 %v2560, %v2538
    %v2562 = vmul.f32 %v2561, %v2560
    %v2563 = vmul.f32 0.5, %v2562
    %v2564 = vsub.f32 1.5, %v2563
    %v2565 = vmul.f32 %v2560, %v2564
    %vm2566 = vweird.f32 %v2538
    %vm2567 = vweird.f32 %v2560
    %vm2568 = vmor %vm2566, %vm2567
    %v2569 = vsel %vm2568, %v2560, %v2565
    %v2570 = vrsqrt.pop %v2539
    %v2571 = vmul.f32 %v2570, %v2539
    %v2572 = vmul.f32 %v2571, %v2570
    %v2573 = vmul.f32 0.5, %v2572
    %v2574 = vsub.f32 1.5, %v2573
    %v2575 = vmul.f32 %v2570, %v2574
    %vm2576 = vweird.f32 %v2539
    %vm2577 = vweird.f32 %v2570
    %vm2578 = vmor %vm2576, %vm2577
    %v2579 = vsel %vm2578, %v2570, %v2575
    %v2580 = vmul.f32 %v2510, %v2549
    %v2581 = vmul.f32 %v2511, %v2559
    %v2582 = vmul.f32 %v2512, %v2569
    %v2583 = vmul.f32 %v2513, %v2579
    %v2585 = vperm.slane %v2515, 0
    %v2587 = vmul.f32 %v2580, %v2585
    %v2588 = vmul.f32 %v2581, %v2585
    %v2589 = vmul.f32 %v2582, %v2585
    %v2590 = vmul.f32 %v2583, %v2585
    %v2591 = vpack.c.bf16 %v2588, %v2587
    %v2592 = vpack.c.bf16 %v2590, %v2589
    %s2593 = scalar_lea.vmem %s8, 64
    %v2594 = vld [vmem:[%s2593] sm:$0xff]
    %v2595 = vld [vmem:[%s2593 + $0x8] sm:$0xff]
    %v2596 = vld [vmem:[%s2593 + $0x10] sm:$0xff]
    %v2597 = vld [vmem:[%s2593 + $0x18] sm:$0xff]
    %v2598 = vld [vmem:[%s2593 + $0x20] sm:$0xff]
    %v2599 = vld [vmem:[%s2593 + $0x28] sm:$0xff]
    %v2600 = vld [vmem:[%s2593 + $0x30] sm:$0xff]
    %v2601 = vld [vmem:[%s2593 + $0x38] sm:$0xff]
    %v2610 = vunpack.c.l.b16 %v2594
    %v2611 = vunpack.c.h.b16 %v2594
    %v2612 = vunpack.c.l.b16 %v2595
    %v2613 = vunpack.c.h.b16 %v2595
    %v2614 = vunpack.c.l.b16 %v2596
    %v2615 = vunpack.c.h.b16 %v2596
    %v2616 = vunpack.c.l.b16 %v2597
    %v2617 = vunpack.c.h.b16 %v2597
    %v2618 = vunpack.c.l.b16 %v2598
    %v2619 = vunpack.c.h.b16 %v2598
    %v2620 = vunpack.c.l.b16 %v2599
    %v2621 = vunpack.c.h.b16 %v2599
    %v2622 = vunpack.c.l.b16 %v2600
    %v2623 = vunpack.c.h.b16 %v2600
    %v2624 = vunpack.c.l.b16 %v2601
    %v2625 = vunpack.c.h.b16 %v2601
    %v2626 = vpack.c.b16 %v2612, %v2610
    %v2627 = vpack.c.b16 %v2613, %v2611
    %v2628 = vpack.c.b16 %v2616, %v2614
    %v2629 = vpack.c.b16 %v2617, %v2615
    %v2630 = vpack.c.b16 %v2620, %v2618
    %v2631 = vpack.c.b16 %v2621, %v2619
    %v2632 = vpack.c.b16 %v2624, %v2622
    %v2633 = vpack.c.b16 %v2625, %v2623
    %v2643 = vsel %vm107, %v2591, 0
    %v2646 = vsel %vm107, %v2592, 0
    %2648 = vmatpush.bf16.msra.mxu0 0
    %2649 = vmatpush.bf16.msra.mxu0 0
    %2650 = vmatpush.bf16.msra.mxu0 0
    %2651 = vmatpush.bf16.msra.mxu0 0
    %2652 = vmatpush.bf16.msra.mxu0 %v2632
    %2653 = vmatpush.bf16.msra.mxu0 %v2630
    %2654 = vmatpush.bf16.msra.mxu0 %v2628
    %2655 = vmatpush.bf16.msra.mxu0 %v2626
    %2656 = vmatmul.bf16.gmra.mxu0 %v2643
    %v2657 = vpop.f32.mrf.mxu0
    %v2658 = vadd.f32 0.0, %v2657
    %v2659 = vpop.f32.mrf.mxu0
    %v2660 = vadd.f32 0.0, %v2659
    %2661 = vmatmul.bf16.gmra.mxu0 %v2646
    %v2662 = vpop.f32.mrf.mxu0
    %v2663 = vadd.f32 0.0, %v2662
    %v2664 = vpop.f32.mrf.mxu0
    %v2665 = vadd.f32 0.0, %v2664
    %2666 = vdwg.mxu0
    %2667 = vmatpush.bf16.msra.mxu0 0
    %2668 = vmatpush.bf16.msra.mxu0 0
    %2669 = vmatpush.bf16.msra.mxu0 0
    %2670 = vmatpush.bf16.msra.mxu0 0
    %2671 = vmatpush.bf16.msra.mxu0 %v2633
    %2672 = vmatpush.bf16.msra.mxu0 %v2631
    %2673 = vmatpush.bf16.msra.mxu0 %v2629
    %2674 = vmatpush.bf16.msra.mxu0 %v2627
    %2675 = vmatmul.bf16.gmra.mxu0 %v2643
    %v2676 = vpop.f32.mrf.mxu0
    %v2677 = vadd.f32 0.0, %v2676
    %v2678 = vpop.f32.mrf.mxu0
    %v2679 = vadd.f32 0.0, %v2678
    %2680 = vmatmul.bf16.gmra.mxu0 %v2646
    %v2681 = vpop.f32.mrf.mxu0
    %v2682 = vadd.f32 0.0, %v2681
    %v2683 = vpop.f32.mrf.mxu0
    %v2684 = vadd.f32 0.0, %v2683
    %2685 = vdwg.mxu0
    %2690 = vrot.lane.b32.xlu0 %v2658, 64
    %v2691 = vpop.permute.xlu0 %2690
    %2692 = vrot.lane.b32.xlu0 %v2660, 64
    %v2693 = vpop.permute.xlu0 %2692
    %2694 = vrot.lane.b32.xlu0 %v2663, 64
    %v2695 = vpop.permute.xlu0 %2694
    %2696 = vrot.lane.b32.xlu0 %v2665, 64
    %v2697 = vpop.permute.xlu0 %2696
    %v2698 = vsel %vm317, %v2658, 0
    %v2700 = vsel %vm317, %v2660, 0
    %v2702 = vsel %vm317, %v2663, 0
    %v2704 = vsel %vm317, %v2665, 0
    %v2706 = vsel %vm317, %v2691, 0
    %v2708 = vsel %vm317, %v2693, 0
    %v2710 = vsel %vm317, %v2695, 0
    %v2712 = vsel %vm317, %v2697, 0
    %2714 = vmatpush.xpose.msra.mxu0 0.0
    %2715 = vmatpush.xpose.msra.mxu0 0.0
    %2716 = vmatpush.xpose.msra.mxu0 0.0
    %2717 = vmatpush.xpose.msra.mxu0 0.0
    %2718 = vmatpush.xpose.msra.mxu0 0.0
    %2719 = vmatpush.xpose.msra.mxu0 0.0
    %2720 = vmatpush.xpose.msra.mxu0 0.0
    %2721 = vmatpush.xpose.msra.mxu0 0.0
    %2722 = vmatpush.xpose.msra.mxu0 0.0
    %2723 = vmatpush.xpose.msra.mxu0 0.0
    %2724 = vmatpush.xpose.msra.mxu0 0.0
    %2725 = vmatpush.xpose.msra.mxu0 0.0
    %2726 = vmatpush.xpose.msra.mxu0 %v2712
    %2727 = vmatpush.xpose.msra.mxu0 %v2710
    %2728 = vmatpush.xpose.msra.mxu0 %v2708
    %2729 = vmatpush.xpose.msra.mxu0 %v2706
    %2730 = vmatmul.f32.gmra.mxu0 %v2698
    %v2731 = vpop.f32.mrf.mxu0
    %v2732 = vadd.f32 0.0, %v2731
    %2733 = vmatmul.f32.gmra.mxu0 %v2700
    %v2734 = vpop.f32.mrf.mxu0
    %v2735 = vadd.f32 0.0, %v2734
    %2736 = vmatmul.f32.gmra.mxu0 %v2702
    %v2737 = vpop.f32.mrf.mxu0
    %v2738 = vadd.f32 0.0, %v2737
    %2739 = vmatmul.f32.gmra.mxu0 %v2704
    %v2740 = vpop.f32.mrf.mxu0
    %v2741 = vadd.f32 0.0, %v2740
    %2742 = vdwg.mxu0
    %v2743 = vmul.f32 %v2732, 0.25
    %v2744 = vmul.f32 %v2735, 0.25
    %v2745 = vmul.f32 %v2738, 0.25
    %v2746 = vmul.f32 %v2741, 0.25
    %v2747 = vadd.f32 %v2743, %v122
    %v2748 = vadd.f32 %v2744, %v123
    %v2749 = vadd.f32 %v2745, %v124
    %v2750 = vadd.f32 %v2746, %v125
    %v2751 = vsel %vm371, %v2747, -inf
    %2752 = vmax.xlane.f32.xlu0 %v2751
    %v2753 = vpop.xlane.xlu0 %2752
    %v2754 = vsel %vm371, %v2748, -inf
    %2755 = vmax.xlane.f32.xlu0 %v2754
    %v2756 = vpop.xlane.xlu0 %2755
    %v2757 = vsel %vm371, %v2749, -inf
    %2758 = vmax.xlane.f32.xlu0 %v2757
    %v2759 = vpop.xlane.xlu0 %2758
    %v2760 = vsel %vm371, %v2750, -inf
    %2761 = vmax.xlane.f32.xlu0 %v2760
    %v2762 = vpop.xlane.xlu0 %2761
    %v2763 = vsub.f32 %v2747, %v2753
    %v2764 = vsub.f32 %v2748, %v2756
    %v2765 = vsub.f32 %v2749, %v2759
    %v2766 = vsub.f32 %v2750, %v2762
    %v2767 = vmul.f32 %v2763, 1.442695
    %v2768 = vpow.pop %v2767
    %v2769 = vmul.f32 %v2764, 1.442695
    %v2770 = vpow.pop %v2769
    %v2771 = vmul.f32 %v2765, 1.442695
    %v2772 = vpow.pop %v2771
    %v2773 = vmul.f32 %v2766, 1.442695
    %v2774 = vpow.pop %v2773
    %v2775 = vsel %vm371, %v2768, 0.0
    %2776 = vadd.xlane.f32.xlu0 %v2775
    %v2777 = vpop.xlane.xlu0 %2776
    %v2778 = vsel %vm371, %v2770, 0.0
    %2779 = vadd.xlane.f32.xlu0 %v2778
    %v2780 = vpop.xlane.xlu0 %2779
    %v2781 = vsel %vm371, %v2772, 0.0
    %2782 = vadd.xlane.f32.xlu0 %v2781
    %v2783 = vpop.xlane.xlu0 %2782
    %v2784 = vsel %vm371, %v2774, 0.0
    %2785 = vadd.xlane.f32.xlu0 %v2784
    %v2786 = vpop.xlane.xlu0 %2785
    %v2787 = vrcp.pop %v2777
    %v2788 = vrcp.pop %v2780
    %v2789 = vrcp.pop %v2783
    %v2790 = vrcp.pop %v2786
    %v2791 = vmul.f32 %v2768, %v2787
    %v2792 = vmul.f32 %v2770, %v2788
    %v2793 = vmul.f32 %v2772, %v2789
    %v2794 = vmul.f32 %v2774, %v2790
    %v2796 = vsel %vm371, %v2791, 0
    %v2799 = vsel %vm371, %v2792, 0
    %v2802 = vsel %vm371, %v2793, 0
    %v2805 = vsel %vm371, %v2794, 0
    %2807 = vmatpush.msra.mxu0 0.0
    %2808 = vmatpush.msra.mxu0 0.0
    %2809 = vmatpush.msra.mxu0 0.0
    %2810 = vmatpush.msra.mxu0 0.0
    %2811 = vmatpush.msra.mxu0 0.0
    %2812 = vmatpush.msra.mxu0 0.0
    %2813 = vmatpush.msra.mxu0 0.0
    %2814 = vmatpush.msra.mxu0 0.0
    %2815 = vmatpush.msra.mxu0 0.0
    %2816 = vmatpush.msra.mxu0 0.0
    %2817 = vmatpush.msra.mxu0 0.0
    %2818 = vmatpush.msra.mxu0 0.0
    %2819 = vmatpush.msra.mxu0 %v2684
    %2820 = vmatpush.msra.mxu0 %v2682
    %2821 = vmatpush.msra.mxu0 %v2679
    %2822 = vmatpush.msra.mxu0 %v2677
    %2823 = vmatmul.f32.gmra.mxu0 %v2796
    %v2824 = vpop.f32.mrf.mxu0
    %v2825 = vadd.f32 0.0, %v2824
    %2826 = vmatmul.f32.gmra.mxu0 %v2799
    %v2827 = vpop.f32.mrf.mxu0
    %v2828 = vadd.f32 0.0, %v2827
    %2829 = vmatmul.f32.gmra.mxu0 %v2802
    %v2830 = vpop.f32.mrf.mxu0
    %v2831 = vadd.f32 0.0, %v2830
    %2832 = vmatmul.f32.gmra.mxu0 %v2805
    %v2833 = vpop.f32.mrf.mxu0
    %v2834 = vadd.f32 0.0, %v2833
    %2835 = vdwg.mxu0
    %2836 = vrot.lane.b32.xlu0 %v2658, 112
    %v2837 = vpop.permute.xlu0 %2836
    %2838 = vrot.lane.b32.xlu0 %v2660, 112
    %v2839 = vpop.permute.xlu0 %2838
    %2840 = vrot.lane.b32.xlu0 %v2663, 112
    %v2841 = vpop.permute.xlu0 %2840
    %2842 = vrot.lane.b32.xlu0 %v2665, 112
    %v2843 = vpop.permute.xlu0 %2842
    %2844 = vrot.lane.b32.xlu0 %v2658, 48
    %v2845 = vpop.permute.xlu0 %2844
    %2846 = vrot.lane.b32.xlu0 %v2660, 48
    %v2847 = vpop.permute.xlu0 %2846
    %2848 = vrot.lane.b32.xlu0 %v2663, 48
    %v2849 = vpop.permute.xlu0 %2848
    %2850 = vrot.lane.b32.xlu0 %v2665, 48
    %v2851 = vpop.permute.xlu0 %2850
    %v2852 = vsel %vm317, %v2837, 0
    %v2854 = vsel %vm317, %v2839, 0
    %v2856 = vsel %vm317, %v2841, 0
    %v2858 = vsel %vm317, %v2843, 0
    %v2860 = vsel %vm317, %v2845, 0
    %v2862 = vsel %vm317, %v2847, 0
    %v2864 = vsel %vm317, %v2849, 0
    %v2866 = vsel %vm317, %v2851, 0
    %2868 = vmatpush.xpose.msra.mxu0 0.0
    %2869 = vmatpush.xpose.msra.mxu0 0.0
    %2870 = vmatpush.xpose.msra.mxu0 0.0
    %2871 = vmatpush.xpose.msra.mxu0 0.0
    %2872 = vmatpush.xpose.msra.mxu0 0.0
    %2873 = vmatpush.xpose.msra.mxu0 0.0
    %2874 = vmatpush.xpose.msra.mxu0 0.0
    %2875 = vmatpush.xpose.msra.mxu0 0.0
    %2876 = vmatpush.xpose.msra.mxu0 0.0
    %2877 = vmatpush.xpose.msra.mxu0 0.0
    %2878 = vmatpush.xpose.msra.mxu0 0.0
    %2879 = vmatpush.xpose.msra.mxu0 0.0
    %2880 = vmatpush.xpose.msra.mxu0 %v2866
    %2881 = vmatpush.xpose.msra.mxu0 %v2864
    %2882 = vmatpush.xpose.msra.mxu0 %v2862
    %2883 = vmatpush.xpose.msra.mxu0 %v2860
    %2884 = vmatmul.f32.gmra.mxu0 %v2852
    %v2885 = vpop.f32.mrf.mxu0
    %v2886 = vadd.f32 0.0, %v2885
    %2887 = vmatmul.f32.gmra.mxu0 %v2854
    %v2888 = vpop.f32.mrf.mxu0
    %v2889 = vadd.f32 0.0, %v2888
    %2890 = vmatmul.f32.gmra.mxu0 %v2856
    %v2891 = vpop.f32.mrf.mxu0
    %v2892 = vadd.f32 0.0, %v2891
    %2893 = vmatmul.f32.gmra.mxu0 %v2858
    %v2894 = vpop.f32.mrf.mxu0
    %v2895 = vadd.f32 0.0, %v2894
    %2896 = vdwg.mxu0
    %v2897 = vmul.f32 %v2886, 0.25
    %v2898 = vmul.f32 %v2889, 0.25
    %v2899 = vmul.f32 %v2892, 0.25
    %v2900 = vmul.f32 %v2895, 0.25
    %v2901 = vadd.f32 %v2897, %v122
    %v2902 = vadd.f32 %v2898, %v123
    %v2903 = vadd.f32 %v2899, %v124
    %v2904 = vadd.f32 %v2900, %v125
    %v2905 = vsel %vm371, %v2901, -inf
    %2906 = vmax.xlane.f32.xlu0 %v2905
    %v2907 = vpop.xlane.xlu0 %2906
    %v2908 = vsel %vm371, %v2902, -inf
    %2909 = vmax.xlane.f32.xlu0 %v2908
    %v2910 = vpop.xlane.xlu0 %2909
    %v2911 = vsel %vm371, %v2903, -inf
    %2912 = vmax.xlane.f32.xlu0 %v2911
    %v2913 = vpop.xlane.xlu0 %2912
    %v2914 = vsel %vm371, %v2904, -inf
    %2915 = vmax.xlane.f32.xlu0 %v2914
    %v2916 = vpop.xlane.xlu0 %2915
    %v2917 = vsub.f32 %v2901, %v2907
    %v2918 = vsub.f32 %v2902, %v2910
    %v2919 = vsub.f32 %v2903, %v2913
    %v2920 = vsub.f32 %v2904, %v2916
    %v2921 = vmul.f32 %v2917, 1.442695
    %v2922 = vpow.pop %v2921
    %v2923 = vmul.f32 %v2918, 1.442695
    %v2924 = vpow.pop %v2923
    %v2925 = vmul.f32 %v2919, 1.442695
    %v2926 = vpow.pop %v2925
    %v2927 = vmul.f32 %v2920, 1.442695
    %v2928 = vpow.pop %v2927
    %v2929 = vsel %vm371, %v2922, 0.0
    %2930 = vadd.xlane.f32.xlu0 %v2929
    %v2931 = vpop.xlane.xlu0 %2930
    %v2932 = vsel %vm371, %v2924, 0.0
    %2933 = vadd.xlane.f32.xlu0 %v2932
    %v2934 = vpop.xlane.xlu0 %2933
    %v2935 = vsel %vm371, %v2926, 0.0
    %2936 = vadd.xlane.f32.xlu0 %v2935
    %v2937 = vpop.xlane.xlu0 %2936
    %v2938 = vsel %vm371, %v2928, 0.0
    %2939 = vadd.xlane.f32.xlu0 %v2938
    %v2940 = vpop.xlane.xlu0 %2939
    %v2941 = vrcp.pop %v2931
    %v2942 = vrcp.pop %v2934
    %v2943 = vrcp.pop %v2937
    %v2944 = vrcp.pop %v2940
    %v2945 = vmul.f32 %v2922, %v2941
    %v2946 = vmul.f32 %v2924, %v2942
    %v2947 = vmul.f32 %v2926, %v2943
    %v2948 = vmul.f32 %v2928, %v2944
    %2953 = vrot.lane.b32.xlu0 %v2677, 112
    %v2954 = vpop.permute.xlu0 %2953
    %2955 = vrot.lane.b32.xlu0 %v2679, 112
    %v2956 = vpop.permute.xlu0 %2955
    %2957 = vrot.lane.b32.xlu0 %v2682, 112
    %v2958 = vpop.permute.xlu0 %2957
    %2959 = vrot.lane.b32.xlu0 %v2684, 112
    %v2960 = vpop.permute.xlu0 %2959
    %v2966 = vsel %vm371, %v2945, 0
    %v2969 = vsel %vm371, %v2946, 0
    %v2972 = vsel %vm371, %v2947, 0
    %v2975 = vsel %vm371, %v2948, 0
    %2977 = vmatpush.msra.mxu0 0.0
    %2978 = vmatpush.msra.mxu0 0.0
    %2979 = vmatpush.msra.mxu0 0.0
    %2980 = vmatpush.msra.mxu0 0.0
    %2981 = vmatpush.msra.mxu0 0.0
    %2982 = vmatpush.msra.mxu0 0.0
    %2983 = vmatpush.msra.mxu0 0.0
    %2984 = vmatpush.msra.mxu0 0.0
    %2985 = vmatpush.msra.mxu0 0.0
    %2986 = vmatpush.msra.mxu0 0.0
    %2987 = vmatpush.msra.mxu0 0.0
    %2988 = vmatpush.msra.mxu0 0.0
    %2989 = vmatpush.msra.mxu0 %v2960
    %2990 = vmatpush.msra.mxu0 %v2958
    %2991 = vmatpush.msra.mxu0 %v2956
    %2992 = vmatpush.msra.mxu0 %v2954
    %2993 = vmatmul.f32.gmra.mxu0 %v2966
    %v2994 = vpop.f32.mrf.mxu0
    %v2995 = vadd.f32 0.0, %v2994
    %2996 = vmatmul.f32.gmra.mxu0 %v2969
    %v2997 = vpop.f32.mrf.mxu0
    %v2998 = vadd.f32 0.0, %v2997
    %2999 = vmatmul.f32.gmra.mxu0 %v2972
    %v3000 = vpop.f32.mrf.mxu0
    %v3001 = vadd.f32 0.0, %v3000
    %3002 = vmatmul.f32.gmra.mxu0 %v2975
    %v3003 = vpop.f32.mrf.mxu0
    %v3004 = vadd.f32 0.0, %v3003
    %3005 = vdwg.mxu0
    %3006 = vrot.lane.b32.xlu0 %v2658, 96
    %v3007 = vpop.permute.xlu0 %3006
    %3008 = vrot.lane.b32.xlu0 %v2660, 96
    %v3009 = vpop.permute.xlu0 %3008
    %3010 = vrot.lane.b32.xlu0 %v2663, 96
    %v3011 = vpop.permute.xlu0 %3010
    %3012 = vrot.lane.b32.xlu0 %v2665, 96
    %v3013 = vpop.permute.xlu0 %3012
    %3014 = vrot.lane.b32.xlu0 %v2658, 32
    %v3015 = vpop.permute.xlu0 %3014
    %3016 = vrot.lane.b32.xlu0 %v2660, 32
    %v3017 = vpop.permute.xlu0 %3016
    %3018 = vrot.lane.b32.xlu0 %v2663, 32
    %v3019 = vpop.permute.xlu0 %3018
    %3020 = vrot.lane.b32.xlu0 %v2665, 32
    %v3021 = vpop.permute.xlu0 %3020
    %v3022 = vsel %vm317, %v3007, 0
    %v3024 = vsel %vm317, %v3009, 0
    %v3026 = vsel %vm317, %v3011, 0
    %v3028 = vsel %vm317, %v3013, 0
    %v3030 = vsel %vm317, %v3015, 0
    %v3032 = vsel %vm317, %v3017, 0
    %v3034 = vsel %vm317, %v3019, 0
    %v3036 = vsel %vm317, %v3021, 0
    %3038 = vmatpush.xpose.msra.mxu0 0.0
    %3039 = vmatpush.xpose.msra.mxu0 0.0
    %3040 = vmatpush.xpose.msra.mxu0 0.0
    %3041 = vmatpush.xpose.msra.mxu0 0.0
    %3042 = vmatpush.xpose.msra.mxu0 0.0
    %3043 = vmatpush.xpose.msra.mxu0 0.0
    %3044 = vmatpush.xpose.msra.mxu0 0.0
    %3045 = vmatpush.xpose.msra.mxu0 0.0
    %3046 = vmatpush.xpose.msra.mxu0 0.0
    %3047 = vmatpush.xpose.msra.mxu0 0.0
    %3048 = vmatpush.xpose.msra.mxu0 0.0
    %3049 = vmatpush.xpose.msra.mxu0 0.0
    %3050 = vmatpush.xpose.msra.mxu0 %v3036
    %3051 = vmatpush.xpose.msra.mxu0 %v3034
    %3052 = vmatpush.xpose.msra.mxu0 %v3032
    %3053 = vmatpush.xpose.msra.mxu0 %v3030
    %3054 = vmatmul.f32.gmra.mxu0 %v3022
    %v3055 = vpop.f32.mrf.mxu0
    %v3056 = vadd.f32 0.0, %v3055
    %3057 = vmatmul.f32.gmra.mxu0 %v3024
    %v3058 = vpop.f32.mrf.mxu0
    %v3059 = vadd.f32 0.0, %v3058
    %3060 = vmatmul.f32.gmra.mxu0 %v3026
    %v3061 = vpop.f32.mrf.mxu0
    %v3062 = vadd.f32 0.0, %v3061
    %3063 = vmatmul.f32.gmra.mxu0 %v3028
    %v3064 = vpop.f32.mrf.mxu0
    %v3065 = vadd.f32 0.0, %v3064
    %3066 = vdwg.mxu0
    %v3067 = vmul.f32 %v3056, 0.25
    %v3068 = vmul.f32 %v3059, 0.25
    %v3069 = vmul.f32 %v3062, 0.25
    %v3070 = vmul.f32 %v3065, 0.25
    %v3071 = vadd.f32 %v3067, %v122
    %v3072 = vadd.f32 %v3068, %v123
    %v3073 = vadd.f32 %v3069, %v124
    %v3074 = vadd.f32 %v3070, %v125
    %v3075 = vsel %vm371, %v3071, -inf
    %3076 = vmax.xlane.f32.xlu0 %v3075
    %v3077 = vpop.xlane.xlu0 %3076
    %v3078 = vsel %vm371, %v3072, -inf
    %3079 = vmax.xlane.f32.xlu0 %v3078
    %v3080 = vpop.xlane.xlu0 %3079
    %v3081 = vsel %vm371, %v3073, -inf
    %3082 = vmax.xlane.f32.xlu0 %v3081
    %v3083 = vpop.xlane.xlu0 %3082
    %v3084 = vsel %vm371, %v3074, -inf
    %3085 = vmax.xlane.f32.xlu0 %v3084
    %v3086 = vpop.xlane.xlu0 %3085
    %v3087 = vsub.f32 %v3071, %v3077
    %v3088 = vsub.f32 %v3072, %v3080
    %v3089 = vsub.f32 %v3073, %v3083
    %v3090 = vsub.f32 %v3074, %v3086
    %v3091 = vmul.f32 %v3087, 1.442695
    %v3092 = vpow.pop %v3091
    %v3093 = vmul.f32 %v3088, 1.442695
    %v3094 = vpow.pop %v3093
    %v3095 = vmul.f32 %v3089, 1.442695
    %v3096 = vpow.pop %v3095
    %v3097 = vmul.f32 %v3090, 1.442695
    %v3098 = vpow.pop %v3097
    %v3099 = vsel %vm371, %v3092, 0.0
    %3100 = vadd.xlane.f32.xlu0 %v3099
    %v3101 = vpop.xlane.xlu0 %3100
    %v3102 = vsel %vm371, %v3094, 0.0
    %3103 = vadd.xlane.f32.xlu0 %v3102
    %v3104 = vpop.xlane.xlu0 %3103
    %v3105 = vsel %vm371, %v3096, 0.0
    %3106 = vadd.xlane.f32.xlu0 %v3105
    %v3107 = vpop.xlane.xlu0 %3106
    %v3108 = vsel %vm371, %v3098, 0.0
    %3109 = vadd.xlane.f32.xlu0 %v3108
    %v3110 = vpop.xlane.xlu0 %3109
    %v3111 = vrcp.pop %v3101
    %v3112 = vrcp.pop %v3104
    %v3113 = vrcp.pop %v3107
    %v3114 = vrcp.pop %v3110
    %v3115 = vmul.f32 %v3092, %v3111
    %v3116 = vmul.f32 %v3094, %v3112
    %v3117 = vmul.f32 %v3096, %v3113
    %v3118 = vmul.f32 %v3098, %v3114
    %3119 = vrot.lane.b32.xlu0 %v2677, 96
    %v3120 = vpop.permute.xlu0 %3119
    %3121 = vrot.lane.b32.xlu0 %v2679, 96
    %v3122 = vpop.permute.xlu0 %3121
    %3123 = vrot.lane.b32.xlu0 %v2682, 96
    %v3124 = vpop.permute.xlu0 %3123
    %3125 = vrot.lane.b32.xlu0 %v2684, 96
    %v3126 = vpop.permute.xlu0 %3125
    %v3132 = vsel %vm371, %v3115, 0
    %v3135 = vsel %vm371, %v3116, 0
    %v3138 = vsel %vm371, %v3117, 0
    %v3141 = vsel %vm371, %v3118, 0
    %3143 = vmatpush.msra.mxu0 0.0
    %3144 = vmatpush.msra.mxu0 0.0
    %3145 = vmatpush.msra.mxu0 0.0
    %3146 = vmatpush.msra.mxu0 0.0
    %3147 = vmatpush.msra.mxu0 0.0
    %3148 = vmatpush.msra.mxu0 0.0
    %3149 = vmatpush.msra.mxu0 0.0
    %3150 = vmatpush.msra.mxu0 0.0
    %3151 = vmatpush.msra.mxu0 0.0
    %3152 = vmatpush.msra.mxu0 0.0
    %3153 = vmatpush.msra.mxu0 0.0
    %3154 = vmatpush.msra.mxu0 0.0
    %3155 = vmatpush.msra.mxu0 %v3126
    %3156 = vmatpush.msra.mxu0 %v3124
    %3157 = vmatpush.msra.mxu0 %v3122
    %3158 = vmatpush.msra.mxu0 %v3120
    %3159 = vmatmul.f32.gmra.mxu0 %v3132
    %v3160 = vpop.f32.mrf.mxu0
    %v3161 = vadd.f32 0.0, %v3160
    %3162 = vmatmul.f32.gmra.mxu0 %v3135
    %v3163 = vpop.f32.mrf.mxu0
    %v3164 = vadd.f32 0.0, %v3163
    %3165 = vmatmul.f32.gmra.mxu0 %v3138
    %v3166 = vpop.f32.mrf.mxu0
    %v3167 = vadd.f32 0.0, %v3166
    %3168 = vmatmul.f32.gmra.mxu0 %v3141
    %v3169 = vpop.f32.mrf.mxu0
    %v3170 = vadd.f32 0.0, %v3169
    %3171 = vdwg.mxu0
    %3172 = vrot.lane.b32.xlu0 %v2658, 80
    %v3173 = vpop.permute.xlu0 %3172
    %3174 = vrot.lane.b32.xlu0 %v2660, 80
    %v3175 = vpop.permute.xlu0 %3174
    %3176 = vrot.lane.b32.xlu0 %v2663, 80
    %v3177 = vpop.permute.xlu0 %3176
    %3178 = vrot.lane.b32.xlu0 %v2665, 80
    %v3179 = vpop.permute.xlu0 %3178
    %3180 = vrot.lane.b32.xlu0 %v2658, 16
    %v3181 = vpop.permute.xlu0 %3180
    %3182 = vrot.lane.b32.xlu0 %v2660, 16
    %v3183 = vpop.permute.xlu0 %3182
    %3184 = vrot.lane.b32.xlu0 %v2663, 16
    %v3185 = vpop.permute.xlu0 %3184
    %3186 = vrot.lane.b32.xlu0 %v2665, 16
    %v3187 = vpop.permute.xlu0 %3186
    %v3188 = vsel %vm317, %v3173, 0
    %v3190 = vsel %vm317, %v3175, 0
    %v3192 = vsel %vm317, %v3177, 0
    %v3194 = vsel %vm317, %v3179, 0
    %v3196 = vsel %vm317, %v3181, 0
    %v3198 = vsel %vm317, %v3183, 0
    %v3200 = vsel %vm317, %v3185, 0
    %v3202 = vsel %vm317, %v3187, 0
    %3204 = vmatpush.xpose.msra.mxu0 0.0
    %3205 = vmatpush.xpose.msra.mxu0 0.0
    %3206 = vmatpush.xpose.msra.mxu0 0.0
    %3207 = vmatpush.xpose.msra.mxu0 0.0
    %3208 = vmatpush.xpose.msra.mxu0 0.0
    %3209 = vmatpush.xpose.msra.mxu0 0.0
    %3210 = vmatpush.xpose.msra.mxu0 0.0
    %3211 = vmatpush.xpose.msra.mxu0 0.0
    %3212 = vmatpush.xpose.msra.mxu0 0.0
    %3213 = vmatpush.xpose.msra.mxu0 0.0
    %3214 = vmatpush.xpose.msra.mxu0 0.0
    %3215 = vmatpush.xpose.msra.mxu0 0.0
    %3216 = vmatpush.xpose.msra.mxu0 %v3202
    %3217 = vmatpush.xpose.msra.mxu0 %v3200
    %3218 = vmatpush.xpose.msra.mxu0 %v3198
    %3219 = vmatpush.xpose.msra.mxu0 %v3196
    %3220 = vmatmul.f32.gmra.mxu0 %v3188
    %v3221 = vpop.f32.mrf.mxu0
    %v3222 = vadd.f32 0.0, %v3221
    %3223 = vmatmul.f32.gmra.mxu0 %v3190
    %v3224 = vpop.f32.mrf.mxu0
    %v3225 = vadd.f32 0.0, %v3224
    %3226 = vmatmul.f32.gmra.mxu0 %v3192
    %v3227 = vpop.f32.mrf.mxu0
    %v3228 = vadd.f32 0.0, %v3227
    %3229 = vmatmul.f32.gmra.mxu0 %v3194
    %v3230 = vpop.f32.mrf.mxu0
    %v3231 = vadd.f32 0.0, %v3230
    %3232 = vdwg.mxu0
    %v3233 = vmul.f32 %v3222, 0.25
    %v3234 = vmul.f32 %v3225, 0.25
    %v3235 = vmul.f32 %v3228, 0.25
    %v3236 = vmul.f32 %v3231, 0.25
    %v3237 = vadd.f32 %v3233, %v122
    %v3238 = vadd.f32 %v3234, %v123
    %v3239 = vadd.f32 %v3235, %v124
    %v3240 = vadd.f32 %v3236, %v125
    %v3241 = vsel %vm371, %v3237, -inf
    %3242 = vmax.xlane.f32.xlu0 %v3241
    %v3243 = vpop.xlane.xlu0 %3242
    %v3244 = vsel %vm371, %v3238, -inf
    %3245 = vmax.xlane.f32.xlu0 %v3244
    %v3246 = vpop.xlane.xlu0 %3245
    %v3247 = vsel %vm371, %v3239, -inf
    %3248 = vmax.xlane.f32.xlu0 %v3247
    %v3249 = vpop.xlane.xlu0 %3248
    %v3250 = vsel %vm371, %v3240, -inf
    %3251 = vmax.xlane.f32.xlu0 %v3250
    %v3252 = vpop.xlane.xlu0 %3251
    %v3253 = vsub.f32 %v3237, %v3243
    %v3254 = vsub.f32 %v3238, %v3246
    %v3255 = vsub.f32 %v3239, %v3249
    %v3256 = vsub.f32 %v3240, %v3252
    %v3257 = vmul.f32 %v3253, 1.442695
    %v3258 = vpow.pop %v3257
    %v3259 = vmul.f32 %v3254, 1.442695
    %v3260 = vpow.pop %v3259
    %v3261 = vmul.f32 %v3255, 1.442695
    %v3262 = vpow.pop %v3261
    %v3263 = vmul.f32 %v3256, 1.442695
    %v3264 = vpow.pop %v3263
    %v3265 = vsel %vm371, %v3258, 0.0
    %3266 = vadd.xlane.f32.xlu0 %v3265
    %v3267 = vpop.xlane.xlu0 %3266
    %v3268 = vsel %vm371, %v3260, 0.0
    %3269 = vadd.xlane.f32.xlu0 %v3268
    %v3270 = vpop.xlane.xlu0 %3269
    %v3271 = vsel %vm371, %v3262, 0.0
    %3272 = vadd.xlane.f32.xlu0 %v3271
    %v3273 = vpop.xlane.xlu0 %3272
    %v3274 = vsel %vm371, %v3264, 0.0
    %3275 = vadd.xlane.f32.xlu0 %v3274
    %v3276 = vpop.xlane.xlu0 %3275
    %v3277 = vrcp.pop %v3267
    %v3278 = vrcp.pop %v3270
    %v3279 = vrcp.pop %v3273
    %v3280 = vrcp.pop %v3276
    %v3281 = vmul.f32 %v3258, %v3277
    %v3282 = vmul.f32 %v3260, %v3278
    %v3283 = vmul.f32 %v3262, %v3279
    %v3284 = vmul.f32 %v3264, %v3280
    %3285 = vrot.lane.b32.xlu0 %v2677, 80
    %v3286 = vpop.permute.xlu0 %3285
    %3287 = vrot.lane.b32.xlu0 %v2679, 80
    %v3288 = vpop.permute.xlu0 %3287
    %3289 = vrot.lane.b32.xlu0 %v2682, 80
    %v3290 = vpop.permute.xlu0 %3289
    %3291 = vrot.lane.b32.xlu0 %v2684, 80
    %v3292 = vpop.permute.xlu0 %3291
    %v3298 = vsel %vm371, %v3281, 0
    %v3301 = vsel %vm371, %v3282, 0
    %v3304 = vsel %vm371, %v3283, 0
    %v3307 = vsel %vm371, %v3284, 0
    %3309 = vmatpush.msra.mxu0 0.0
    %3310 = vmatpush.msra.mxu0 0.0
    %3311 = vmatpush.msra.mxu0 0.0
    %3312 = vmatpush.msra.mxu0 0.0
    %3313 = vmatpush.msra.mxu0 0.0
    %3314 = vmatpush.msra.mxu0 0.0
    %3315 = vmatpush.msra.mxu0 0.0
    %3316 = vmatpush.msra.mxu0 0.0
    %3317 = vmatpush.msra.mxu0 0.0
    %3318 = vmatpush.msra.mxu0 0.0
    %3319 = vmatpush.msra.mxu0 0.0
    %3320 = vmatpush.msra.mxu0 0.0
    %3321 = vmatpush.msra.mxu0 %v3292
    %3322 = vmatpush.msra.mxu0 %v3290
    %3323 = vmatpush.msra.mxu0 %v3288
    %3324 = vmatpush.msra.mxu0 %v3286
    %3325 = vmatmul.f32.gmra.mxu0 %v3298
    %v3326 = vpop.f32.mrf.mxu0
    %v3327 = vadd.f32 0.0, %v3326
    %3328 = vmatmul.f32.gmra.mxu0 %v3301
    %v3329 = vpop.f32.mrf.mxu0
    %v3330 = vadd.f32 0.0, %v3329
    %3331 = vmatmul.f32.gmra.mxu0 %v3304
    %v3332 = vpop.f32.mrf.mxu0
    %v3333 = vadd.f32 0.0, %v3332
    %3334 = vmatmul.f32.gmra.mxu0 %v3307
    %v3335 = vpop.f32.mrf.mxu0
    %v3336 = vadd.f32 0.0, %v3335
    %3337 = vdwg.mxu0
    %3342 = vrot.lane.b32.xlu0 %v2995, 16
    %v3343 = vpop.permute.xlu0 %3342
    %3344 = vrot.lane.b32.xlu0 %v2998, 16
    %v3345 = vpop.permute.xlu0 %3344
    %3346 = vrot.lane.b32.xlu0 %v3001, 16
    %v3347 = vpop.permute.xlu0 %3346
    %3348 = vrot.lane.b32.xlu0 %v3004, 16
    %v3349 = vpop.permute.xlu0 %3348
    %3358 = vrot.lane.b32.xlu0 %v3161, 32
    %v3359 = vpop.permute.xlu0 %3358
    %3360 = vrot.lane.b32.xlu0 %v3164, 32
    %v3361 = vpop.permute.xlu0 %3360
    %3362 = vrot.lane.b32.xlu0 %v3167, 32
    %v3363 = vpop.permute.xlu0 %3362
    %3364 = vrot.lane.b32.xlu0 %v3170, 32
    %v3365 = vpop.permute.xlu0 %3364
    %3374 = vrot.lane.b32.xlu0 %v3327, 48
    %v3375 = vpop.permute.xlu0 %3374
    %3376 = vrot.lane.b32.xlu0 %v3330, 48
    %v3377 = vpop.permute.xlu0 %3376
    %3378 = vrot.lane.b32.xlu0 %v3333, 48
    %v3379 = vpop.permute.xlu0 %3378
    %3380 = vrot.lane.b32.xlu0 %v3336, 48
    %v3381 = vpop.permute.xlu0 %3380
    %v3386 = vsel %vm317, %v2825, %v3343
    %v3387 = vsel %vm317, %v2828, %v3345
    %v3388 = vsel %vm317, %v2831, %v3347
    %v3389 = vsel %vm317, %v2834, %v3349
    %v3390 = vsel %vm371, %v3386, %v3359
    %v3391 = vsel %vm371, %v3387, %v3361
    %v3392 = vsel %vm371, %v3388, %v3363
    %v3393 = vsel %vm371, %v3389, %v3365
    %v3394 = vsel %vm1015, %v3390, %v3375
    %v3395 = vsel %vm1015, %v3391, %v3377
    %v3396 = vsel %vm1015, %v3392, %v3379
    %v3397 = vsel %vm1015, %v3393, %v3381
    %v3398 = vpack.c.bf16 %v3395, %v3394
    %v3399 = vpack.c.bf16 %v3397, %v3396
    %s3400 = scalar_lea.vmem %s9, 32
    %v3401 = vld [vmem:[%s3400] sm:$0xf]
    %v3402 = vld [vmem:[%s3400 + $0x4] sm:$0xf]
    %v3403 = vld [vmem:[%s3400 + $0x8] sm:$0xf]
    %v3404 = vld [vmem:[%s3400 + $0xc] sm:$0xf]
    %v3405 = vld [vmem:[%s3400 + $0x10] sm:$0xf]
    %v3406 = vld [vmem:[%s3400 + $0x14] sm:$0xf]
    %v3407 = vld [vmem:[%s3400 + $0x18] sm:$0xf]
    %v3408 = vld [vmem:[%s3400 + $0x1c] sm:$0xf]
    %v3417 = vunpack.c.l.b16 %v3401
    %v3418 = vunpack.c.l.b16 %v3402
    %v3419 = vunpack.c.l.b16 %v3403
    %v3420 = vunpack.c.l.b16 %v3404
    %v3421 = vunpack.c.l.b16 %v3405
    %v3422 = vunpack.c.l.b16 %v3406
    %v3423 = vunpack.c.l.b16 %v3407
    %v3424 = vunpack.c.l.b16 %v3408
    %v3425 = vpack.c.b16 %v3418, %v3417
    %v3426 = vpack.c.b16 %v3420, %v3419
    %v3427 = vpack.c.b16 %v3422, %v3421
    %v3428 = vpack.c.b16 %v3424, %v3423
    %v3434 = vsel %vm107, %v3398, 0
    %v3437 = vsel %vm107, %v3399, 0
    %3439 = vmatpush.bf16.msra.mxu0 0
    %3440 = vmatpush.bf16.msra.mxu0 0
    %3441 = vmatpush.bf16.msra.mxu0 0
    %3442 = vmatpush.bf16.msra.mxu0 0
    %3443 = vmatpush.bf16.msra.mxu0 %v3428
    %3444 = vmatpush.bf16.msra.mxu0 %v3427
    %3445 = vmatpush.bf16.msra.mxu0 %v3426
    %3446 = vmatpush.bf16.msra.mxu0 %v3425
    %3447 = vmatmul.bf16.gmra.mxu0 %v3434
    %v3448 = vpop.f32.mrf.mxu0
    %v3449 = vadd.f32 0.0, %v3448
    %v3450 = vpop.f32.mrf.mxu0
    %v3451 = vadd.f32 0.0, %v3450
    %3452 = vmatmul.bf16.gmra.mxu0 %v3437
    %v3453 = vpop.f32.mrf.mxu0
    %v3454 = vadd.f32 0.0, %v3453
    %v3455 = vpop.f32.mrf.mxu0
    %v3456 = vadd.f32 0.0, %v3455
    %3457 = vdwg.mxu0
    %v3458 = vadd.f32 %v2510, %v3449
    %v3459 = vadd.f32 %v2511, %v3451
    %v3460 = vadd.f32 %v2512, %v3454
    %v3461 = vadd.f32 %v2513, %v3456
    %s3462 = scalar_lea.vmem %s10, 1
    %v3463 = vld [vmem:[%s3462] sm:$0x1]
    %v3464 = vmul.f32 %v3458, %v3458
    %v3465 = vmul.f32 %v3459, %v3459
    %v3466 = vmul.f32 %v3460, %v3460
    %v3467 = vmul.f32 %v3461, %v3461
    %v3468 = vsel %vm107, %v3464, 0.0
    %3469 = vadd.xlane.f32.xlu0 %v3468
    %v3470 = vpop.xlane.xlu0 %3469
    %v3471 = vsel %vm107, %v3465, 0.0
    %3472 = vadd.xlane.f32.xlu0 %v3471
    %v3473 = vpop.xlane.xlu0 %3472
    %v3474 = vsel %vm107, %v3466, 0.0
    %3475 = vadd.xlane.f32.xlu0 %v3474
    %v3476 = vpop.xlane.xlu0 %3475
    %v3477 = vsel %vm107, %v3467, 0.0
    %3478 = vadd.xlane.f32.xlu0 %v3477
    %v3479 = vpop.xlane.xlu0 %3478
    %v3480 = vmul.f32 %v3470, %v151
    %v3481 = vmul.f32 %v3473, %v151
    %v3482 = vmul.f32 %v3476, %v151
    %v3483 = vmul.f32 %v3479, %v151
    %v3484 = vadd.f32 %v3480, 1e-06
    %v3485 = vadd.f32 %v3481, 1e-06
    %v3486 = vadd.f32 %v3482, 1e-06
    %v3487 = vadd.f32 %v3483, 1e-06
    %v3488 = vrsqrt.pop %v3484
    %v3489 = vmul.f32 %v3488, %v3484
    %v3490 = vmul.f32 %v3489, %v3488
    %v3491 = vmul.f32 0.5, %v3490
    %v3492 = vsub.f32 1.5, %v3491
    %v3493 = vmul.f32 %v3488, %v3492
    %vm3494 = vweird.f32 %v3484
    %vm3495 = vweird.f32 %v3488
    %vm3496 = vmor %vm3494, %vm3495
    %v3497 = vsel %vm3496, %v3488, %v3493
    %v3498 = vrsqrt.pop %v3485
    %v3499 = vmul.f32 %v3498, %v3485
    %v3500 = vmul.f32 %v3499, %v3498
    %v3501 = vmul.f32 0.5, %v3500
    %v3502 = vsub.f32 1.5, %v3501
    %v3503 = vmul.f32 %v3498, %v3502
    %vm3504 = vweird.f32 %v3485
    %vm3505 = vweird.f32 %v3498
    %vm3506 = vmor %vm3504, %vm3505
    %v3507 = vsel %vm3506, %v3498, %v3503
    %v3508 = vrsqrt.pop %v3486
    %v3509 = vmul.f32 %v3508, %v3486
    %v3510 = vmul.f32 %v3509, %v3508
    %v3511 = vmul.f32 0.5, %v3510
    %v3512 = vsub.f32 1.5, %v3511
    %v3513 = vmul.f32 %v3508, %v3512
    %vm3514 = vweird.f32 %v3486
    %vm3515 = vweird.f32 %v3508
    %vm3516 = vmor %vm3514, %vm3515
    %v3517 = vsel %vm3516, %v3508, %v3513
    %v3518 = vrsqrt.pop %v3487
    %v3519 = vmul.f32 %v3518, %v3487
    %v3520 = vmul.f32 %v3519, %v3518
    %v3521 = vmul.f32 0.5, %v3520
    %v3522 = vsub.f32 1.5, %v3521
    %v3523 = vmul.f32 %v3518, %v3522
    %vm3524 = vweird.f32 %v3487
    %vm3525 = vweird.f32 %v3518
    %vm3526 = vmor %vm3524, %vm3525
    %v3527 = vsel %vm3526, %v3518, %v3523
    %v3528 = vmul.f32 %v3458, %v3497
    %v3529 = vmul.f32 %v3459, %v3507
    %v3530 = vmul.f32 %v3460, %v3517
    %v3531 = vmul.f32 %v3461, %v3527
    %v3533 = vperm.slane %v3463, 0
    %v3535 = vmul.f32 %v3528, %v3533
    %v3536 = vmul.f32 %v3529, %v3533
    %v3537 = vmul.f32 %v3530, %v3533
    %v3538 = vmul.f32 %v3531, %v3533
    %s3539 = scalar_lea.vmem %s11, 64
    %v3540 = vld [vmem:[%s3539] sm:$0xff]
    %v3541 = vld [vmem:[%s3539 + $0x8] sm:$0xff]
    %v3542 = vld [vmem:[%s3539 + $0x10] sm:$0xff]
    %v3543 = vld [vmem:[%s3539 + $0x18] sm:$0xff]
    %v3544 = vld [vmem:[%s3539 + $0x20] sm:$0xff]
    %v3545 = vld [vmem:[%s3539 + $0x28] sm:$0xff]
    %v3546 = vld [vmem:[%s3539 + $0x30] sm:$0xff]
    %v3547 = vld [vmem:[%s3539 + $0x38] sm:$0xff]
    %v3549 = vsel %vm107, %v3535, 0
    %v3552 = vsel %vm107, %v3536, 0
    %v3555 = vsel %vm107, %v3537, 0
    %v3558 = vsel %vm107, %v3538, 0
    %3560 = vmatpush.msra.mxu0 0.0
    %3561 = vmatpush.msra.mxu0 0.0
    %3562 = vmatpush.msra.mxu0 0.0
    %3563 = vmatpush.msra.mxu0 0.0
    %3564 = vmatpush.msra.mxu0 0.0
    %3565 = vmatpush.msra.mxu0 0.0
    %3566 = vmatpush.msra.mxu0 0.0
    %3567 = vmatpush.msra.mxu0 0.0
    %3568 = vmatpush.msra.mxu0 %v3547
    %3569 = vmatpush.msra.mxu0 %v3546
    %3570 = vmatpush.msra.mxu0 %v3545
    %3571 = vmatpush.msra.mxu0 %v3544
    %3572 = vmatpush.msra.mxu0 %v3543
    %3573 = vmatpush.msra.mxu0 %v3542
    %3574 = vmatpush.msra.mxu0 %v3541
    %3575 = vmatpush.msra.mxu0 %v3540
    %3576 = vmatmul.f32.gmra.mxu0 %v3549
    %v3577 = vpop.f32.mrf.mxu0
    %v3578 = vadd.f32 0.0, %v3577
    %3579 = vmatmul.f32.gmra.mxu0 %v3552
    %v3580 = vpop.f32.mrf.mxu0
    %v3581 = vadd.f32 0.0, %v3580
    %3582 = vmatmul.f32.gmra.mxu0 %v3555
    %v3583 = vpop.f32.mrf.mxu0
    %v3584 = vadd.f32 0.0, %v3583
    %3585 = vmatmul.f32.gmra.mxu0 %v3558
    %v3586 = vpop.f32.mrf.mxu0
    %v3587 = vadd.f32 0.0, %v3586
    %3588 = vdwg.mxu0
    %v3589 = vsel %vm1208, %v3578, -inf
    %3590 = vmax.xlane.f32.xlu0 %v3589
    %v3591 = vpop.xlane.xlu0 %3590
    %v3592 = vsel %vm1208, %v3581, -inf
    %3593 = vmax.xlane.f32.xlu0 %v3592
    %v3594 = vpop.xlane.xlu0 %3593
    %v3595 = vsel %vm1208, %v3584, -inf
    %3596 = vmax.xlane.f32.xlu0 %v3595
    %v3597 = vpop.xlane.xlu0 %3596
    %v3598 = vsel %vm1208, %v3587, -inf
    %3599 = vmax.xlane.f32.xlu0 %v3598
    %v3600 = vpop.xlane.xlu0 %3599
    %v3601 = vsub.f32 %v3578, %v3591
    %v3602 = vsub.f32 %v3581, %v3594
    %v3603 = vsub.f32 %v3584, %v3597
    %v3604 = vsub.f32 %v3587, %v3600
    %v3605 = vmul.f32 %v3601, 1.442695
    %v3606 = vpow.pop %v3605
    %v3607 = vmul.f32 %v3602, 1.442695
    %v3608 = vpow.pop %v3607
    %v3609 = vmul.f32 %v3603, 1.442695
    %v3610 = vpow.pop %v3609
    %v3611 = vmul.f32 %v3604, 1.442695
    %v3612 = vpow.pop %v3611
    %v3613 = vsel %vm1208, %v3606, 0.0
    %3614 = vadd.xlane.f32.xlu0 %v3613
    %v3615 = vpop.xlane.xlu0 %3614
    %v3616 = vsel %vm1208, %v3608, 0.0
    %3617 = vadd.xlane.f32.xlu0 %v3616
    %v3618 = vpop.xlane.xlu0 %3617
    %v3619 = vsel %vm1208, %v3610, 0.0
    %3620 = vadd.xlane.f32.xlu0 %v3619
    %v3621 = vpop.xlane.xlu0 %3620
    %v3622 = vsel %vm1208, %v3612, 0.0
    %3623 = vadd.xlane.f32.xlu0 %v3622
    %v3624 = vpop.xlane.xlu0 %3623
    %v3625 = vrcp.pop %v3615
    %v3626 = vrcp.pop %v3618
    %v3627 = vrcp.pop %v3621
    %v3628 = vrcp.pop %v3624
    %v3629 = vmul.f32 %v3606, %v3625
    %v3630 = vmul.f32 %v3608, %v3626
    %v3631 = vmul.f32 %v3610, %v3627
    %v3632 = vmul.f32 %v3612, %v3628
    %v3633 = vsel %vm1208, %v3629, -inf
    %3634 = vmax.xlane.f32.xlu0 %v3633
    %v3635 = vpop.xlane.xlu0 %3634
    %v3636 = vsel %vm1208, %v3630, -inf
    %3637 = vmax.xlane.f32.xlu0 %v3636
    %v3638 = vpop.xlane.xlu0 %3637
    %v3639 = vsel %vm1208, %v3631, -inf
    %3640 = vmax.xlane.f32.xlu0 %v3639
    %v3641 = vpop.xlane.xlu0 %3640
    %v3642 = vsel %vm1208, %v3632, -inf
    %3643 = vmax.xlane.f32.xlu0 %v3642
    %v3644 = vpop.xlane.xlu0 %3643
    %vm3645 = vcmp.ge.f32.partialorder %v3629, %v3635
    %vm3646 = vcmp.ge.f32.partialorder %v3630, %v3638
    %vm3647 = vcmp.ge.f32.partialorder %v3631, %v3641
    %vm3648 = vcmp.ge.f32.partialorder %v3632, %v3644
    %v3649 = vsel %vm3645, -1.0, %v3629
    %v3650 = vsel %vm3646, -1.0, %v3630
    %v3651 = vsel %vm3647, -1.0, %v3631
    %v3652 = vsel %vm3648, -1.0, %v3632
    %v3653 = vsel %vm1208, %v3649, -inf
    %3654 = vmax.xlane.f32.xlu0 %v3653
    %v3655 = vpop.xlane.xlu0 %3654
    %v3656 = vsel %vm1208, %v3650, -inf
    %3657 = vmax.xlane.f32.xlu0 %v3656
    %v3658 = vpop.xlane.xlu0 %3657
    %v3659 = vsel %vm1208, %v3651, -inf
    %3660 = vmax.xlane.f32.xlu0 %v3659
    %v3661 = vpop.xlane.xlu0 %3660
    %v3662 = vsel %vm1208, %v3652, -inf
    %3663 = vmax.xlane.f32.xlu0 %v3662
    %v3664 = vpop.xlane.xlu0 %3663
    %vm3665 = vcmp.ge.f32.partialorder %v3629, %v3655
    %vm3666 = vcmp.ge.f32.partialorder %v3630, %v3658
    %vm3667 = vcmp.ge.f32.partialorder %v3631, %v3661
    %vm3668 = vcmp.ge.f32.partialorder %v3632, %v3664
    %v3669 = vsel %vm3665, 1, 0
    %v3670 = vsel %vm3666, 1, 0
    %v3671 = vsel %vm3667, 1, 0
    %v3672 = vsel %vm3668, 1, 0
    %v3673 = vcvt.s32.f32 %v3669
    %v3674 = vcvt.s32.f32 %v3670
    %v3675 = vcvt.s32.f32 %v3671
    %v3676 = vcvt.s32.f32 %v3672
    %v3677 = vmul.f32 %v3629, %v3673
    %v3678 = vmul.f32 %v3630, %v3674
    %v3679 = vmul.f32 %v3631, %v3675
    %v3680 = vmul.f32 %v3632, %v3676
    %v3681 = vsel %vm1208, %v3677, 0.0
    %3682 = vadd.xlane.f32.xlu0 %v3681
    %v3683 = vpop.xlane.xlu0 %3682
    %v3684 = vsel %vm1208, %v3678, 0.0
    %3685 = vadd.xlane.f32.xlu0 %v3684
    %v3686 = vpop.xlane.xlu0 %3685
    %v3687 = vsel %vm1208, %v3679, 0.0
    %3688 = vadd.xlane.f32.xlu0 %v3687
    %v3689 = vpop.xlane.xlu0 %3688
    %v3690 = vsel %vm1208, %v3680, 0.0
    %3691 = vadd.xlane.f32.xlu0 %v3690
    %v3692 = vpop.xlane.xlu0 %3691
    %v3693 = vrcp.pop %v3683
    %v3694 = vrcp.pop %v3686
    %v3695 = vrcp.pop %v3689
    %v3696 = vrcp.pop %v3692
    %v3697 = vmul.f32 %v3677, %v3693
    %v3698 = vmul.f32 %v3678, %v3694
    %v3699 = vmul.f32 %v3679, %v3695
    %v3700 = vmul.f32 %v3680, %v3696
    %v3701 = vpack.c.bf16 %v3536, %v3535
    %v3702 = vpack.c.bf16 %v3538, %v3537
    %s3703 = scalar_lea.vmem %s12, 256
    %v3704 = vld [vmem:[%s3703] sm:$0xff]
    %v3705 = vld [vmem:[%s3703 + $0x8] sm:$0xff]
    %v3706 = vld [vmem:[%s3703 + $0x10] sm:$0xff]
    %v3707 = vld [vmem:[%s3703 + $0x18] sm:$0xff]
    %v3708 = vld [vmem:[%s3703 + $0x20] sm:$0xff]
    %v3709 = vld [vmem:[%s3703 + $0x28] sm:$0xff]
    %v3710 = vld [vmem:[%s3703 + $0x30] sm:$0xff]
    %v3711 = vld [vmem:[%s3703 + $0x38] sm:$0xff]
    %v3712 = vld [vmem:[%s3703 + $0x40] sm:$0xff]
    %v3713 = vld [vmem:[%s3703 + $0x48] sm:$0xff]
    %v3714 = vld [vmem:[%s3703 + $0x50] sm:$0xff]
    %v3715 = vld [vmem:[%s3703 + $0x58] sm:$0xff]
    %v3716 = vld [vmem:[%s3703 + $0x60] sm:$0xff]
    %v3717 = vld [vmem:[%s3703 + $0x68] sm:$0xff]
    %v3718 = vld [vmem:[%s3703 + $0x70] sm:$0xff]
    %v3719 = vld [vmem:[%s3703 + $0x78] sm:$0xff]
    %v3720 = vld [vmem:[%s3703 + $0x80] sm:$0xff]
    %v3721 = vld [vmem:[%s3703 + $0x88] sm:$0xff]
    %v3722 = vld [vmem:[%s3703 + $0x90] sm:$0xff]
    %v3723 = vld [vmem:[%s3703 + $0x98] sm:$0xff]
    %v3724 = vld [vmem:[%s3703 + $0xa0] sm:$0xff]
    %v3725 = vld [vmem:[%s3703 + $0xa8] sm:$0xff]
    %v3726 = vld [vmem:[%s3703 + $0xb0] sm:$0xff]
    %v3727 = vld [vmem:[%s3703 + $0xb8] sm:$0xff]
    %v3728 = vld [vmem:[%s3703 + $0xc0] sm:$0xff]
    %v3729 = vld [vmem:[%s3703 + $0xc8] sm:$0xff]
    %v3730 = vld [vmem:[%s3703 + $0xd0] sm:$0xff]
    %v3731 = vld [vmem:[%s3703 + $0xd8] sm:$0xff]
    %v3732 = vld [vmem:[%s3703 + $0xe0] sm:$0xff]
    %v3733 = vld [vmem:[%s3703 + $0xe8] sm:$0xff]
    %v3734 = vld [vmem:[%s3703 + $0xf0] sm:$0xff]
    %v3735 = vld [vmem:[%s3703 + $0xf8] sm:$0xff]
    %v3768 = vunpack.c.l.b16 %v3704
    %v3769 = vunpack.c.h.b16 %v3704
    %v3770 = vunpack.c.l.b16 %v3705
    %v3771 = vunpack.c.h.b16 %v3705
    %v3772 = vunpack.c.l.b16 %v3706
    %v3773 = vunpack.c.h.b16 %v3706
    %v3774 = vunpack.c.l.b16 %v3707
    %v3775 = vunpack.c.h.b16 %v3707
    %v3776 = vunpack.c.l.b16 %v3708
    %v3777 = vunpack.c.h.b16 %v3708
    %v3778 = vunpack.c.l.b16 %v3709
    %v3779 = vunpack.c.h.b16 %v3709
    %v3780 = vunpack.c.l.b16 %v3710
    %v3781 = vunpack.c.h.b16 %v3710
    %v3782 = vunpack.c.l.b16 %v3711
    %v3783 = vunpack.c.h.b16 %v3711
    %v3784 = vunpack.c.l.b16 %v3712
    %v3785 = vunpack.c.h.b16 %v3712
    %v3786 = vunpack.c.l.b16 %v3713
    %v3787 = vunpack.c.h.b16 %v3713
    %v3788 = vunpack.c.l.b16 %v3714
    %v3789 = vunpack.c.h.b16 %v3714
    %v3790 = vunpack.c.l.b16 %v3715
    %v3791 = vunpack.c.h.b16 %v3715
    %v3792 = vunpack.c.l.b16 %v3716
    %v3793 = vunpack.c.h.b16 %v3716
    %v3794 = vunpack.c.l.b16 %v3717
    %v3795 = vunpack.c.h.b16 %v3717
    %v3796 = vunpack.c.l.b16 %v3718
    %v3797 = vunpack.c.h.b16 %v3718
    %v3798 = vunpack.c.l.b16 %v3719
    %v3799 = vunpack.c.h.b16 %v3719
    %v3800 = vunpack.c.l.b16 %v3720
    %v3801 = vunpack.c.h.b16 %v3720
    %v3802 = vunpack.c.l.b16 %v3721
    %v3803 = vunpack.c.h.b16 %v3721
    %v3804 = vunpack.c.l.b16 %v3722
    %v3805 = vunpack.c.h.b16 %v3722
    %v3806 = vunpack.c.l.b16 %v3723
    %v3807 = vunpack.c.h.b16 %v3723
    %v3808 = vunpack.c.l.b16 %v3724
    %v3809 = vunpack.c.h.b16 %v3724
    %v3810 = vunpack.c.l.b16 %v3725
    %v3811 = vunpack.c.h.b16 %v3725
    %v3812 = vunpack.c.l.b16 %v3726
    %v3813 = vunpack.c.h.b16 %v3726
    %v3814 = vunpack.c.l.b16 %v3727
    %v3815 = vunpack.c.h.b16 %v3727
    %v3816 = vunpack.c.l.b16 %v3728
    %v3817 = vunpack.c.h.b16 %v3728
    %v3818 = vunpack.c.l.b16 %v3729
    %v3819 = vunpack.c.h.b16 %v3729
    %v3820 = vunpack.c.l.b16 %v3730
    %v3821 = vunpack.c.h.b16 %v3730
    %v3822 = vunpack.c.l.b16 %v3731
    %v3823 = vunpack.c.h.b16 %v3731
    %v3824 = vunpack.c.l.b16 %v3732
    %v3825 = vunpack.c.h.b16 %v3732
    %v3826 = vunpack.c.l.b16 %v3733
    %v3827 = vunpack.c.h.b16 %v3733
    %v3828 = vunpack.c.l.b16 %v3734
    %v3829 = vunpack.c.h.b16 %v3734
    %v3830 = vunpack.c.l.b16 %v3735
    %v3831 = vunpack.c.h.b16 %v3735
    %v3832 = vpack.c.b16 %v3776, %v3768
    %v3833 = vpack.c.b16 %v3777, %v3769
    %v3834 = vpack.c.b16 %v3778, %v3770
    %v3835 = vpack.c.b16 %v3779, %v3771
    %v3836 = vpack.c.b16 %v3780, %v3772
    %v3837 = vpack.c.b16 %v3781, %v3773
    %v3838 = vpack.c.b16 %v3782, %v3774
    %v3839 = vpack.c.b16 %v3783, %v3775
    %v3840 = vpack.c.b16 %v3792, %v3784
    %v3841 = vpack.c.b16 %v3793, %v3785
    %v3842 = vpack.c.b16 %v3794, %v3786
    %v3843 = vpack.c.b16 %v3795, %v3787
    %v3844 = vpack.c.b16 %v3796, %v3788
    %v3845 = vpack.c.b16 %v3797, %v3789
    %v3846 = vpack.c.b16 %v3798, %v3790
    %v3847 = vpack.c.b16 %v3799, %v3791
    %v3848 = vpack.c.b16 %v3808, %v3800
    %v3849 = vpack.c.b16 %v3809, %v3801
    %v3850 = vpack.c.b16 %v3810, %v3802
    %v3851 = vpack.c.b16 %v3811, %v3803
    %v3852 = vpack.c.b16 %v3812, %v3804
    %v3853 = vpack.c.b16 %v3813, %v3805
    %v3854 = vpack.c.b16 %v3814, %v3806
    %v3855 = vpack.c.b16 %v3815, %v3807
    %v3856 = vpack.c.b16 %v3824, %v3816
    %v3857 = vpack.c.b16 %v3825, %v3817
    %v3858 = vpack.c.b16 %v3826, %v3818
    %v3859 = vpack.c.b16 %v3827, %v3819
    %v3860 = vpack.c.b16 %v3828, %v3820
    %v3861 = vpack.c.b16 %v3829, %v3821
    %v3862 = vpack.c.b16 %v3830, %v3822
    %v3863 = vpack.c.b16 %v3831, %v3823
    %v3897 = vsel %vm107, %v3701, 0
    %v3900 = vsel %vm107, %v3702, 0
    %3902 = vmatpush.bf16.msra.mxu0 0
    %3903 = vmatpush.bf16.msra.mxu0 0
    %3904 = vmatpush.bf16.msra.mxu0 0
    %3905 = vmatpush.bf16.msra.mxu0 0
    %3906 = vmatpush.bf16.msra.mxu0 %v3856
    %3907 = vmatpush.bf16.msra.mxu0 %v3848
    %3908 = vmatpush.bf16.msra.mxu0 %v3840
    %3909 = vmatpush.bf16.msra.mxu0 %v3832
    %3910 = vmatmul.bf16.gmra.mxu0 %v3897
    %v3911 = vpop.f32.mrf.mxu0
    %v3912 = vadd.f32 0.0, %v3911
    %v3913 = vpop.f32.mrf.mxu0
    %v3914 = vadd.f32 0.0, %v3913
    %3915 = vmatmul.bf16.gmra.mxu0 %v3900
    %v3916 = vpop.f32.mrf.mxu0
    %v3917 = vadd.f32 0.0, %v3916
    %v3918 = vpop.f32.mrf.mxu0
    %v3919 = vadd.f32 0.0, %v3918
    %3920 = vdwg.mxu0
    %3921 = vmatpush.bf16.msra.mxu0 0
    %3922 = vmatpush.bf16.msra.mxu0 0
    %3923 = vmatpush.bf16.msra.mxu0 0
    %3924 = vmatpush.bf16.msra.mxu0 0
    %3925 = vmatpush.bf16.msra.mxu0 %v3857
    %3926 = vmatpush.bf16.msra.mxu0 %v3849
    %3927 = vmatpush.bf16.msra.mxu0 %v3841
    %3928 = vmatpush.bf16.msra.mxu0 %v3833
    %3929 = vmatmul.bf16.gmra.mxu0 %v3897
    %v3930 = vpop.f32.mrf.mxu0
    %v3931 = vadd.f32 0.0, %v3930
    %v3932 = vpop.f32.mrf.mxu0
    %v3933 = vadd.f32 0.0, %v3932
    %3934 = vmatmul.bf16.gmra.mxu0 %v3900
    %v3935 = vpop.f32.mrf.mxu0
    %v3936 = vadd.f32 0.0, %v3935
    %v3937 = vpop.f32.mrf.mxu0
    %v3938 = vadd.f32 0.0, %v3937
    %3939 = vdwg.mxu0
    %3940 = vmatpush.bf16.msra.mxu0 0
    %3941 = vmatpush.bf16.msra.mxu0 0
    %3942 = vmatpush.bf16.msra.mxu0 0
    %3943 = vmatpush.bf16.msra.mxu0 0
    %3944 = vmatpush.bf16.msra.mxu0 %v3858
    %3945 = vmatpush.bf16.msra.mxu0 %v3850
    %3946 = vmatpush.bf16.msra.mxu0 %v3842
    %3947 = vmatpush.bf16.msra.mxu0 %v3834
    %3948 = vmatmul.bf16.gmra.mxu0 %v3897
    %v3949 = vpop.f32.mrf.mxu0
    %v3950 = vadd.f32 0.0, %v3949
    %v3951 = vpop.f32.mrf.mxu0
    %v3952 = vadd.f32 0.0, %v3951
    %3953 = vmatmul.bf16.gmra.mxu0 %v3900
    %v3954 = vpop.f32.mrf.mxu0
    %v3955 = vadd.f32 0.0, %v3954
    %v3956 = vpop.f32.mrf.mxu0
    %v3957 = vadd.f32 0.0, %v3956
    %3958 = vdwg.mxu0
    %3959 = vmatpush.bf16.msra.mxu0 0
    %3960 = vmatpush.bf16.msra.mxu0 0
    %3961 = vmatpush.bf16.msra.mxu0 0
    %3962 = vmatpush.bf16.msra.mxu0 0
    %3963 = vmatpush.bf16.msra.mxu0 %v3859
    %3964 = vmatpush.bf16.msra.mxu0 %v3851
    %3965 = vmatpush.bf16.msra.mxu0 %v3843
    %3966 = vmatpush.bf16.msra.mxu0 %v3835
    %3967 = vmatmul.bf16.gmra.mxu0 %v3897
    %v3968 = vpop.f32.mrf.mxu0
    %v3969 = vadd.f32 0.0, %v3968
    %v3970 = vpop.f32.mrf.mxu0
    %v3971 = vadd.f32 0.0, %v3970
    %3972 = vmatmul.bf16.gmra.mxu0 %v3900
    %v3973 = vpop.f32.mrf.mxu0
    %v3974 = vadd.f32 0.0, %v3973
    %v3975 = vpop.f32.mrf.mxu0
    %v3976 = vadd.f32 0.0, %v3975
    %3977 = vdwg.mxu0
    %3978 = vmatpush.bf16.msra.mxu0 0
    %3979 = vmatpush.bf16.msra.mxu0 0
    %3980 = vmatpush.bf16.msra.mxu0 0
    %3981 = vmatpush.bf16.msra.mxu0 0
    %3982 = vmatpush.bf16.msra.mxu0 %v3860
    %3983 = vmatpush.bf16.msra.mxu0 %v3852
    %3984 = vmatpush.bf16.msra.mxu0 %v3844
    %3985 = vmatpush.bf16.msra.mxu0 %v3836
    %3986 = vmatmul.bf16.gmra.mxu0 %v3897
    %v3987 = vpop.f32.mrf.mxu0
    %v3988 = vadd.f32 0.0, %v3987
    %v3989 = vpop.f32.mrf.mxu0
    %v3990 = vadd.f32 0.0, %v3989
    %3991 = vmatmul.bf16.gmra.mxu0 %v3900
    %v3992 = vpop.f32.mrf.mxu0
    %v3993 = vadd.f32 0.0, %v3992
    %v3994 = vpop.f32.mrf.mxu0
    %v3995 = vadd.f32 0.0, %v3994
    %3996 = vdwg.mxu0
    %3997 = vmatpush.bf16.msra.mxu0 0
    %3998 = vmatpush.bf16.msra.mxu0 0
    %3999 = vmatpush.bf16.msra.mxu0 0
    %4000 = vmatpush.bf16.msra.mxu0 0
    %4001 = vmatpush.bf16.msra.mxu0 %v3861
    %4002 = vmatpush.bf16.msra.mxu0 %v3853
    %4003 = vmatpush.bf16.msra.mxu0 %v3845
    %4004 = vmatpush.bf16.msra.mxu0 %v3837
    %4005 = vmatmul.bf16.gmra.mxu0 %v3897
    %v4006 = vpop.f32.mrf.mxu0
    %v4007 = vadd.f32 0.0, %v4006
    %v4008 = vpop.f32.mrf.mxu0
    %v4009 = vadd.f32 0.0, %v4008
    %4010 = vmatmul.bf16.gmra.mxu0 %v3900
    %v4011 = vpop.f32.mrf.mxu0
    %v4012 = vadd.f32 0.0, %v4011
    %v4013 = vpop.f32.mrf.mxu0
    %v4014 = vadd.f32 0.0, %v4013
    %4015 = vdwg.mxu0
    %4016 = vmatpush.bf16.msra.mxu0 0
    %4017 = vmatpush.bf16.msra.mxu0 0
    %4018 = vmatpush.bf16.msra.mxu0 0
    %4019 = vmatpush.bf16.msra.mxu0 0
    %4020 = vmatpush.bf16.msra.mxu0 %v3862
    %4021 = vmatpush.bf16.msra.mxu0 %v3854
    %4022 = vmatpush.bf16.msra.mxu0 %v3846
    %4023 = vmatpush.bf16.msra.mxu0 %v3838
    %4024 = vmatmul.bf16.gmra.mxu0 %v3897
    %v4025 = vpop.f32.mrf.mxu0
    %v4026 = vadd.f32 0.0, %v4025
    %v4027 = vpop.f32.mrf.mxu0
    %v4028 = vadd.f32 0.0, %v4027
    %4029 = vmatmul.bf16.gmra.mxu0 %v3900
    %v4030 = vpop.f32.mrf.mxu0
    %v4031 = vadd.f32 0.0, %v4030
    %v4032 = vpop.f32.mrf.mxu0
    %v4033 = vadd.f32 0.0, %v4032
    %4034 = vdwg.mxu0
    %4035 = vmatpush.bf16.msra.mxu0 0
    %4036 = vmatpush.bf16.msra.mxu0 0
    %4037 = vmatpush.bf16.msra.mxu0 0
    %4038 = vmatpush.bf16.msra.mxu0 0
    %4039 = vmatpush.bf16.msra.mxu0 %v3863
    %4040 = vmatpush.bf16.msra.mxu0 %v3855
    %4041 = vmatpush.bf16.msra.mxu0 %v3847
    %4042 = vmatpush.bf16.msra.mxu0 %v3839
    %4043 = vmatmul.bf16.gmra.mxu0 %v3897
    %v4044 = vpop.f32.mrf.mxu0
    %v4045 = vadd.f32 0.0, %v4044
    %v4046 = vpop.f32.mrf.mxu0
    %v4047 = vadd.f32 0.0, %v4046
    %4048 = vmatmul.bf16.gmra.mxu0 %v3900
    %v4049 = vpop.f32.mrf.mxu0
    %v4050 = vadd.f32 0.0, %v4049
    %v4051 = vpop.f32.mrf.mxu0
    %v4052 = vadd.f32 0.0, %v4051
    %4053 = vdwg.mxu0
    %v4054 = vxor.u32 %v3912, 2147483648
    %v4055 = vxor.u32 %v3931, 2147483648
    %v4056 = vxor.u32 %v3950, 2147483648
    %v4057 = vxor.u32 %v3969, 2147483648
    %v4058 = vxor.u32 %v3914, 2147483648
    %v4059 = vxor.u32 %v3933, 2147483648
    %v4060 = vxor.u32 %v3952, 2147483648
    %v4061 = vxor.u32 %v3971, 2147483648
    %v4062 = vxor.u32 %v3917, 2147483648
    %v4063 = vxor.u32 %v3936, 2147483648
    %v4064 = vxor.u32 %v3955, 2147483648
    %v4065 = vxor.u32 %v3974, 2147483648
    %v4066 = vxor.u32 %v3919, 2147483648
    %v4067 = vxor.u32 %v3938, 2147483648
    %v4068 = vxor.u32 %v3957, 2147483648
    %v4069 = vxor.u32 %v3976, 2147483648
    %v4070 = vmul.f32 %v4054, 1.442695
    %v4071 = vpow.pop %v4070
    %v4072 = vmul.f32 %v4055, 1.442695
    %v4073 = vpow.pop %v4072
    %v4074 = vmul.f32 %v4056, 1.442695
    %v4075 = vpow.pop %v4074
    %v4076 = vmul.f32 %v4057, 1.442695
    %v4077 = vpow.pop %v4076
    %v4078 = vmul.f32 %v4058, 1.442695
    %v4079 = vpow.pop %v4078
    %v4080 = vmul.f32 %v4059, 1.442695
    %v4081 = vpow.pop %v4080
    %v4082 = vmul.f32 %v4060, 1.442695
    %v4083 = vpow.pop %v4082
    %v4084 = vmul.f32 %v4061, 1.442695
    %v4085 = vpow.pop %v4084
    %v4086 = vmul.f32 %v4062, 1.442695
    %v4087 = vpow.pop %v4086
    %v4088 = vmul.f32 %v4063, 1.442695
    %v4089 = vpow.pop %v4088
    %v4090 = vmul.f32 %v4064, 1.442695
    %v4091 = vpow.pop %v4090
    %v4092 = vmul.f32 %v4065, 1.442695
    %v4093 = vpow.pop %v4092
    %v4094 = vmul.f32 %v4066, 1.442695
    %v4095 = vpow.pop %v4094
    %v4096 = vmul.f32 %v4067, 1.442695
    %v4097 = vpow.pop %v4096
    %v4098 = vmul.f32 %v4068, 1.442695
    %v4099 = vpow.pop %v4098
    %v4100 = vmul.f32 %v4069, 1.442695
    %v4101 = vpow.pop %v4100
    %v4102 = vadd.f32 %v4071, 1.0
    %v4103 = vadd.f32 %v4073, 1.0
    %v4104 = vadd.f32 %v4075, 1.0
    %v4105 = vadd.f32 %v4077, 1.0
    %v4106 = vadd.f32 %v4079, 1.0
    %v4107 = vadd.f32 %v4081, 1.0
    %v4108 = vadd.f32 %v4083, 1.0
    %v4109 = vadd.f32 %v4085, 1.0
    %v4110 = vadd.f32 %v4087, 1.0
    %v4111 = vadd.f32 %v4089, 1.0
    %v4112 = vadd.f32 %v4091, 1.0
    %v4113 = vadd.f32 %v4093, 1.0
    %v4114 = vadd.f32 %v4095, 1.0
    %v4115 = vadd.f32 %v4097, 1.0
    %v4116 = vadd.f32 %v4099, 1.0
    %v4117 = vadd.f32 %v4101, 1.0
    %v4118 = vrcp.pop %v4102
    %v4119 = vmul.f32 %v4102, %v4118
    %v4120 = vsub.f32 1.0, %v4119
    %v4121 = vmul.f32 %v4118, %v4120
    %v4122 = vadd.f32 %v4118, %v4121
    %vm4123 = vweird.f32 %v4102
    %vm4124 = vweird.f32 %v4118
    %vm4125 = vmor %vm4123, %vm4124
    %v4126 = vsel %vm4125, %v4118, %v4122
    %v4127 = vand.u32 2147483647, %v4102
    %vm4128 = vcmp.eq.f32.partialorder %v4127, 8.507059e+37
    %v4129 = vand.u32 %v4102, 2147483648
    %v4130 = vor.u32 1.1754944e-38, %v4129
    %v4131 = vsel %vm4128, %v4130, %v4126
    %v4132 = vmul.f32 1.0, %v4131
    %v4133 = vrcp.pop %v4103
    %v4134 = vmul.f32 %v4103, %v4133
    %v4135 = vsub.f32 1.0, %v4134
    %v4136 = vmul.f32 %v4133, %v4135
    %v4137 = vadd.f32 %v4133, %v4136
    %vm4138 = vweird.f32 %v4103
    %vm4139 = vweird.f32 %v4133
    %vm4140 = vmor %vm4138, %vm4139
    %v4141 = vsel %vm4140, %v4133, %v4137
    %v4142 = vand.u32 2147483647, %v4103
    %vm4143 = vcmp.eq.f32.partialorder %v4142, 8.507059e+37
    %v4144 = vand.u32 %v4103, 2147483648
    %v4145 = vor.u32 1.1754944e-38, %v4144
    %v4146 = vsel %vm4143, %v4145, %v4141
    %v4147 = vmul.f32 1.0, %v4146
    %v4148 = vrcp.pop %v4104
    %v4149 = vmul.f32 %v4104, %v4148
    %v4150 = vsub.f32 1.0, %v4149
    %v4151 = vmul.f32 %v4148, %v4150
    %v4152 = vadd.f32 %v4148, %v4151
    %vm4153 = vweird.f32 %v4104
    %vm4154 = vweird.f32 %v4148
    %vm4155 = vmor %vm4153, %vm4154
    %v4156 = vsel %vm4155, %v4148, %v4152
    %v4157 = vand.u32 2147483647, %v4104
    %vm4158 = vcmp.eq.f32.partialorder %v4157, 8.507059e+37
    %v4159 = vand.u32 %v4104, 2147483648
    %v4160 = vor.u32 1.1754944e-38, %v4159
    %v4161 = vsel %vm4158, %v4160, %v4156
    %v4162 = vmul.f32 1.0, %v4161
    %v4163 = vrcp.pop %v4105
    %v4164 = vmul.f32 %v4105, %v4163
    %v4165 = vsub.f32 1.0, %v4164
    %v4166 = vmul.f32 %v4163, %v4165
    %v4167 = vadd.f32 %v4163, %v4166
    %vm4168 = vweird.f32 %v4105
    %vm4169 = vweird.f32 %v4163
    %vm4170 = vmor %vm4168, %vm4169
    %v4171 = vsel %vm4170, %v4163, %v4167
    %v4172 = vand.u32 2147483647, %v4105
    %vm4173 = vcmp.eq.f32.partialorder %v4172, 8.507059e+37
    %v4174 = vand.u32 %v4105, 2147483648
    %v4175 = vor.u32 1.1754944e-38, %v4174
    %v4176 = vsel %vm4173, %v4175, %v4171
    %v4177 = vmul.f32 1.0, %v4176
    %v4178 = vrcp.pop %v4106
    %v4179 = vmul.f32 %v4106, %v4178
    %v4180 = vsub.f32 1.0, %v4179
    %v4181 = vmul.f32 %v4178, %v4180
    %v4182 = vadd.f32 %v4178, %v4181
    %vm4183 = vweird.f32 %v4106
    %vm4184 = vweird.f32 %v4178
    %vm4185 = vmor %vm4183, %vm4184
    %v4186 = vsel %vm4185, %v4178, %v4182
    %v4187 = vand.u32 2147483647, %v4106
    %vm4188 = vcmp.eq.f32.partialorder %v4187, 8.507059e+37
    %v4189 = vand.u32 %v4106, 2147483648
    %v4190 = vor.u32 1.1754944e-38, %v4189
    %v4191 = vsel %vm4188, %v4190, %v4186
    %v4192 = vmul.f32 1.0, %v4191
    %v4193 = vrcp.pop %v4107
    %v4194 = vmul.f32 %v4107, %v4193
    %v4195 = vsub.f32 1.0, %v4194
    %v4196 = vmul.f32 %v4193, %v4195
    %v4197 = vadd.f32 %v4193, %v4196
    %vm4198 = vweird.f32 %v4107
    %vm4199 = vweird.f32 %v4193
    %vm4200 = vmor %vm4198, %vm4199
    %v4201 = vsel %vm4200, %v4193, %v4197
    %v4202 = vand.u32 2147483647, %v4107
    %vm4203 = vcmp.eq.f32.partialorder %v4202, 8.507059e+37
    %v4204 = vand.u32 %v4107, 2147483648
    %v4205 = vor.u32 1.1754944e-38, %v4204
    %v4206 = vsel %vm4203, %v4205, %v4201
    %v4207 = vmul.f32 1.0, %v4206
    %v4208 = vrcp.pop %v4108
    %v4209 = vmul.f32 %v4108, %v4208
    %v4210 = vsub.f32 1.0, %v4209
    %v4211 = vmul.f32 %v4208, %v4210
    %v4212 = vadd.f32 %v4208, %v4211
    %vm4213 = vweird.f32 %v4108
    %vm4214 = vweird.f32 %v4208
    %vm4215 = vmor %vm4213, %vm4214
    %v4216 = vsel %vm4215, %v4208, %v4212
    %v4217 = vand.u32 2147483647, %v4108
    %vm4218 = vcmp.eq.f32.partialorder %v4217, 8.507059e+37
    %v4219 = vand.u32 %v4108, 2147483648
    %v4220 = vor.u32 1.1754944e-38, %v4219
    %v4221 = vsel %vm4218, %v4220, %v4216
    %v4222 = vmul.f32 1.0, %v4221
    %v4223 = vrcp.pop %v4109
    %v4224 = vmul.f32 %v4109, %v4223
    %v4225 = vsub.f32 1.0, %v4224
    %v4226 = vmul.f32 %v4223, %v4225
    %v4227 = vadd.f32 %v4223, %v4226
    %vm4228 = vweird.f32 %v4109
    %vm4229 = vweird.f32 %v4223
    %vm4230 = vmor %vm4228, %vm4229
    %v4231 = vsel %vm4230, %v4223, %v4227
    %v4232 = vand.u32 2147483647, %v4109
    %vm4233 = vcmp.eq.f32.partialorder %v4232, 8.507059e+37
    %v4234 = vand.u32 %v4109, 2147483648
    %v4235 = vor.u32 1.1754944e-38, %v4234
    %v4236 = vsel %vm4233, %v4235, %v4231
    %v4237 = vmul.f32 1.0, %v4236
    %v4238 = vrcp.pop %v4110
    %v4239 = vmul.f32 %v4110, %v4238
    %v4240 = vsub.f32 1.0, %v4239
    %v4241 = vmul.f32 %v4238, %v4240
    %v4242 = vadd.f32 %v4238, %v4241
    %vm4243 = vweird.f32 %v4110
    %vm4244 = vweird.f32 %v4238
    %vm4245 = vmor %vm4243, %vm4244
    %v4246 = vsel %vm4245, %v4238, %v4242
    %v4247 = vand.u32 2147483647, %v4110
    %vm4248 = vcmp.eq.f32.partialorder %v4247, 8.507059e+37
    %v4249 = vand.u32 %v4110, 2147483648
    %v4250 = vor.u32 1.1754944e-38, %v4249
    %v4251 = vsel %vm4248, %v4250, %v4246
    %v4252 = vmul.f32 1.0, %v4251
    %v4253 = vrcp.pop %v4111
    %v4254 = vmul.f32 %v4111, %v4253
    %v4255 = vsub.f32 1.0, %v4254
    %v4256 = vmul.f32 %v4253, %v4255
    %v4257 = vadd.f32 %v4253, %v4256
    %vm4258 = vweird.f32 %v4111
    %vm4259 = vweird.f32 %v4253
    %vm4260 = vmor %vm4258, %vm4259
    %v4261 = vsel %vm4260, %v4253, %v4257
    %v4262 = vand.u32 2147483647, %v4111
    %vm4263 = vcmp.eq.f32.partialorder %v4262, 8.507059e+37
    %v4264 = vand.u32 %v4111, 2147483648
    %v4265 = vor.u32 1.1754944e-38, %v4264
    %v4266 = vsel %vm4263, %v4265, %v4261
    %v4267 = vmul.f32 1.0, %v4266
    %v4268 = vrcp.pop %v4112
    %v4269 = vmul.f32 %v4112, %v4268
    %v4270 = vsub.f32 1.0, %v4269
    %v4271 = vmul.f32 %v4268, %v4270
    %v4272 = vadd.f32 %v4268, %v4271
    %vm4273 = vweird.f32 %v4112
    %vm4274 = vweird.f32 %v4268
    %vm4275 = vmor %vm4273, %vm4274
    %v4276 = vsel %vm4275, %v4268, %v4272
    %v4277 = vand.u32 2147483647, %v4112
    %vm4278 = vcmp.eq.f32.partialorder %v4277, 8.507059e+37
    %v4279 = vand.u32 %v4112, 2147483648
    %v4280 = vor.u32 1.1754944e-38, %v4279
    %v4281 = vsel %vm4278, %v4280, %v4276
    %v4282 = vmul.f32 1.0, %v4281
    %v4283 = vrcp.pop %v4113
    %v4284 = vmul.f32 %v4113, %v4283
    %v4285 = vsub.f32 1.0, %v4284
    %v4286 = vmul.f32 %v4283, %v4285
    %v4287 = vadd.f32 %v4283, %v4286
    %vm4288 = vweird.f32 %v4113
    %vm4289 = vweird.f32 %v4283
    %vm4290 = vmor %vm4288, %vm4289
    %v4291 = vsel %vm4290, %v4283, %v4287
    %v4292 = vand.u32 2147483647, %v4113
    %vm4293 = vcmp.eq.f32.partialorder %v4292, 8.507059e+37
    %v4294 = vand.u32 %v4113, 2147483648
    %v4295 = vor.u32 1.1754944e-38, %v4294
    %v4296 = vsel %vm4293, %v4295, %v4291
    %v4297 = vmul.f32 1.0, %v4296
    %v4298 = vrcp.pop %v4114
    %v4299 = vmul.f32 %v4114, %v4298
    %v4300 = vsub.f32 1.0, %v4299
    %v4301 = vmul.f32 %v4298, %v4300
    %v4302 = vadd.f32 %v4298, %v4301
    %vm4303 = vweird.f32 %v4114
    %vm4304 = vweird.f32 %v4298
    %vm4305 = vmor %vm4303, %vm4304
    %v4306 = vsel %vm4305, %v4298, %v4302
    %v4307 = vand.u32 2147483647, %v4114
    %vm4308 = vcmp.eq.f32.partialorder %v4307, 8.507059e+37
    %v4309 = vand.u32 %v4114, 2147483648
    %v4310 = vor.u32 1.1754944e-38, %v4309
    %v4311 = vsel %vm4308, %v4310, %v4306
    %v4312 = vmul.f32 1.0, %v4311
    %v4313 = vrcp.pop %v4115
    %v4314 = vmul.f32 %v4115, %v4313
    %v4315 = vsub.f32 1.0, %v4314
    %v4316 = vmul.f32 %v4313, %v4315
    %v4317 = vadd.f32 %v4313, %v4316
    %vm4318 = vweird.f32 %v4115
    %vm4319 = vweird.f32 %v4313
    %vm4320 = vmor %vm4318, %vm4319
    %v4321 = vsel %vm4320, %v4313, %v4317
    %v4322 = vand.u32 2147483647, %v4115
    %vm4323 = vcmp.eq.f32.partialorder %v4322, 8.507059e+37
    %v4324 = vand.u32 %v4115, 2147483648
    %v4325 = vor.u32 1.1754944e-38, %v4324
    %v4326 = vsel %vm4323, %v4325, %v4321
    %v4327 = vmul.f32 1.0, %v4326
    %v4328 = vrcp.pop %v4116
    %v4329 = vmul.f32 %v4116, %v4328
    %v4330 = vsub.f32 1.0, %v4329
    %v4331 = vmul.f32 %v4328, %v4330
    %v4332 = vadd.f32 %v4328, %v4331
    %vm4333 = vweird.f32 %v4116
    %vm4334 = vweird.f32 %v4328
    %vm4335 = vmor %vm4333, %vm4334
    %v4336 = vsel %vm4335, %v4328, %v4332
    %v4337 = vand.u32 2147483647, %v4116
    %vm4338 = vcmp.eq.f32.partialorder %v4337, 8.507059e+37
    %v4339 = vand.u32 %v4116, 2147483648
    %v4340 = vor.u32 1.1754944e-38, %v4339
    %v4341 = vsel %vm4338, %v4340, %v4336
    %v4342 = vmul.f32 1.0, %v4341
    %v4343 = vrcp.pop %v4117
    %v4344 = vmul.f32 %v4117, %v4343
    %v4345 = vsub.f32 1.0, %v4344
    %v4346 = vmul.f32 %v4343, %v4345
    %v4347 = vadd.f32 %v4343, %v4346
    %vm4348 = vweird.f32 %v4117
    %vm4349 = vweird.f32 %v4343
    %vm4350 = vmor %vm4348, %vm4349
    %v4351 = vsel %vm4350, %v4343, %v4347
    %v4352 = vand.u32 2147483647, %v4117
    %vm4353 = vcmp.eq.f32.partialorder %v4352, 8.507059e+37
    %v4354 = vand.u32 %v4117, 2147483648
    %v4355 = vor.u32 1.1754944e-38, %v4354
    %v4356 = vsel %vm4353, %v4355, %v4351
    %v4357 = vmul.f32 1.0, %v4356
    %v4358 = vmul.f32 %v3912, %v4132
    %v4359 = vmul.f32 %v3931, %v4147
    %v4360 = vmul.f32 %v3950, %v4162
    %v4361 = vmul.f32 %v3969, %v4177
    %v4362 = vmul.f32 %v3914, %v4192
    %v4363 = vmul.f32 %v3933, %v4207
    %v4364 = vmul.f32 %v3952, %v4222
    %v4365 = vmul.f32 %v3971, %v4237
    %v4366 = vmul.f32 %v3917, %v4252
    %v4367 = vmul.f32 %v3936, %v4267
    %v4368 = vmul.f32 %v3955, %v4282
    %v4369 = vmul.f32 %v3974, %v4297
    %v4370 = vmul.f32 %v3919, %v4312
    %v4371 = vmul.f32 %v3938, %v4327
    %v4372 = vmul.f32 %v3957, %v4342
    %v4373 = vmul.f32 %v3976, %v4357
    %v4374 = vmul.f32 %v4358, %v3988
    %v4375 = vmul.f32 %v4359, %v4007
    %v4376 = vmul.f32 %v4360, %v4026
    %v4377 = vmul.f32 %v4361, %v4045
    %v4378 = vmul.f32 %v4362, %v3990
    %v4379 = vmul.f32 %v4363, %v4009
    %v4380 = vmul.f32 %v4364, %v4028
    %v4381 = vmul.f32 %v4365, %v4047
    %v4382 = vmul.f32 %v4366, %v3993
    %v4383 = vmul.f32 %v4367, %v4012
    %v4384 = vmul.f32 %v4368, %v4031
    %v4385 = vmul.f32 %v4369, %v4050
    %v4386 = vmul.f32 %v4370, %v3995
    %v4387 = vmul.f32 %v4371, %v4014
    %v4388 = vmul.f32 %v4372, %v4033
    %v4389 = vmul.f32 %v4373, %v4052
    %4390 = vst [vmem:[#allocation1] ss:$2 sm:$0xff] %v126
    %s4391 = scalar_lea.vmem [#allocation1], 16
    %4392 = vst [vmem:[%s4391] ss:$2 sm:$0xff] %v127
    %v4393 = vld.sshfl [vmem:[#allocation1] sm:$0xff pattern:$0x75316420]
    %v4394 = vld.sshfl [vmem:[#allocation1 + $0x8] sm:$0xff pattern:$0x75316420]
    %v4395 = vld.sshfl [vmem:[#allocation1 + $0x10] sm:$0xff pattern:$0x75316420]
    %v4396 = vld.sshfl [vmem:[#allocation1 + $0x18] sm:$0xff pattern:$0x75316420]
    %v4398 = vsel %vm1208, %v3697, 0
    %v4401 = vsel %vm1208, %v3698, 0
    %v4404 = vsel %vm1208, %v3699, 0
    %v4407 = vsel %vm1208, %v3700, 0
    %v4409 = vsel %vm73, %v4393, 0
    %v4411 = vsel %vm73, %v4394, 0
    %v4413 = vsel %vm73, %v4395, 0
    %v4415 = vsel %vm73, %v4396, 0
    %4417 = vmatpush.msra.mxu0 0.0
    %4418 = vmatpush.msra.mxu0 0.0
    %4419 = vmatpush.msra.mxu0 0.0
    %4420 = vmatpush.msra.mxu0 0.0
    %4421 = vmatpush.msra.mxu0 0.0
    %4422 = vmatpush.msra.mxu0 0.0
    %4423 = vmatpush.msra.mxu0 0.0
    %4424 = vmatpush.msra.mxu0 0.0
    %4425 = vmatpush.msra.mxu0 0.0
    %4426 = vmatpush.msra.mxu0 0.0
    %4427 = vmatpush.msra.mxu0 0.0
    %4428 = vmatpush.msra.mxu0 0.0
    %4429 = vmatpush.msra.mxu0 0.0
    %4430 = vmatpush.msra.mxu0 0.0
    %4431 = vmatpush.msra.mxu0 0.0
    %4432 = vmatpush.msra.mxu0 %v4409
    %4433 = vmatmul.f32.gmra.mxu0 %v4398
    %v4434 = vpop.f32.mrf.mxu0
    %v4435 = vadd.f32 0.0, %v4434
    %4436 = vmatmul.f32.gmra.mxu0 %v4401
    %v4437 = vpop.f32.mrf.mxu0
    %v4438 = vadd.f32 0.0, %v4437
    %4439 = vmatmul.f32.gmra.mxu0 %v4404
    %v4440 = vpop.f32.mrf.mxu0
    %v4441 = vadd.f32 0.0, %v4440
    %4442 = vmatmul.f32.gmra.mxu0 %v4407
    %v4443 = vpop.f32.mrf.mxu0
    %v4444 = vadd.f32 0.0, %v4443
    %4445 = vdwg.mxu0
    %4446 = vmatpush.msra.mxu0 0.0
    %4447 = vmatpush.msra.mxu0 0.0
    %4448 = vmatpush.msra.mxu0 0.0
    %4449 = vmatpush.msra.mxu0 0.0
    %4450 = vmatpush.msra.mxu0 0.0
    %4451 = vmatpush.msra.mxu0 0.0
    %4452 = vmatpush.msra.mxu0 0.0
    %4453 = vmatpush.msra.mxu0 0.0
    %4454 = vmatpush.msra.mxu0 0.0
    %4455 = vmatpush.msra.mxu0 0.0
    %4456 = vmatpush.msra.mxu0 0.0
    %4457 = vmatpush.msra.mxu0 0.0
    %4458 = vmatpush.msra.mxu0 0.0
    %4459 = vmatpush.msra.mxu0 0.0
    %4460 = vmatpush.msra.mxu0 0.0
    %4461 = vmatpush.msra.mxu0 %v4411
    %4462 = vmatmul.f32.gmra.mxu0 %v4398
    %v4463 = vpop.f32.mrf.mxu0
    %v4464 = vadd.f32 0.0, %v4463
    %4465 = vmatmul.f32.gmra.mxu0 %v4401
    %v4466 = vpop.f32.mrf.mxu0
    %v4467 = vadd.f32 0.0, %v4466
    %4468 = vmatmul.f32.gmra.mxu0 %v4404
    %v4469 = vpop.f32.mrf.mxu0
    %v4470 = vadd.f32 0.0, %v4469
    %4471 = vmatmul.f32.gmra.mxu0 %v4407
    %v4472 = vpop.f32.mrf.mxu0
    %v4473 = vadd.f32 0.0, %v4472
    %4474 = vdwg.mxu0
    %4475 = vmatpush.msra.mxu0 0.0
    %4476 = vmatpush.msra.mxu0 0.0
    %4477 = vmatpush.msra.mxu0 0.0
    %4478 = vmatpush.msra.mxu0 0.0
    %4479 = vmatpush.msra.mxu0 0.0
    %4480 = vmatpush.msra.mxu0 0.0
    %4481 = vmatpush.msra.mxu0 0.0
    %4482 = vmatpush.msra.mxu0 0.0
    %4483 = vmatpush.msra.mxu0 0.0
    %4484 = vmatpush.msra.mxu0 0.0
    %4485 = vmatpush.msra.mxu0 0.0
    %4486 = vmatpush.msra.mxu0 0.0
    %4487 = vmatpush.msra.mxu0 0.0
    %4488 = vmatpush.msra.mxu0 0.0
    %4489 = vmatpush.msra.mxu0 0.0
    %4490 = vmatpush.msra.mxu0 %v4413
    %4491 = vmatmul.f32.gmra.mxu0 %v4398
    %v4492 = vpop.f32.mrf.mxu0
    %v4493 = vadd.f32 0.0, %v4492
    %4494 = vmatmul.f32.gmra.mxu0 %v4401
    %v4495 = vpop.f32.mrf.mxu0
    %v4496 = vadd.f32 0.0, %v4495
    %4497 = vmatmul.f32.gmra.mxu0 %v4404
    %v4498 = vpop.f32.mrf.mxu0
    %v4499 = vadd.f32 0.0, %v4498
    %4500 = vmatmul.f32.gmra.mxu0 %v4407
    %v4501 = vpop.f32.mrf.mxu0
    %v4502 = vadd.f32 0.0, %v4501
    %4503 = vdwg.mxu0
    %4504 = vmatpush.msra.mxu0 0.0
    %4505 = vmatpush.msra.mxu0 0.0
    %4506 = vmatpush.msra.mxu0 0.0
    %4507 = vmatpush.msra.mxu0 0.0
    %4508 = vmatpush.msra.mxu0 0.0
    %4509 = vmatpush.msra.mxu0 0.0
    %4510 = vmatpush.msra.mxu0 0.0
    %4511 = vmatpush.msra.mxu0 0.0
    %4512 = vmatpush.msra.mxu0 0.0
    %4513 = vmatpush.msra.mxu0 0.0
    %4514 = vmatpush.msra.mxu0 0.0
    %4515 = vmatpush.msra.mxu0 0.0
    %4516 = vmatpush.msra.mxu0 0.0
    %4517 = vmatpush.msra.mxu0 0.0
    %4518 = vmatpush.msra.mxu0 0.0
    %4519 = vmatpush.msra.mxu0 %v4415
    %4520 = vmatmul.f32.gmra.mxu0 %v4398
    %v4521 = vpop.f32.mrf.mxu0
    %v4522 = vadd.f32 0.0, %v4521
    %4523 = vmatmul.f32.gmra.mxu0 %v4401
    %v4524 = vpop.f32.mrf.mxu0
    %v4525 = vadd.f32 0.0, %v4524
    %4526 = vmatmul.f32.gmra.mxu0 %v4404
    %v4527 = vpop.f32.mrf.mxu0
    %v4528 = vadd.f32 0.0, %v4527
    %4529 = vmatmul.f32.gmra.mxu0 %v4407
    %v4530 = vpop.f32.mrf.mxu0
    %v4531 = vadd.f32 0.0, %v4530
    %4532 = vdwg.mxu0
    %v4533 = vmul.f32 %v4374, %v4435
    %v4534 = vmul.f32 %v4375, %v4464
    %v4535 = vmul.f32 %v4376, %v4493
    %v4536 = vmul.f32 %v4377, %v4522
    %v4537 = vmul.f32 %v4378, %v4438
    %v4538 = vmul.f32 %v4379, %v4467
    %v4539 = vmul.f32 %v4380, %v4496
    %v4540 = vmul.f32 %v4381, %v4525
    %v4541 = vmul.f32 %v4382, %v4441
    %v4542 = vmul.f32 %v4383, %v4470
    %v4543 = vmul.f32 %v4384, %v4499
    %v4544 = vmul.f32 %v4385, %v4528
    %v4545 = vmul.f32 %v4386, %v4444
    %v4546 = vmul.f32 %v4387, %v4473
    %v4547 = vmul.f32 %v4388, %v4502
    %v4548 = vmul.f32 %v4389, %v4531
    %v4549 = vpack.c.bf16 %v4537, %v4533
    %v4550 = vpack.c.bf16 %v4538, %v4534
    %v4551 = vpack.c.bf16 %v4539, %v4535
    %v4552 = vpack.c.bf16 %v4540, %v4536
    %v4553 = vpack.c.bf16 %v4545, %v4541
    %v4554 = vpack.c.bf16 %v4546, %v4542
    %v4555 = vpack.c.bf16 %v4547, %v4543
    %v4556 = vpack.c.bf16 %v4548, %v4544
    %s4557 = scalar_lea.vmem %s13, 256
    %v4558 = vld [vmem:[%s4557] sm:$0xf]
    %v4559 = vld [vmem:[%s4557 + $0x4] sm:$0xf]
    %v4560 = vld [vmem:[%s4557 + $0x8] sm:$0xf]
    %v4561 = vld [vmem:[%s4557 + $0xc] sm:$0xf]
    %v4562 = vld [vmem:[%s4557 + $0x10] sm:$0xf]
    %v4563 = vld [vmem:[%s4557 + $0x14] sm:$0xf]
    %v4564 = vld [vmem:[%s4557 + $0x18] sm:$0xf]
    %v4565 = vld [vmem:[%s4557 + $0x1c] sm:$0xf]
    %v4566 = vld [vmem:[%s4557 + $0x20] sm:$0xf]
    %v4567 = vld [vmem:[%s4557 + $0x24] sm:$0xf]
    %v4568 = vld [vmem:[%s4557 + $0x28] sm:$0xf]
    %v4569 = vld [vmem:[%s4557 + $0x2c] sm:$0xf]
    %v4570 = vld [vmem:[%s4557 + $0x30] sm:$0xf]
    %v4571 = vld [vmem:[%s4557 + $0x34] sm:$0xf]
    %v4572 = vld [vmem:[%s4557 + $0x38] sm:$0xf]
    %v4573 = vld [vmem:[%s4557 + $0x3c] sm:$0xf]
    %v4574 = vld [vmem:[%s4557 + $0x40] sm:$0xf]
    %v4575 = vld [vmem:[%s4557 + $0x44] sm:$0xf]
    %v4576 = vld [vmem:[%s4557 + $0x48] sm:$0xf]
    %v4577 = vld [vmem:[%s4557 + $0x4c] sm:$0xf]
    %v4578 = vld [vmem:[%s4557 + $0x50] sm:$0xf]
    %v4579 = vld [vmem:[%s4557 + $0x54] sm:$0xf]
    %v4580 = vld [vmem:[%s4557 + $0x58] sm:$0xf]
    %v4581 = vld [vmem:[%s4557 + $0x5c] sm:$0xf]
    %v4582 = vld [vmem:[%s4557 + $0x60] sm:$0xf]
    %v4583 = vld [vmem:[%s4557 + $0x64] sm:$0xf]
    %v4584 = vld [vmem:[%s4557 + $0x68] sm:$0xf]
    %v4585 = vld [vmem:[%s4557 + $0x6c] sm:$0xf]
    %v4586 = vld [vmem:[%s4557 + $0x70] sm:$0xf]
    %v4587 = vld [vmem:[%s4557 + $0x74] sm:$0xf]
    %v4588 = vld [vmem:[%s4557 + $0x78] sm:$0xf]
    %v4589 = vld [vmem:[%s4557 + $0x7c] sm:$0xf]
    %v4590 = vld [vmem:[%s4557 + $0x80] sm:$0xf]
    %v4591 = vld [vmem:[%s4557 + $0x84] sm:$0xf]
    %v4592 = vld [vmem:[%s4557 + $0x88] sm:$0xf]
    %v4593 = vld [vmem:[%s4557 + $0x8c] sm:$0xf]
    %v4594 = vld [vmem:[%s4557 + $0x90] sm:$0xf]
    %v4595 = vld [vmem:[%s4557 + $0x94] sm:$0xf]
    %v4596 = vld [vmem:[%s4557 + $0x98] sm:$0xf]
    %v4597 = vld [vmem:[%s4557 + $0x9c] sm:$0xf]
    %v4598 = vld [vmem:[%s4557 + $0xa0] sm:$0xf]
    %v4599 = vld [vmem:[%s4557 + $0xa4] sm:$0xf]
    %v4600 = vld [vmem:[%s4557 + $0xa8] sm:$0xf]
    %v4601 = vld [vmem:[%s4557 + $0xac] sm:$0xf]
    %v4602 = vld [vmem:[%s4557 + $0xb0] sm:$0xf]
    %v4603 = vld [vmem:[%s4557 + $0xb4] sm:$0xf]
    %v4604 = vld [vmem:[%s4557 + $0xb8] sm:$0xf]
    %v4605 = vld [vmem:[%s4557 + $0xbc] sm:$0xf]
    %v4606 = vld [vmem:[%s4557 + $0xc0] sm:$0xf]
    %v4607 = vld [vmem:[%s4557 + $0xc4] sm:$0xf]
    %v4608 = vld [vmem:[%s4557 + $0xc8] sm:$0xf]
    %v4609 = vld [vmem:[%s4557 + $0xcc] sm:$0xf]
    %v4610 = vld [vmem:[%s4557 + $0xd0] sm:$0xf]
    %v4611 = vld [vmem:[%s4557 + $0xd4] sm:$0xf]
    %v4612 = vld [vmem:[%s4557 + $0xd8] sm:$0xf]
    %v4613 = vld [vmem:[%s4557 + $0xdc] sm:$0xf]
    %v4614 = vld [vmem:[%s4557 + $0xe0] sm:$0xf]
    %v4615 = vld [vmem:[%s4557 + $0xe4] sm:$0xf]
    %v4616 = vld [vmem:[%s4557 + $0xe8] sm:$0xf]
    %v4617 = vld [vmem:[%s4557 + $0xec] sm:$0xf]
    %v4618 = vld [vmem:[%s4557 + $0xf0] sm:$0xf]
    %v4619 = vld [vmem:[%s4557 + $0xf4] sm:$0xf]
    %v4620 = vld [vmem:[%s4557 + $0xf8] sm:$0xf]
    %v4621 = vld [vmem:[%s4557 + $0xfc] sm:$0xf]
    %v4686 = vunpack.c.l.b16 %v4558
    %v4687 = vunpack.c.l.b16 %v4559
    %v4688 = vunpack.c.l.b16 %v4560
    %v4689 = vunpack.c.l.b16 %v4561
    %v4690 = vunpack.c.l.b16 %v4562
    %v4691 = vunpack.c.l.b16 %v4563
    %v4692 = vunpack.c.l.b16 %v4564
    %v4693 = vunpack.c.l.b16 %v4565
    %v4694 = vunpack.c.l.b16 %v4566
    %v4695 = vunpack.c.l.b16 %v4567
    %v4696 = vunpack.c.l.b16 %v4568
    %v4697 = vunpack.c.l.b16 %v4569
    %v4698 = vunpack.c.l.b16 %v4570
    %v4699 = vunpack.c.l.b16 %v4571
    %v4700 = vunpack.c.l.b16 %v4572
    %v4701 = vunpack.c.l.b16 %v4573
    %v4702 = vunpack.c.l.b16 %v4574
    %v4703 = vunpack.c.l.b16 %v4575
    %v4704 = vunpack.c.l.b16 %v4576
    %v4705 = vunpack.c.l.b16 %v4577
    %v4706 = vunpack.c.l.b16 %v4578
    %v4707 = vunpack.c.l.b16 %v4579
    %v4708 = vunpack.c.l.b16 %v4580
    %v4709 = vunpack.c.l.b16 %v4581
    %v4710 = vunpack.c.l.b16 %v4582
    %v4711 = vunpack.c.l.b16 %v4583
    %v4712 = vunpack.c.l.b16 %v4584
    %v4713 = vunpack.c.l.b16 %v4585
    %v4714 = vunpack.c.l.b16 %v4586
    %v4715 = vunpack.c.l.b16 %v4587
    %v4716 = vunpack.c.l.b16 %v4588
    %v4717 = vunpack.c.l.b16 %v4589
    %v4718 = vunpack.c.l.b16 %v4590
    %v4719 = vunpack.c.l.b16 %v4591
    %v4720 = vunpack.c.l.b16 %v4592
    %v4721 = vunpack.c.l.b16 %v4593
    %v4722 = vunpack.c.l.b16 %v4594
    %v4723 = vunpack.c.l.b16 %v4595
    %v4724 = vunpack.c.l.b16 %v4596
    %v4725 = vunpack.c.l.b16 %v4597
    %v4726 = vunpack.c.l.b16 %v4598
    %v4727 = vunpack.c.l.b16 %v4599
    %v4728 = vunpack.c.l.b16 %v4600
    %v4729 = vunpack.c.l.b16 %v4601
    %v4730 = vunpack.c.l.b16 %v4602
    %v4731 = vunpack.c.l.b16 %v4603
    %v4732 = vunpack.c.l.b16 %v4604
    %v4733 = vunpack.c.l.b16 %v4605
    %v4734 = vunpack.c.l.b16 %v4606
    %v4735 = vunpack.c.l.b16 %v4607
    %v4736 = vunpack.c.l.b16 %v4608
    %v4737 = vunpack.c.l.b16 %v4609
    %v4738 = vunpack.c.l.b16 %v4610
    %v4739 = vunpack.c.l.b16 %v4611
    %v4740 = vunpack.c.l.b16 %v4612
    %v4741 = vunpack.c.l.b16 %v4613
    %v4742 = vunpack.c.l.b16 %v4614
    %v4743 = vunpack.c.l.b16 %v4615
    %v4744 = vunpack.c.l.b16 %v4616
    %v4745 = vunpack.c.l.b16 %v4617
    %v4746 = vunpack.c.l.b16 %v4618
    %v4747 = vunpack.c.l.b16 %v4619
    %v4748 = vunpack.c.l.b16 %v4620
    %v4749 = vunpack.c.l.b16 %v4621
    %v4750 = vpack.c.b16 %v4687, %v4686
    %v4751 = vpack.c.b16 %v4689, %v4688
    %v4752 = vpack.c.b16 %v4691, %v4690
    %v4753 = vpack.c.b16 %v4693, %v4692
    %v4754 = vpack.c.b16 %v4695, %v4694
    %v4755 = vpack.c.b16 %v4697, %v4696
    %v4756 = vpack.c.b16 %v4699, %v4698
    %v4757 = vpack.c.b16 %v4701, %v4700
    %v4758 = vpack.c.b16 %v4703, %v4702
    %v4759 = vpack.c.b16 %v4705, %v4704
    %v4760 = vpack.c.b16 %v4707, %v4706
    %v4761 = vpack.c.b16 %v4709, %v4708
    %v4762 = vpack.c.b16 %v4711, %v4710
    %v4763 = vpack.c.b16 %v4713, %v4712
    %v4764 = vpack.c.b16 %v4715, %v4714
    %v4765 = vpack.c.b16 %v4717, %v4716
    %v4766 = vpack.c.b16 %v4719, %v4718
    %v4767 = vpack.c.b16 %v4721, %v4720
    %v4768 = vpack.c.b16 %v4723, %v4722
    %v4769 = vpack.c.b16 %v4725, %v4724
    %v4770 = vpack.c.b16 %v4727, %v4726
    %v4771 = vpack.c.b16 %v4729, %v4728
    %v4772 = vpack.c.b16 %v4731, %v4730
    %v4773 = vpack.c.b16 %v4733, %v4732
    %v4774 = vpack.c.b16 %v4735, %v4734
    %v4775 = vpack.c.b16 %v4737, %v4736
    %v4776 = vpack.c.b16 %v4739, %v4738
    %v4777 = vpack.c.b16 %v4741, %v4740
    %v4778 = vpack.c.b16 %v4743, %v4742
    %v4779 = vpack.c.b16 %v4745, %v4744
    %v4780 = vpack.c.b16 %v4747, %v4746
    %v4781 = vpack.c.b16 %v4749, %v4748
    %4814 = vmatpush.bf16.msra.mxu0 %v4757
    %4815 = vmatpush.bf16.msra.mxu0 %v4756
    %4816 = vmatpush.bf16.msra.mxu0 %v4755
    %4817 = vmatpush.bf16.msra.mxu0 %v4754
    %4818 = vmatpush.bf16.msra.mxu0 %v4753
    %4819 = vmatpush.bf16.msra.mxu0 %v4752
    %4820 = vmatpush.bf16.msra.mxu0 %v4751
    %4821 = vmatpush.bf16.msra.mxu0 %v4750
    %4822 = vmatmul.bf16.gmra.mxu0 %v4549
    %v4823 = vpop.f32.mrf.mxu0
    %v4824 = vadd.f32 0.0, %v4823
    %v4825 = vpop.f32.mrf.mxu0
    %v4826 = vadd.f32 0.0, %v4825
    %4827 = vmatmul.bf16.gmra.mxu0 %v4553
    %v4828 = vpop.f32.mrf.mxu0
    %v4829 = vadd.f32 0.0, %v4828
    %v4830 = vpop.f32.mrf.mxu0
    %v4831 = vadd.f32 0.0, %v4830
    %4832 = vdwg.mxu0
    %4833 = vmatpush.bf16.msra.mxu0 %v4765
    %4834 = vmatpush.bf16.msra.mxu0 %v4764
    %4835 = vmatpush.bf16.msra.mxu0 %v4763
    %4836 = vmatpush.bf16.msra.mxu0 %v4762
    %4837 = vmatpush.bf16.msra.mxu0 %v4761
    %4838 = vmatpush.bf16.msra.mxu0 %v4760
    %4839 = vmatpush.bf16.msra.mxu0 %v4759
    %4840 = vmatpush.bf16.msra.mxu0 %v4758
    %4841 = vmatmul.bf16.gmra.mxu0 %v4550
    %v4842 = vpop.f32.mrf.mxu0
    %v4843 = vadd.f32 %v4824, %v4842
    %v4844 = vpop.f32.mrf.mxu0
    %v4845 = vadd.f32 %v4826, %v4844
    %4846 = vmatmul.bf16.gmra.mxu0 %v4554
    %v4847 = vpop.f32.mrf.mxu0
    %v4848 = vadd.f32 %v4829, %v4847
    %v4849 = vpop.f32.mrf.mxu0
    %v4850 = vadd.f32 %v4831, %v4849
    %4851 = vdwg.mxu0
    %4852 = vmatpush.bf16.msra.mxu0 %v4773
    %4853 = vmatpush.bf16.msra.mxu0 %v4772
    %4854 = vmatpush.bf16.msra.mxu0 %v4771
    %4855 = vmatpush.bf16.msra.mxu0 %v4770
    %4856 = vmatpush.bf16.msra.mxu0 %v4769
    %4857 = vmatpush.bf16.msra.mxu0 %v4768
    %4858 = vmatpush.bf16.msra.mxu0 %v4767
    %4859 = vmatpush.bf16.msra.mxu0 %v4766
    %4860 = vmatmul.bf16.gmra.mxu0 %v4551
    %v4861 = vpop.f32.mrf.mxu0
    %v4862 = vadd.f32 %v4843, %v4861
    %v4863 = vpop.f32.mrf.mxu0
    %v4864 = vadd.f32 %v4845, %v4863
    %4865 = vmatmul.bf16.gmra.mxu0 %v4555
    %v4866 = vpop.f32.mrf.mxu0
    %v4867 = vadd.f32 %v4848, %v4866
    %v4868 = vpop.f32.mrf.mxu0
    %v4869 = vadd.f32 %v4850, %v4868
    %4870 = vdwg.mxu0
    %4871 = vmatpush.bf16.msra.mxu0 %v4781
    %4872 = vmatpush.bf16.msra.mxu0 %v4780
    %4873 = vmatpush.bf16.msra.mxu0 %v4779
    %4874 = vmatpush.bf16.msra.mxu0 %v4778
    %4875 = vmatpush.bf16.msra.mxu0 %v4777
    %4876 = vmatpush.bf16.msra.mxu0 %v4776
    %4877 = vmatpush.bf16.msra.mxu0 %v4775
    %4878 = vmatpush.bf16.msra.mxu0 %v4774
    %4879 = vmatmul.bf16.gmra.mxu0 %v4552
    %v4880 = vpop.f32.mrf.mxu0
    %v4881 = vadd.f32 %v4862, %v4880
    %v4882 = vpop.f32.mrf.mxu0
    %v4883 = vadd.f32 %v4864, %v4882
    %4884 = vmatmul.bf16.gmra.mxu0 %v4556
    %v4885 = vpop.f32.mrf.mxu0
    %v4886 = vadd.f32 %v4867, %v4885
    %v4887 = vpop.f32.mrf.mxu0
    %v4888 = vadd.f32 %v4869, %v4887
    %4889 = vdwg.mxu0
    %v4890 = vadd.f32 %v3458, %v4881
    %v4891 = vadd.f32 %v3459, %v4883
    %v4892 = vadd.f32 %v3460, %v4886
    %v4893 = vadd.f32 %v3461, %v4888
    %v4894 = vld [vmem:[%s14] sm:$0x1]
    %v4895 = vmul.f32 %v4890, %v4890
    %v4896 = vmul.f32 %v4891, %v4891
    %v4897 = vmul.f32 %v4892, %v4892
    %v4898 = vmul.f32 %v4893, %v4893
    %v4899 = vsel %vm107, %v4895, 0.0
    %4900 = vadd.xlane.f32.xlu0 %v4899
    %v4901 = vpop.xlane.xlu0 %4900
    %v4902 = vsel %vm107, %v4896, 0.0
    %4903 = vadd.xlane.f32.xlu0 %v4902
    %v4904 = vpop.xlane.xlu0 %4903
    %v4905 = vsel %vm107, %v4897, 0.0
    %4906 = vadd.xlane.f32.xlu0 %v4905
    %v4907 = vpop.xlane.xlu0 %4906
    %v4908 = vsel %vm107, %v4898, 0.0
    %4909 = vadd.xlane.f32.xlu0 %v4908
    %v4910 = vpop.xlane.xlu0 %4909
    %v4911 = vmul.f32 %v4901, %v151
    %v4912 = vmul.f32 %v4904, %v151
    %v4913 = vmul.f32 %v4907, %v151
    %v4914 = vmul.f32 %v4910, %v151
    %v4915 = vadd.f32 %v4911, 1e-06
    %v4916 = vadd.f32 %v4912, 1e-06
    %v4917 = vadd.f32 %v4913, 1e-06
    %v4918 = vadd.f32 %v4914, 1e-06
    %v4919 = vrsqrt.pop %v4915
    %v4920 = vmul.f32 %v4919, %v4915
    %v4921 = vmul.f32 %v4920, %v4919
    %v4922 = vmul.f32 0.5, %v4921
    %v4923 = vsub.f32 1.5, %v4922
    %v4924 = vmul.f32 %v4919, %v4923
    %vm4925 = vweird.f32 %v4915
    %vm4926 = vweird.f32 %v4919
    %vm4927 = vmor %vm4925, %vm4926
    %v4928 = vsel %vm4927, %v4919, %v4924
    %v4929 = vrsqrt.pop %v4916
    %v4930 = vmul.f32 %v4929, %v4916
    %v4931 = vmul.f32 %v4930, %v4929
    %v4932 = vmul.f32 0.5, %v4931
    %v4933 = vsub.f32 1.5, %v4932
    %v4934 = vmul.f32 %v4929, %v4933
    %vm4935 = vweird.f32 %v4916
    %vm4936 = vweird.f32 %v4929
    %vm4937 = vmor %vm4935, %vm4936
    %v4938 = vsel %vm4937, %v4929, %v4934
    %v4939 = vrsqrt.pop %v4917
    %v4940 = vmul.f32 %v4939, %v4917
    %v4941 = vmul.f32 %v4940, %v4939
    %v4942 = vmul.f32 0.5, %v4941
    %v4943 = vsub.f32 1.5, %v4942
    %v4944 = vmul.f32 %v4939, %v4943
    %vm4945 = vweird.f32 %v4917
    %vm4946 = vweird.f32 %v4939
    %vm4947 = vmor %vm4945, %vm4946
    %v4948 = vsel %vm4947, %v4939, %v4944
    %v4949 = vrsqrt.pop %v4918
    %v4950 = vmul.f32 %v4949, %v4918
    %v4951 = vmul.f32 %v4950, %v4949
    %v4952 = vmul.f32 0.5, %v4951
    %v4953 = vsub.f32 1.5, %v4952
    %v4954 = vmul.f32 %v4949, %v4953
    %vm4955 = vweird.f32 %v4918
    %vm4956 = vweird.f32 %v4949
    %vm4957 = vmor %vm4955, %vm4956
    %v4958 = vsel %vm4957, %v4949, %v4954
    %v4959 = vmul.f32 %v4890, %v4928
    %v4960 = vmul.f32 %v4891, %v4938
    %v4961 = vmul.f32 %v4892, %v4948
    %v4962 = vmul.f32 %v4893, %v4958
    %v4964 = vperm.slane %v4894, 0
    %v4966 = vmul.f32 %v4959, %v4964
    %v4967 = vmul.f32 %v4960, %v4964
    %v4968 = vmul.f32 %v4961, %v4964
    %v4969 = vmul.f32 %v4962, %v4964
    %v4970 = vpack.c.bf16 %v4967, %v4966
    %v4971 = vpack.c.bf16 %v4969, %v4968
    %v4972 = vld [vmem:[%s15] sm:$0xff]
    %v4973 = vld [vmem:[%s15 + $0x8] sm:$0xff]
    %v4974 = vld [vmem:[%s15 + $0x10] sm:$0xff]
    %v4975 = vld [vmem:[%s15 + $0x18] sm:$0xff]
    %v4976 = vld [vmem:[%s15 + $0x20] sm:$0xff]
    %v4977 = vld [vmem:[%s15 + $0x28] sm:$0xff]
    %v4978 = vld [vmem:[%s15 + $0x30] sm:$0xff]
    %v4979 = vld [vmem:[%s15 + $0x38] sm:$0xff]
    %v4988 = vunpack.c.l.b16 %v4972
    %v4989 = vunpack.c.h.b16 %v4972
    %v4990 = vunpack.c.l.b16 %v4973
    %v4991 = vunpack.c.h.b16 %v4973
    %v4992 = vunpack.c.l.b16 %v4974
    %v4993 = vunpack.c.h.b16 %v4974
    %v4994 = vunpack.c.l.b16 %v4975
    %v4995 = vunpack.c.h.b16 %v4975
    %v4996 = vunpack.c.l.b16 %v4976
    %v4997 = vunpack.c.h.b16 %v4976
    %v4998 = vunpack.c.l.b16 %v4977
    %v4999 = vunpack.c.h.b16 %v4977
    %v5000 = vunpack.c.l.b16 %v4978
    %v5001 = vunpack.c.h.b16 %v4978
    %v5002 = vunpack.c.l.b16 %v4979
    %v5003 = vunpack.c.h.b16 %v4979
    %v5004 = vpack.c.b16 %v4990, %v4988
    %v5005 = vpack.c.b16 %v4991, %v4989
    %v5006 = vpack.c.b16 %v4994, %v4992
    %v5007 = vpack.c.b16 %v4995, %v4993
    %v5008 = vpack.c.b16 %v4998, %v4996
    %v5009 = vpack.c.b16 %v4999, %v4997
    %v5010 = vpack.c.b16 %v5002, %v5000
    %v5011 = vpack.c.b16 %v5003, %v5001
    %v5021 = vsel %vm107, %v4970, 0
    %v5024 = vsel %vm107, %v4971, 0
    %5026 = vmatpush.bf16.msra.mxu0 0
    %5027 = vmatpush.bf16.msra.mxu0 0
    %5028 = vmatpush.bf16.msra.mxu0 0
    %5029 = vmatpush.bf16.msra.mxu0 0
    %5030 = vmatpush.bf16.msra.mxu0 %v5010
    %5031 = vmatpush.bf16.msra.mxu0 %v5008
    %5032 = vmatpush.bf16.msra.mxu0 %v5006
    %5033 = vmatpush.bf16.msra.mxu0 %v5004
    %5034 = vmatmul.bf16.gmra.mxu0 %v5021
    %v5035 = vpop.f32.mrf.mxu0
    %v5036 = vadd.f32 0.0, %v5035
    %v5037 = vpop.f32.mrf.mxu0
    %v5038 = vadd.f32 0.0, %v5037
    %5039 = vmatmul.bf16.gmra.mxu0 %v5024
    %v5040 = vpop.f32.mrf.mxu0
    %v5041 = vadd.f32 0.0, %v5040
    %v5042 = vpop.f32.mrf.mxu0
    %v5043 = vadd.f32 0.0, %v5042
    %5044 = vdwg.mxu0
    %5045 = vmatpush.bf16.msra.mxu0 0
    %5046 = vmatpush.bf16.msra.mxu0 0
    %5047 = vmatpush.bf16.msra.mxu0 0
    %5048 = vmatpush.bf16.msra.mxu0 0
    %5049 = vmatpush.bf16.msra.mxu0 %v5011
    %5050 = vmatpush.bf16.msra.mxu0 %v5009
    %5051 = vmatpush.bf16.msra.mxu0 %v5007
    %5052 = vmatpush.bf16.msra.mxu0 %v5005
    %5053 = vmatmul.bf16.gmra.mxu0 %v5021
    %v5054 = vpop.f32.mrf.mxu0
    %v5055 = vadd.f32 0.0, %v5054
    %v5056 = vpop.f32.mrf.mxu0
    %v5057 = vadd.f32 0.0, %v5056
    %5058 = vmatmul.bf16.gmra.mxu0 %v5024
    %v5059 = vpop.f32.mrf.mxu0
    %v5060 = vadd.f32 0.0, %v5059
    %v5061 = vpop.f32.mrf.mxu0
    %v5062 = vadd.f32 0.0, %v5061
    %5063 = vdwg.mxu0
    %5064 = vst [vmem:[#allocation3] sm:$0xff] %v5036
    %5065 = vst [vmem:[#allocation3 + $0x8] sm:$0xff] %v5055
    %5066 = vst [vmem:[#allocation3 + $0x10] sm:$0xff] %v5038
    %5067 = vst [vmem:[#allocation3 + $0x18] sm:$0xff] %v5057
    %5068 = vst [vmem:[#allocation3 + $0x20] sm:$0xff] %v5041
    %5069 = vst [vmem:[#allocation3 + $0x28] sm:$0xff] %v5060
    %5070 = vst [vmem:[#allocation3 + $0x30] sm:$0xff] %v5043
    %5071 = vst [vmem:[#allocation3 + $0x38] sm:$0xff] %v5062
    // Predicated region
    $region66: #{tpu_custom_call.1} parent=1 // pred_check
      _
    $region67: #{tpu_custom_call.1} parent=1 // pred_check_branch
      %5073 = sbr.rel (0) target = $region69
    $region68: #{tpu_custom_call.1} parent=1 // pred_region
      %5075 = vsyncadd [#allocation4], 0
      %s5076 = sshll.u32 [#allocation3], 4
      %s5077 = int_to_ptr.vmem [resolvable:$true] %s5076
      %s5078 = sshll.u32 %s16, 4
      %s5079 = int_to_ptr.hbm [resolvable:$true] %s5078
      %5084 = dma.vmem_to_hbm [thread:$0]  %s5077, 1024, %s5079, [#allocation4], 256, 256, 16
    $region69: #{tpu_custom_call.1} parent=1 // pred_fallthru
      _
    // Predicated region
    $region70: #{tpu_custom_call.1} parent=1 // pred_check
      _
    $region71: #{tpu_custom_call.1} parent=1 // pred_check_branch
      %5086 = sbr.rel (0) target = $region73
    $region72: #{tpu_custom_call.1} parent=1 // pred_region
      %5088 = dma.done [#allocation4], 1024
    $region73: #{tpu_custom_call.1} parent=1 // pred_fallthru
      _
    %5089 = vsyncpa [#allocation4], 1

</llo_original>
